<compile_context>
chip_gen: v7x
topology: tpu7x:2x2x1
jax: 0.10.0
libtpu: 0.0.40
codegen_flags: <defaults>
</compile_context>

<pallas_src>
import functools
import math

import jax
import jax.numpy as jnp
from jax.experimental import pallas as pl
from jax.experimental.pallas import tpu as pltpu


# ----------------------------------------------------------------------------
# helpers
# ----------------------------------------------------------------------------
def _mm(a, b):
    """bf16 MXU matmul with f32 accumulation."""
    return jnp.dot(a.astype(jnp.bfloat16), b.astype(jnp.bfloat16),
                   preferred_element_type=jnp.float32)


def _layer_norm(x, g, b, eps=1e-5):
    mu = jnp.mean(x, axis=-1, keepdims=True)
    xc = x - mu
    var = jnp.mean(xc * xc, axis=-1, keepdims=True)
    return xc * jax.lax.rsqrt(var + eps) * g + b


# ----------------------------------------------------------------------------
# Mega-kernel: whole forward for ONE batch item per grid step.
# ----------------------------------------------------------------------------
def _mega_kernel(adj_ref, x_ref, bert_ref, gmask_ref, tmask_ref,
                 gcn_w1_ref, gcn_w2_ref, gcn_lin2_ref, gcn_b_ref,
                 tfcn_w_ref, enc_w_ref, enc_f1w_ref, enc_f2w_ref,
                 enc_vec_ref, enc_f1b_ref, head_vec_ref,
                 out_ref, *, nhead):
    f32 = jnp.float32
    S = x_ref.shape[1]
    D = x_ref.shape[2]
    T = bert_ref.shape[1]
    hd = D // nhead
    scale = 1.0 / math.sqrt(hd)

    # head-column masks, shared by every attention block (hoisted once)
    lane = jax.lax.broadcasted_iota(jnp.int32, (1, D), 1)
    head_masks = [jnp.logical_and(lane >= h * hd, lane < (h + 1) * hd).astype(f32)
                  for h in range(nhead)]

    # -------------------- MultiGCNEncoder --------------------
    # TODO(synk): GraphConvolution source not provided; standard out = adj @ (x @ W) + b
    #             assumed, ReLU applied outside (as in the PyTorch forward).
    adj = adj_ref[0]                                       # (3, S, S) raw adjacencies
    deg = jnp.sum(adj, axis=-1, keepdims=True)
    deg = jnp.where(deg == 0.0, 1e-6, deg)
    adjn = adj / deg                                       # row-normalised
    x0 = x_ref[0]                                          # (S, D) embedded nodes

    xw = _mm(x0, gcn_w1_ref[...])                          # (S, 3D): one push for 3 conv1's
    g2 = []
    for i in range(3):                                     # static 3-branch loop
        h1 = _mm(adjn[i], xw[:, i * D:(i + 1) * D]) + gcn_b_ref[i:i + 1, :]
        h1 = jnp.maximum(h1, 0.0)
        h2 = _mm(adjn[i], _mm(h1, gcn_w2_ref[i])) + gcn_b_ref[3 + i:4 + i, :]
        g2.append(jnp.maximum(h2, 0.0))
    g_cat = jnp.concatenate(g2, axis=-1)                   # (S, 3D)
    graph_x = _mm(g_cat, gcn_lin2_ref[...]) + gcn_b_ref[6:7, :]   # linear2 -> (S, D)

    # -------------------- text branch (text_fcn) --------------------
    # TODO(synk): frozen BERT backbone (AutoModel) has no Pallas equivalent here;
    #             its last_hidden_state is a kernel input (bf16).
    text_x = _mm(bert_ref[0], tfcn_w_ref[...]) + head_vec_ref[0:1, :]   # (T, D)

    gmask = gmask_ref[0]                                   # (1, S) additive mask
    tmask = tmask_ref[0]                                   # (1, T) additive mask

    # -------------------- fused encoder block --------------------
    def enc_block(idx, query, key, addm, is_self, need_weights):
        W = enc_w_ref[idx]                                 # (D, 4D): wq|wk|wv|wo
        vec = enc_vec_ref[idx]                             # (10, D)
        bq, bk, bv, bo, b2 = (vec[i:i + 1, :] for i in range(5))
        ln1g, ln1b, ln2g, ln2b = (vec[i:i + 1, :] for i in range(5, 9))
        b1 = enc_f1b_ref[idx:idx + 1, :]                   # (1, H)

        Sq = query.shape[0]
        qp = _mm(query, W)                                 # (Sq, 4D) — one push
        kvp = qp if is_self else _mm(key, W)               # self-attn: reuse (one push total)
        q = qp[:, 0:D] + bq
        k = kvp[:, D:2 * D] + bk
        v = kvp[:, 2 * D:3 * D] + bv

        # all heads in ONE score matmul and ONE context matmul (head-stacked rows)
        q_stack = jnp.concatenate([q * (hm * scale) for hm in head_masks], axis=0)
        s = jax.lax.dot_general(q_stack.astype(jnp.bfloat16), k.astype(jnp.bfloat16),
                                (((1,), (1,)), ((), ())),
                                preferred_element_type=f32)        # (nhead*Sq, Sk)
        s = s + addm
        s = s - jnp.max(s, axis=-1, keepdims=True)
        e = jnp.exp(s)
        p = e / jnp.sum(e, axis=-1, keepdims=True)          # exact divide (parity)
        c_all = _mm(p, v)                                   # (nhead*Sq, D)
        ctx = sum(c_all[h * Sq:(h + 1) * Sq, :] * head_masks[h] for h in range(nhead))
        attn = None
        if need_weights:                                    # averaged over heads (PyTorch default)
            attn = sum(p[h * Sq:(h + 1) * Sq, :] for h in range(nhead)) * (1.0 / nhead)

        x = _mm(ctx, W[:, 3 * D:4 * D]) + bo                # out-proj
        x = _layer_norm(x + query, ln1g, ln1b)              # residual + LN1
        hdn = jnp.maximum(_mm(x, enc_f1w_ref[idx]) + b1, 0.0)
        x2 = _mm(hdn, enc_f2w_ref[idx]) + b2
        x = _layer_norm(x + x2, ln2g, ln2b)                 # residual + LN2
        return x, attn

    graph_x, gt_attn = enc_block(0, graph_x, text_x, tmask, False, True)
    graph_x, _ = enc_block(1, graph_x, graph_x, gmask, True, False)
    text_x, text_attn = enc_block(2, text_x, graph_x, gmask, False, True)
    text_x, _ = enc_block(3, text_x, text_x, tmask, True, False)

    # -------------------- regression head (cross_mode='concat', num_label=1) -----
    valid = jnp.where(gmask == 0.0, 1.0, 0.0)               # (1, S)  1 = valid token
    denom = jnp.maximum(jnp.sum(valid, axis=-1, keepdims=True), 1e-6)  # clamp (safety)
    pooled = _mm(valid, graph_x) / denom                    # (1, D) masked mean-pool
    cls = text_x[0:1, :]                                    # (1, D) CLS token
    w_g = head_vec_ref[1:2, :]
    w_t = head_vec_ref[2:3, :]
    b_y = head_vec_ref[3:4, 0:1]
    y = (jnp.sum(pooled * w_g, axis=-1, keepdims=True)
         + jnp.sum(cls * w_t, axis=-1, keepdims=True) + b_y)          # (1, 1)

    # -------------------- lane-dense packed output slab --------------------
    # columns: [0:T] gt_attn (rows 0:S) | [T:T+S] text_attn (rows 0:T) | [T+S] y | pad
    R = out_ref.shape[1]
    LANES = out_ref.shape[2]

    def pad_rows(a, rows):
        if a.shape[0] == rows:
            return a
        return jnp.concatenate(
            [a, jnp.zeros((rows - a.shape[0], a.shape[1]), f32)], axis=0)

    parts = [pad_rows(gt_attn, R), pad_rows(text_attn, R), pad_rows(y, R)]
    rem = LANES - (T + S + 1)
    if rem > 0:
        parts.append(jnp.zeros((R, rem), f32))
    out_ref[0] = jnp.concatenate(parts, axis=-1)


# ----------------------------------------------------------------------------
# Wrapper: one pallas_call for the whole forward.
# ----------------------------------------------------------------------------
def forward(params, input_nodes, input_mask, diag_graph, med_graph, dm_graph,
            bert_last_hidden_state, text_attention_mask, nhead):
    B, S = input_nodes.shape
    T = bert_last_hidden_state.shape[1]
    bert_dim = bert_last_hidden_state.shape[2]
    D = params["emb"].shape[1]
    H = params["enc_f1w"].shape[-1]

    # glue: embedding gather, adjacency packing, text mask build, bf16 cast
    x_emb = jnp.take(params["emb"], input_nodes, axis=0)                     # (B,S,D)
    adj = jnp.stack([diag_graph, med_graph, dm_graph], axis=1)               # (B,3,S,S)
    gmask = input_mask.reshape(B, 1, S).astype(jnp.float32)                  # additive
    tmask = jnp.where(text_attention_mask == 1, 0.0, -1e9).astype(jnp.float32)
    tmask = tmask.reshape(B, 1, T)
    bert_bf16 = bert_last_hidden_state.astype(jnp.bfloat16)

    R = max(S, T)
    LANES = 128
    assert S + T + 1 <= LANES, "output slab packing assumes S + T + 1 <= 128"

    slab = pl.pallas_call(
        functools.partial(_mega_kernel, nhead=nhead),
        out_shape=jax.ShapeDtypeStruct((B, R, LANES), jnp.float32),
        grid=(B,),
        in_specs=[
            pl.BlockSpec((1, 3, S, S), lambda b: (b, 0, 0, 0)),      # adjacencies (packed)
            pl.BlockSpec((1, S, D), lambda b: (b, 0, 0)),            # embedded nodes
            pl.BlockSpec((1, T, bert_dim), lambda b: (b, 0, 0)),     # BERT hidden (bf16)
            pl.BlockSpec((1, 1, S), lambda b: (b, 0, 0)),            # graph additive mask
            pl.BlockSpec((1, 1, T), lambda b: (b, 0, 0)),            # text additive mask
            pl.BlockSpec((D, 3 * D), lambda b: (0, 0)),              # gcn conv1 (packed)
            pl.BlockSpec((3, D, D), lambda b: (0, 0, 0)),            # gcn conv2
            pl.BlockSpec((3 * D, D), lambda b: (0, 0)),              # gcn linear2
            pl.BlockSpec((8, D), lambda b: (0, 0)),                  # gcn biases (packed)
            pl.BlockSpec((bert_dim, D), lambda b: (0, 0)),           # text_fcn weight (bf16)
            pl.BlockSpec((4, D, 4 * D), lambda b: (0, 0, 0)),        # enc wq|wk|wv|wo
            pl.BlockSpec((4, D, H), lambda b: (0, 0, 0)),            # enc ffn w1
            pl.BlockSpec((4, H, D), lambda b: (0, 0, 0)),            # enc ffn w2
            pl.BlockSpec((4, 10, D), lambda b: (0, 0, 0)),           # enc biases + LN params
            pl.BlockSpec((4, H), lambda b: (0, 0)),                  # enc ffn b1
            pl.BlockSpec((4, D), lambda b: (0, 0)),                  # text_fcn_b / head w / head b
        ],
        out_specs=pl.BlockSpec((1, R, LANES), lambda b: (b, 0, 0)),
        compiler_params=pltpu.CompilerParams(dimension_semantics=("parallel",)),
    )(adj, x_emb, bert_bf16, gmask, tmask,
      params["gcn_w1"], params["gcn_w2"], params["gcn_lin2"], params["gcn_b"],
      params["tfcn_w"], params["enc_w"], params["enc_f1w"], params["enc_f2w"],
      params["enc_vec"], params["enc_f1b"], params["head_vec"])

    gt_attn = slab[:, :S, :T]
    text_attn = slab[:, :T, T:T + S]
    y = slab[:, 0, T + S:T + S + 1]
    cont_loss = None  # contrastive loss only computed when a tokenizer is supplied
    return y, cont_loss, gt_attn, text_attn


# ----------------------------------------------------------------------------
# Deterministic parameter init (packed layouts expected by the fused kernel)
# ----------------------------------------------------------------------------
def _dense(key, shape, scale=0.05):
    return jax.random.normal(key, shape, jnp.float32) * scale


def init_params(key, vocab, d_model, bert_dim=768, num_label=1):
    D, H = d_model, 2 * d_model
    keys = iter(jax.random.split(key, 40))
    nk = lambda: next(keys)

    p = {"emb": _dense(nk(), (vocab, D), 0.1)}

    # ---- GCN ----
    p["gcn_w1"] = jnp.concatenate([_dense(nk(), (D, D)) for _ in range(3)], axis=1)  # (D,3D)
    p["gcn_w2"] = jnp.stack([_dense(nk(), (D, D)) for _ in range(3)], axis=0)        # (3,D,D)
    p["gcn_lin2"] = _dense(nk(), (3 * D, D))                                         # (3D,D)
    p["gcn_b"] = jnp.zeros((8, D), jnp.float32)   # rows 0-2 conv1, 3-5 conv2, 6 lin2, 7 pad

    # ---- text_fcn (bf16 resident weight) ----
    p["tfcn_w"] = _dense(nk(), (bert_dim, D)).astype(jnp.bfloat16)

    # ---- 4 encoder blocks: graph_cross, graph_self, text_cross, text_self ----
    enc_w, f1w, f2w, vec, f1b = [], [], [], [], []
    for _ in range(4):
        wq, wk, wv, wo = (_dense(nk(), (D, D)) for _ in range(4))
        enc_w.append(jnp.concatenate([wq, wk, wv, wo], axis=1))    # (D, 4D)
        f1w.append(_dense(nk(), (D, H)))
        f2w.append(_dense(nk(), (H, D)))
        vec.append(jnp.concatenate([
            jnp.zeros((5, D), jnp.float32),     # bq, bk, bv, bo, b2
            jnp.ones((1, D), jnp.float32),      # ln1 gamma
            jnp.zeros((1, D), jnp.float32),     # ln1 beta
            jnp.ones((1, D), jnp.float32),      # ln2 gamma
            jnp.zeros((2, D), jnp.float32),     # ln2 beta + pad
        ], axis=0))                              # (10, D)
        f1b.append(jnp.zeros((H,), jnp.float32))
    p["enc_w"] = jnp.stack(enc_w, axis=0)
    p["enc_f1w"] = jnp.stack(f1w, axis=0)
    p["enc_f2w"] = jnp.stack(f2w, axis=0)
    p["enc_vec"] = jnp.stack(vec, axis=0)
    p["enc_f1b"] = jnp.stack(f1b, axis=0)

    # ---- head: row0 text_fcn bias, row1/2 output-layer weight halves, row3[0] bias ----
    # TODO(synk): head packing specialises num_label=1 (module default); wider label counts
    #             would use a (2D, L) matmul instead of the lane reduction.
    out_w = _dense(nk(), (2 * D, num_label))
    head_vec = jnp.zeros((4, D), jnp.float32)
    head_vec = head_vec.at[1].set(out_w[:D, 0])
    head_vec = head_vec.at[2].set(out_w[D:, 0])
    p["head_vec"] = head_vec
    return p


# ----------------------------------------------------------------------------
if __name__ == "__main__":
    B, S, T = 2, 8, 8            # batch, graph seq, text seq
    d_model, nhead = 32, 2
    vocab, bert_dim = 20, 768

    key = jax.random.PRNGKey(0)
    k0, k1, k2, k3, k4, kp = jax.random.split(key, 6)

    input_nodes = jax.random.randint(k0, (B, S), 0, vocab)
    # input_mask is the additive float mask used by the PyTorch model: 0.0 = valid, -1e9 = pad
    input_mask = jnp.zeros((B, S), jnp.float32).at[1, -2:].set(-1e9)

    def mk_graph(k):
        a = jax.random.bernoulli(k, 0.4, (B, S, S)).astype(jnp.float32)
        return jnp.clip(a + jnp.eye(S, dtype=jnp.float32)[None], 0.0, 1.0)

    diag_graph = mk_graph(k1)
    med_graph = mk_graph(k2)
    dm_graph = mk_graph(k3)

    bert_last_hidden_state = jax.random.normal(k4, (B, T, bert_dim), jnp.float32) * 0.1
    text_attention_mask = jnp.ones((B, T), jnp.int32).at[0, -1].set(0)

    params = init_params(kp, vocab, d_model, bert_dim, num_label=1)

    fwd = jax.jit(functools.partial(forward, nhead=nhead))
    y, cont_loss, gt_attn, text_attn = fwd(
        params, input_nodes, input_mask, diag_graph, med_graph, dm_graph,
        bert_last_hidden_state, text_attention_mask)

    jax.block_until_ready((y, gt_attn, text_attn))
    assert y.shape == (B, 1)
    assert gt_attn.shape == (B, S, T) and text_attn.shape == (B, T, S)
    print("KERNEL_OK")
</pallas_src>

<mosaic_0001>
module attributes {stable_mosaic.version = 11 : i64} {
  func.func @_mega_kernel(%arg0: i32, %arg1: memref<1x3x8x8xf32, #tpu.memory_space<vmem>>, %arg2: memref<1x8x32xf32, #tpu.memory_space<vmem>>, %arg3: memref<1x8x768xbf16, #tpu.memory_space<vmem>>, %arg4: memref<1x1x8xf32, #tpu.memory_space<vmem>>, %arg5: memref<1x1x8xf32, #tpu.memory_space<vmem>>, %arg6: memref<32x96xf32, #tpu.memory_space<vmem>>, %arg7: memref<3x32x32xf32, #tpu.memory_space<vmem>>, %arg8: memref<96x32xf32, #tpu.memory_space<vmem>>, %arg9: memref<8x32xf32, #tpu.memory_space<vmem>>, %arg10: memref<768x32xbf16, #tpu.memory_space<vmem>>, %arg11: memref<4x32x128xf32, #tpu.memory_space<vmem>>, %arg12: memref<4x32x64xf32, #tpu.memory_space<vmem>>, %arg13: memref<4x64x32xf32, #tpu.memory_space<vmem>>, %arg14: memref<4x10x32xf32, #tpu.memory_space<vmem>>, %arg15: memref<4x64xf32, #tpu.memory_space<vmem>>, %arg16: memref<4x32xf32, #tpu.memory_space<vmem>>, %arg17: memref<1x8x128xf32, #tpu.memory_space<vmem>>) attributes {dimension_semantics = [#tpu.dimension_semantics<parallel>], iteration_bounds = array<i64: 2>, scalar_prefetch = 0 : i64, scratch_operands = 0 : i64, tpu.core_type = #tpu.core_type<tc>, window_params = [{transform_indices = @transform_0, window_bounds = array<i64: 1, 3, 8, 8>}, {transform_indices = @transform_1, window_bounds = array<i64: 1, 8, 32>}, {transform_indices = @transform_2, window_bounds = array<i64: 1, 8, 768>}, {transform_indices = @transform_3, window_bounds = array<i64: 1, 1, 8>}, {transform_indices = @transform_4, window_bounds = array<i64: 1, 1, 8>}, {pipeline_mode = #tpu.pipeline_mode<synchronous>, transform_indices = @transform_5, window_bounds = array<i64: 32, 96>}, {pipeline_mode = #tpu.pipeline_mode<synchronous>, transform_indices = @transform_6, window_bounds = array<i64: 3, 32, 32>}, {pipeline_mode = #tpu.pipeline_mode<synchronous>, transform_indices = @transform_7, window_bounds = array<i64: 96, 32>}, {pipeline_mode = #tpu.pipeline_mode<synchronous>, transform_indices = @transform_8, window_bounds = array<i64: 8, 32>}, {pipeline_mode = #tpu.pipeline_mode<synchronous>, transform_indices = @transform_9, window_bounds = array<i64: 768, 32>}, {pipeline_mode = #tpu.pipeline_mode<synchronous>, transform_indices = @transform_10, window_bounds = array<i64: 4, 32, 128>}, {pipeline_mode = #tpu.pipeline_mode<synchronous>, transform_indices = @transform_11, window_bounds = array<i64: 4, 32, 64>}, {pipeline_mode = #tpu.pipeline_mode<synchronous>, transform_indices = @transform_12, window_bounds = array<i64: 4, 64, 32>}, {pipeline_mode = #tpu.pipeline_mode<synchronous>, transform_indices = @transform_13, window_bounds = array<i64: 4, 10, 32>}, {pipeline_mode = #tpu.pipeline_mode<synchronous>, transform_indices = @transform_14, window_bounds = array<i64: 4, 64>}, {pipeline_mode = #tpu.pipeline_mode<synchronous>, transform_indices = @transform_15, window_bounds = array<i64: 4, 32>}, {transform_indices = @transform_16, window_bounds = array<i64: 1, 8, 128>}]} {
    %0 = tpu.iota {dimensions = array<i32: 1>} : vector<1x32xi32>
    %c0_i32 = arith.constant 0 : i32
    %1 = vector.broadcast %c0_i32 : i32 to vector<1x32xi32>
    %2 = arith.cmpi sge, %0, %1 : vector<1x32xi32>
    %c16_i32 = arith.constant 16 : i32
    %3 = vector.broadcast %c16_i32 : i32 to vector<1x32xi32>
    %4 = arith.cmpi slt, %0, %3 : vector<1x32xi32>
    %5 = arith.andi %2, %4 : vector<1x32xi1>
    %6 = arith.extui %5 : vector<1x32xi1> to vector<1x32xi32>
    %7 = arith.sitofp %6 : vector<1x32xi32> to vector<1x32xf32>
    %c16_i32_0 = arith.constant 16 : i32
    %8 = vector.broadcast %c16_i32_0 : i32 to vector<1x32xi32>
    %9 = arith.cmpi sge, %0, %8 : vector<1x32xi32>
    %c32_i32 = arith.constant 32 : i32
    %10 = vector.broadcast %c32_i32 : i32 to vector<1x32xi32>
    %11 = arith.cmpi slt, %0, %10 : vector<1x32xi32>
    %12 = arith.andi %9, %11 : vector<1x32xi1>
    %13 = arith.extui %12 : vector<1x32xi1> to vector<1x32xi32>
    %14 = arith.sitofp %13 : vector<1x32xi32> to vector<1x32xf32>
    %c0 = arith.constant 0 : index
    %c0_1 = arith.constant 0 : index
    %c0_2 = arith.constant 0 : index
    %c0_3 = arith.constant 0 : index
    %15 = vector.load %arg1[%c0, %c0_1, %c0_2, %c0_3] : memref<1x3x8x8xf32, #tpu.memory_space<vmem>>, vector<1x3x8x8xf32>
    %16 = vector.shape_cast %15 : vector<1x3x8x8xf32> to vector<3x8x8xf32>
    %cst = arith.constant dense<0.000000e+00> : vector<3x8xf32>
    %17 = vector.multi_reduction <add>, %16, %cst [2] : vector<3x8x8xf32> to vector<3x8xf32>
    %18 = vector.shape_cast %17 : vector<3x8xf32> to vector<3x8x1xf32>
    %cst_4 = arith.constant 0.000000e+00 : f32
    %19 = vector.broadcast %cst_4 : f32 to vector<3x8x1xf32>
    %20 = arith.cmpf oeq, %18, %19 : vector<3x8x1xf32>
    %cst_5 = arith.constant 9.99999997E-7 : f32
    %21 = vector.broadcast %cst_5 : f32 to vector<3x8x1xf32>
    %22 = arith.select %20, %21, %18 : vector<3x8x1xi1>, vector<3x8x1xf32>
    %23 = vector.broadcast %22 : vector<3x8x1xf32> to vector<3x8x8xf32>
    %24 = arith.divf %16, %23 : vector<3x8x8xf32>
    %c0_6 = arith.constant 0 : index
    %c0_7 = arith.constant 0 : index
    %c0_8 = arith.constant 0 : index
    %25 = vector.load %arg2[%c0_6, %c0_7, %c0_8] : memref<1x8x32xf32, #tpu.memory_space<vmem>>, vector<1x8x32xf32>
    %26 = vector.shape_cast %25 : vector<1x8x32xf32> to vector<8x32xf32>
    %c0_9 = arith.constant 0 : index
    %c0_10 = arith.constant 0 : index
    %27 = vector.load %arg6[%c0_9, %c0_10] : memref<32x96xf32, #tpu.memory_space<vmem>>, vector<32x96xf32>
    %28 = arith.truncf %26 : vector<8x32xf32> to vector<8x32xbf16>
    %29 = arith.truncf %27 : vector<32x96xf32> to vector<32x96xbf16>
    %cst_11 = arith.constant dense<0.000000e+00> : vector<8x96xf32>
    %30 = tpu.matmul %28, %29, %cst_11 {dimension_numbers = #tpu.dot_dimension_numbers<[1], [0], [0], [1], [0, 0, 1, 1], [], []>} : vector<8x32xbf16>, vector<32x96xbf16>, vector<8x96xf32> -> vector<8x96xf32>
    %31 = vector.extract_strided_slice %24 {offsets = [0, 0, 0], sizes = [1, 8, 8], strides = [1, 1, 1]} : vector<3x8x8xf32> to vector<1x8x8xf32>
    %32 = vector.shape_cast %31 : vector<1x8x8xf32> to vector<8x8xf32>
    %33 = vector.extract_strided_slice %30 {offsets = [0, 0], sizes = [8, 32], strides = [1, 1]} : vector<8x96xf32> to vector<8x32xf32>
    %34 = arith.truncf %32 : vector<8x8xf32> to vector<8x8xbf16>
    %35 = arith.truncf %33 : vector<8x32xf32> to vector<8x32xbf16>
    %cst_12 = arith.constant dense<0.000000e+00> : vector<8x32xf32>
    %36 = tpu.matmul %34, %35, %cst_12 {dimension_numbers = #tpu.dot_dimension_numbers<[1], [0], [0], [1], [0, 0, 1, 1], [], []>} : vector<8x8xbf16>, vector<8x32xbf16>, vector<8x32xf32> -> vector<8x32xf32>
    %c0_13 = arith.constant 0 : index
    %c0_14 = arith.constant 0 : index
    %37 = vector.load %arg9[%c0_13, %c0_14] : memref<8x32xf32, #tpu.memory_space<vmem>>, vector<1x32xf32>
    %38 = vector.broadcast %37 : vector<1x32xf32> to vector<8x32xf32>
    %39 = arith.addf %36, %38 : vector<8x32xf32>
    %cst_15 = arith.constant 0.000000e+00 : f32
    %40 = vector.broadcast %cst_15 : f32 to vector<8x32xf32>
    %41 = arith.maximumf %39, %40 : vector<8x32xf32>
    %42 = vector.extract_strided_slice %24 {offsets = [0, 0, 0], sizes = [1, 8, 8], strides = [1, 1, 1]} : vector<3x8x8xf32> to vector<1x8x8xf32>
    %43 = vector.shape_cast %42 : vector<1x8x8xf32> to vector<8x8xf32>
    %c0_16 = arith.constant 0 : index
    %c0_17 = arith.constant 0 : index
    %c0_18 = arith.constant 0 : index
    %44 = vector.load %arg7[%c0_16, %c0_17, %c0_18] : memref<3x32x32xf32, #tpu.memory_space<vmem>>, vector<1x32x32xf32>
    %45 = vector.shape_cast %44 : vector<1x32x32xf32> to vector<32x32xf32>
    %46 = arith.truncf %41 : vector<8x32xf32> to vector<8x32xbf16>
    %47 = arith.truncf %45 : vector<32x32xf32> to vector<32x32xbf16>
    %cst_19 = arith.constant dense<0.000000e+00> : vector<8x32xf32>
    %48 = tpu.matmul %46, %47, %cst_19 {dimension_numbers = #tpu.dot_dimension_numbers<[1], [0], [0], [1], [0, 0, 1, 1], [], []>} : vector<8x32xbf16>, vector<32x32xbf16>, vector<8x32xf32> -> vector<8x32xf32>
    %49 = arith.truncf %43 : vector<8x8xf32> to vector<8x8xbf16>
    %50 = arith.truncf %48 : vector<8x32xf32> to vector<8x32xbf16>
    %cst_20 = arith.constant dense<0.000000e+00> : vector<8x32xf32>
    %51 = tpu.matmul %49, %50, %cst_20 {dimension_numbers = #tpu.dot_dimension_numbers<[1], [0], [0], [1], [0, 0, 1, 1], [], []>} : vector<8x8xbf16>, vector<8x32xbf16>, vector<8x32xf32> -> vector<8x32xf32>
    %c3 = arith.constant 3 : index
    %c0_21 = arith.constant 0 : index
    %52 = vector.load %arg9[%c3, %c0_21] : memref<8x32xf32, #tpu.memory_space<vmem>>, vector<1x32xf32>
    %53 = vector.broadcast %52 : vector<1x32xf32> to vector<8x32xf32>
    %54 = arith.addf %51, %53 : vector<8x32xf32>
    %cst_22 = arith.constant 0.000000e+00 : f32
    %55 = vector.broadcast %cst_22 : f32 to vector<8x32xf32>
    %56 = arith.maximumf %54, %55 : vector<8x32xf32>
    %57 = vector.extract_strided_slice %24 {offsets = [1, 0, 0], sizes = [1, 8, 8], strides = [1, 1, 1]} : vector<3x8x8xf32> to vector<1x8x8xf32>
    %58 = vector.shape_cast %57 : vector<1x8x8xf32> to vector<8x8xf32>
    %59 = vector.extract_strided_slice %30 {offsets = [0, 32], sizes = [8, 32], strides = [1, 1]} : vector<8x96xf32> to vector<8x32xf32>
    %60 = arith.truncf %58 : vector<8x8xf32> to vector<8x8xbf16>
    %61 = arith.truncf %59 : vector<8x32xf32> to vector<8x32xbf16>
    %cst_23 = arith.constant dense<0.000000e+00> : vector<8x32xf32>
    %62 = tpu.matmul %60, %61, %cst_23 {dimension_numbers = #tpu.dot_dimension_numbers<[1], [0], [0], [1], [0, 0, 1, 1], [], []>} : vector<8x8xbf16>, vector<8x32xbf16>, vector<8x32xf32> -> vector<8x32xf32>
    %c1 = arith.constant 1 : index
    %c0_24 = arith.constant 0 : index
    %63 = vector.load %arg9[%c1, %c0_24] : memref<8x32xf32, #tpu.memory_space<vmem>>, vector<1x32xf32>
    %64 = vector.broadcast %63 : vector<1x32xf32> to vector<8x32xf32>
    %65 = arith.addf %62, %64 : vector<8x32xf32>
    %cst_25 = arith.constant 0.000000e+00 : f32
    %66 = vector.broadcast %cst_25 : f32 to vector<8x32xf32>
    %67 = arith.maximumf %65, %66 : vector<8x32xf32>
    %68 = vector.extract_strided_slice %24 {offsets = [1, 0, 0], sizes = [1, 8, 8], strides = [1, 1, 1]} : vector<3x8x8xf32> to vector<1x8x8xf32>
    %69 = vector.shape_cast %68 : vector<1x8x8xf32> to vector<8x8xf32>
    %c1_26 = arith.constant 1 : index
    %c0_27 = arith.constant 0 : index
    %c0_28 = arith.constant 0 : index
    %70 = vector.load %arg7[%c1_26, %c0_27, %c0_28] : memref<3x32x32xf32, #tpu.memory_space<vmem>>, vector<1x32x32xf32>
    %71 = vector.shape_cast %70 : vector<1x32x32xf32> to vector<32x32xf32>
    %72 = arith.truncf %67 : vector<8x32xf32> to vector<8x32xbf16>
    %73 = arith.truncf %71 : vector<32x32xf32> to vector<32x32xbf16>
    %cst_29 = arith.constant dense<0.000000e+00> : vector<8x32xf32>
    %74 = tpu.matmul %72, %73, %cst_29 {dimension_numbers = #tpu.dot_dimension_numbers<[1], [0], [0], [1], [0, 0, 1, 1], [], []>} : vector<8x32xbf16>, vector<32x32xbf16>, vector<8x32xf32> -> vector<8x32xf32>
    %75 = arith.truncf %69 : vector<8x8xf32> to vector<8x8xbf16>
    %76 = arith.truncf %74 : vector<8x32xf32> to vector<8x32xbf16>
    %cst_30 = arith.constant dense<0.000000e+00> : vector<8x32xf32>
    %77 = tpu.matmul %75, %76, %cst_30 {dimension_numbers = #tpu.dot_dimension_numbers<[1], [0], [0], [1], [0, 0, 1, 1], [], []>} : vector<8x8xbf16>, vector<8x32xbf16>, vector<8x32xf32> -> vector<8x32xf32>
    %c4 = arith.constant 4 : index
    %c0_31 = arith.constant 0 : index
    %78 = vector.load %arg9[%c4, %c0_31] : memref<8x32xf32, #tpu.memory_space<vmem>>, vector<1x32xf32>
    %79 = vector.broadcast %78 : vector<1x32xf32> to vector<8x32xf32>
    %80 = arith.addf %77, %79 : vector<8x32xf32>
    %cst_32 = arith.constant 0.000000e+00 : f32
    %81 = vector.broadcast %cst_32 : f32 to vector<8x32xf32>
    %82 = arith.maximumf %80, %81 : vector<8x32xf32>
    %83 = vector.extract_strided_slice %24 {offsets = [2, 0, 0], sizes = [1, 8, 8], strides = [1, 1, 1]} : vector<3x8x8xf32> to vector<1x8x8xf32>
    %84 = vector.shape_cast %83 : vector<1x8x8xf32> to vector<8x8xf32>
    %85 = vector.extract_strided_slice %30 {offsets = [0, 64], sizes = [8, 32], strides = [1, 1]} : vector<8x96xf32> to vector<8x32xf32>
    %86 = arith.truncf %84 : vector<8x8xf32> to vector<8x8xbf16>
    %87 = arith.truncf %85 : vector<8x32xf32> to vector<8x32xbf16>
    %cst_33 = arith.constant dense<0.000000e+00> : vector<8x32xf32>
    %88 = tpu.matmul %86, %87, %cst_33 {dimension_numbers = #tpu.dot_dimension_numbers<[1], [0], [0], [1], [0, 0, 1, 1], [], []>} : vector<8x8xbf16>, vector<8x32xbf16>, vector<8x32xf32> -> vector<8x32xf32>
    %c2 = arith.constant 2 : index
    %c0_34 = arith.constant 0 : index
    %89 = vector.load %arg9[%c2, %c0_34] : memref<8x32xf32, #tpu.memory_space<vmem>>, vector<1x32xf32>
    %90 = vector.broadcast %89 : vector<1x32xf32> to vector<8x32xf32>
    %91 = arith.addf %88, %90 : vector<8x32xf32>
    %cst_35 = arith.constant 0.000000e+00 : f32
    %92 = vector.broadcast %cst_35 : f32 to vector<8x32xf32>
    %93 = arith.maximumf %91, %92 : vector<8x32xf32>
    %94 = vector.extract_strided_slice %24 {offsets = [2, 0, 0], sizes = [1, 8, 8], strides = [1, 1, 1]} : vector<3x8x8xf32> to vector<1x8x8xf32>
    %95 = vector.shape_cast %94 : vector<1x8x8xf32> to vector<8x8xf32>
    %c2_36 = arith.constant 2 : index
    %c0_37 = arith.constant 0 : index
    %c0_38 = arith.constant 0 : index
    %96 = vector.load %arg7[%c2_36, %c0_37, %c0_38] : memref<3x32x32xf32, #tpu.memory_space<vmem>>, vector<1x32x32xf32>
    %97 = vector.shape_cast %96 : vector<1x32x32xf32> to vector<32x32xf32>
    %98 = arith.truncf %93 : vector<8x32xf32> to vector<8x32xbf16>
    %99 = arith.truncf %97 : vector<32x32xf32> to vector<32x32xbf16>
    %cst_39 = arith.constant dense<0.000000e+00> : vector<8x32xf32>
    %100 = tpu.matmul %98, %99, %cst_39 {dimension_numbers = #tpu.dot_dimension_numbers<[1], [0], [0], [1], [0, 0, 1, 1], [], []>} : vector<8x32xbf16>, vector<32x32xbf16>, vector<8x32xf32> -> vector<8x32xf32>
    %101 = arith.truncf %95 : vector<8x8xf32> to vector<8x8xbf16>
    %102 = arith.truncf %100 : vector<8x32xf32> to vector<8x32xbf16>
    %cst_40 = arith.constant dense<0.000000e+00> : vector<8x32xf32>
    %103 = tpu.matmul %101, %102, %cst_40 {dimension_numbers = #tpu.dot_dimension_numbers<[1], [0], [0], [1], [0, 0, 1, 1], [], []>} : vector<8x8xbf16>, vector<8x32xbf16>, vector<8x32xf32> -> vector<8x32xf32>
    %c5 = arith.constant 5 : index
    %c0_41 = arith.constant 0 : index
    %104 = vector.load %arg9[%c5, %c0_41] : memref<8x32xf32, #tpu.memory_space<vmem>>, vector<1x32xf32>
    %105 = vector.broadcast %104 : vector<1x32xf32> to vector<8x32xf32>
    %106 = arith.addf %103, %105 : vector<8x32xf32>
    %cst_42 = arith.constant 0.000000e+00 : f32
    %107 = vector.broadcast %cst_42 : f32 to vector<8x32xf32>
    %108 = arith.maximumf %106, %107 : vector<8x32xf32>
    %109 = tpu.concatenate %56, %82, %108 in 1 : vector<8x32xf32>, vector<8x32xf32>, vector<8x32xf32> -> vector<8x96xf32>
    %c0_43 = arith.constant 0 : index
    %c0_44 = arith.constant 0 : index
    %110 = vector.load %arg8[%c0_43, %c0_44] : memref<96x32xf32, #tpu.memory_space<vmem>>, vector<96x32xf32>
    %111 = arith.truncf %109 : vector<8x96xf32> to vector<8x96xbf16>
    %112 = arith.truncf %110 : vector<96x32xf32> to vector<96x32xbf16>
    %cst_45 = arith.constant dense<0.000000e+00> : vector<8x32xf32>
    %113 = tpu.matmul %111, %112, %cst_45 {dimension_numbers = #tpu.dot_dimension_numbers<[1], [0], [0], [1], [0, 0, 1, 1], [], []>} : vector<8x96xbf16>, vector<96x32xbf16>, vector<8x32xf32> -> vector<8x32xf32>
    %c6 = arith.constant 6 : index
    %c0_46 = arith.constant 0 : index
    %114 = vector.load %arg9[%c6, %c0_46] : memref<8x32xf32, #tpu.memory_space<vmem>>, vector<1x32xf32>
    %115 = vector.broadcast %114 : vector<1x32xf32> to vector<8x32xf32>
    %116 = arith.addf %113, %115 : vector<8x32xf32>
    %c0_47 = arith.constant 0 : index
    %c0_48 = arith.constant 0 : index
    %c0_49 = arith.constant 0 : index
    %117 = vector.load %arg3[%c0_47, %c0_48, %c0_49] : memref<1x8x768xbf16, #tpu.memory_space<vmem>>, vector<1x8x768xbf16>
    %118 = vector.shape_cast %117 : vector<1x8x768xbf16> to vector<8x768xbf16>
    %c0_50 = arith.constant 0 : index
    %c0_51 = arith.constant 0 : index
    %119 = vector.load %arg10[%c0_50, %c0_51] : memref<768x32xbf16, #tpu.memory_space<vmem>>, vector<768x32xbf16>
    %cst_52 = arith.constant dense<0.000000e+00> : vector<8x32xf32>
    %120 = tpu.matmul %118, %119, %cst_52 {dimension_numbers = #tpu.dot_dimension_numbers<[1], [0], [0], [1], [0, 0, 1, 1], [], []>} : vector<8x768xbf16>, vector<768x32xbf16>, vector<8x32xf32> -> vector<8x32xf32>
    %c0_53 = arith.constant 0 : index
    %c0_54 = arith.constant 0 : index
    %121 = vector.load %arg16[%c0_53, %c0_54] : memref<4x32xf32, #tpu.memory_space<vmem>>, vector<1x32xf32>
    %122 = vector.broadcast %121 : vector<1x32xf32> to vector<8x32xf32>
    %123 = arith.addf %120, %122 : vector<8x32xf32>
    %c0_55 = arith.constant 0 : index
    %c0_56 = arith.constant 0 : index
    %c0_57 = arith.constant 0 : index
    %124 = vector.load %arg4[%c0_55, %c0_56, %c0_57] : memref<1x1x8xf32, #tpu.memory_space<vmem>>, vector<1x1x8xf32>
    %125 = vector.shape_cast %124 : vector<1x1x8xf32> to vector<1x8xf32>
    %c0_58 = arith.constant 0 : index
    %c0_59 = arith.constant 0 : index
    %c0_60 = arith.constant 0 : index
    %126 = vector.load %arg5[%c0_58, %c0_59, %c0_60] : memref<1x1x8xf32, #tpu.memory_space<vmem>>, vector<1x1x8xf32>
    %127 = vector.shape_cast %126 : vector<1x1x8xf32> to vector<1x8xf32>
    %c0_61 = arith.constant 0 : index
    %c0_62 = arith.constant 0 : index
    %c0_63 = arith.constant 0 : index
    %128 = vector.load %arg11[%c0_61, %c0_62, %c0_63] : memref<4x32x128xf32, #tpu.memory_space<vmem>>, vector<1x32x128xf32>
    %129 = vector.shape_cast %128 : vector<1x32x128xf32> to vector<32x128xf32>
    %c0_64 = arith.constant 0 : index
    %c0_65 = arith.constant 0 : index
    %c0_66 = arith.constant 0 : index
    %130 = vector.load %arg14[%c0_64, %c0_65, %c0_66] : memref<4x10x32xf32, #tpu.memory_space<vmem>>, vector<1x10x32xf32>
    %131 = vector.shape_cast %130 : vector<1x10x32xf32> to vector<10x32xf32>
    %132 = vector.extract_strided_slice %131 {offsets = [0, 0], sizes = [1, 32], strides = [1, 1]} : vector<10x32xf32> to vector<1x32xf32>
    %133 = vector.extract_strided_slice %131 {offsets = [1, 0], sizes = [1, 32], strides = [1, 1]} : vector<10x32xf32> to vector<1x32xf32>
    %134 = vector.extract_strided_slice %131 {offsets = [2, 0], sizes = [1, 32], strides = [1, 1]} : vector<10x32xf32> to vector<1x32xf32>
    %135 = vector.extract_strided_slice %131 {offsets = [3, 0], sizes = [1, 32], strides = [1, 1]} : vector<10x32xf32> to vector<1x32xf32>
    %136 = vector.extract_strided_slice %131 {offsets = [4, 0], sizes = [1, 32], strides = [1, 1]} : vector<10x32xf32> to vector<1x32xf32>
    %137 = vector.extract_strided_slice %131 {offsets = [5, 0], sizes = [1, 32], strides = [1, 1]} : vector<10x32xf32> to vector<1x32xf32>
    %138 = vector.extract_strided_slice %131 {offsets = [6, 0], sizes = [1, 32], strides = [1, 1]} : vector<10x32xf32> to vector<1x32xf32>
    %139 = vector.extract_strided_slice %131 {offsets = [7, 0], sizes = [1, 32], strides = [1, 1]} : vector<10x32xf32> to vector<1x32xf32>
    %140 = vector.extract_strided_slice %131 {offsets = [8, 0], sizes = [1, 32], strides = [1, 1]} : vector<10x32xf32> to vector<1x32xf32>
    %c0_67 = arith.constant 0 : index
    %c0_68 = arith.constant 0 : index
    %141 = vector.load %arg15[%c0_67, %c0_68] : memref<4x64xf32, #tpu.memory_space<vmem>>, vector<1x64xf32>
    %142 = arith.truncf %116 : vector<8x32xf32> to vector<8x32xbf16>
    %143 = arith.truncf %129 : vector<32x128xf32> to vector<32x128xbf16>
    %cst_69 = arith.constant dense<0.000000e+00> : vector<8x128xf32>
    %144 = tpu.matmul %142, %143, %cst_69 {dimension_numbers = #tpu.dot_dimension_numbers<[1], [0], [0], [1], [0, 0, 1, 1], [], []>} : vector<8x32xbf16>, vector<32x128xbf16>, vector<8x128xf32> -> vector<8x128xf32>
    %145 = arith.truncf %123 : vector<8x32xf32> to vector<8x32xbf16>
    %146 = arith.truncf %129 : vector<32x128xf32> to vector<32x128xbf16>
    %cst_70 = arith.constant dense<0.000000e+00> : vector<8x128xf32>
    %147 = tpu.matmul %145, %146, %cst_70 {dimension_numbers = #tpu.dot_dimension_numbers<[1], [0], [0], [1], [0, 0, 1, 1], [], []>} : vector<8x32xbf16>, vector<32x128xbf16>, vector<8x128xf32> -> vector<8x128xf32>
    %148 = vector.extract_strided_slice %144 {offsets = [0, 0], sizes = [8, 32], strides = [1, 1]} : vector<8x128xf32> to vector<8x32xf32>
    %149 = vector.broadcast %132 : vector<1x32xf32> to vector<8x32xf32>
    %150 = arith.addf %148, %149 : vector<8x32xf32>
    %151 = vector.extract_strided_slice %147 {offsets = [0, 32], sizes = [8, 32], strides = [1, 1]} : vector<8x128xf32> to vector<8x32xf32>
    %152 = vector.broadcast %133 : vector<1x32xf32> to vector<8x32xf32>
    %153 = arith.addf %151, %152 : vector<8x32xf32>
    %154 = vector.extract_strided_slice %147 {offsets = [0, 64], sizes = [8, 32], strides = [1, 1]} : vector<8x128xf32> to vector<8x32xf32>
    %155 = vector.broadcast %134 : vector<1x32xf32> to vector<8x32xf32>
    %156 = arith.addf %154, %155 : vector<8x32xf32>
    %cst_71 = arith.constant 2.500000e-01 : f32
    %157 = vector.broadcast %cst_71 : f32 to vector<1x32xf32>
    %158 = arith.mulf %7, %157 : vector<1x32xf32>
    %159 = vector.broadcast %158 : vector<1x32xf32> to vector<8x32xf32>
    %160 = arith.mulf %150, %159 : vector<8x32xf32>
    %cst_72 = arith.constant 2.500000e-01 : f32
    %161 = vector.broadcast %cst_72 : f32 to vector<1x32xf32>
    %162 = arith.mulf %14, %161 : vector<1x32xf32>
    %163 = vector.broadcast %162 : vector<1x32xf32> to vector<8x32xf32>
    %164 = arith.mulf %150, %163 : vector<8x32xf32>
    %165 = tpu.concatenate %160, %164 in 0 : vector<8x32xf32>, vector<8x32xf32> -> vector<16x32xf32>
    %166 = arith.truncf %165 : vector<16x32xf32> to vector<16x32xbf16>
    %167 = arith.truncf %153 : vector<8x32xf32> to vector<8x32xbf16>
    %cst_73 = arith.constant dense<0.000000e+00> : vector<16x8xf32>
    %168 = tpu.matmul %166, %167, %cst_73 {dimension_numbers = #tpu.dot_dimension_numbers<[1], [1], [0], [0], [0, 0, 1, 0], [], []>} : vector<16x32xbf16>, vector<8x32xbf16>, vector<16x8xf32> -> vector<16x8xf32>
    %169 = vector.broadcast %127 : vector<1x8xf32> to vector<16x8xf32>
    %170 = arith.addf %168, %169 : vector<16x8xf32>
    %cst_74 = arith.constant dense<0xFF800000> : vector<16xf32>
    %171 = vector.multi_reduction <maximumf>, %170, %cst_74 [1] : vector<16x8xf32> to vector<16xf32>
    %172 = vector.shape_cast %171 : vector<16xf32> to vector<16x1xf32>
    %173 = vector.broadcast %172 : vector<16x1xf32> to vector<16x8xf32>
    %174 = arith.subf %170, %173 : vector<16x8xf32>
    %175 = math.exp %174 : vector<16x8xf32>
    %cst_75 = arith.constant dense<0.000000e+00> : vector<16xf32>
    %176 = vector.multi_reduction <add>, %175, %cst_75 [1] : vector<16x8xf32> to vector<16xf32>
    %177 = vector.shape_cast %176 : vector<16xf32> to vector<16x1xf32>
    %178 = vector.broadcast %177 : vector<16x1xf32> to vector<16x8xf32>
    %179 = arith.divf %175, %178 : vector<16x8xf32>
    %180 = arith.truncf %179 : vector<16x8xf32> to vector<16x8xbf16>
    %181 = arith.truncf %156 : vector<8x32xf32> to vector<8x32xbf16>
    %cst_76 = arith.constant dense<0.000000e+00> : vector<16x32xf32>
    %182 = tpu.matmul %180, %181, %cst_76 {dimension_numbers = #tpu.dot_dimension_numbers<[1], [0], [0], [1], [0, 0, 1, 1], [], []>} : vector<16x8xbf16>, vector<8x32xbf16>, vector<16x32xf32> -> vector<16x32xf32>
    %183 = vector.extract_strided_slice %182 {offsets = [0, 0], sizes = [8, 32], strides = [1, 1]} : vector<16x32xf32> to vector<8x32xf32>
    %184 = vector.broadcast %7 : vector<1x32xf32> to vector<8x32xf32>
    %185 = arith.mulf %183, %184 : vector<8x32xf32>
    %cst_77 = arith.constant 0.000000e+00 : f32
    %186 = vector.broadcast %cst_77 : f32 to vector<8x32xf32>
    %187 = arith.addf %186, %185 : vector<8x32xf32>
    %188 = vector.extract_strided_slice %182 {offsets = [8, 0], sizes = [8, 32], strides = [1, 1]} : vector<16x32xf32> to vector<8x32xf32>
    %189 = vector.broadcast %14 : vector<1x32xf32> to vector<8x32xf32>
    %190 = arith.mulf %188, %189 : vector<8x32xf32>
    %191 = arith.addf %187, %190 : vector<8x32xf32>
    %192 = vector.extract_strided_slice %179 {offsets = [0, 0], sizes = [8, 8], strides = [1, 1]} : vector<16x8xf32> to vector<8x8xf32>
    %cst_78 = arith.constant 0.000000e+00 : f32
    %193 = vector.broadcast %cst_78 : f32 to vector<8x8xf32>
    %194 = arith.addf %193, %192 : vector<8x8xf32>
    %195 = vector.extract_strided_slice %179 {offsets = [8, 0], sizes = [8, 8], strides = [1, 1]} : vector<16x8xf32> to vector<8x8xf32>
    %196 = arith.addf %194, %195 : vector<8x8xf32>
    %cst_79 = arith.constant 5.000000e-01 : f32
    %197 = vector.broadcast %cst_79 : f32 to vector<8x8xf32>
    %198 = arith.mulf %196, %197 : vector<8x8xf32>
    %199 = vector.extract_strided_slice %129 {offsets = [0, 96], sizes = [32, 32], strides = [1, 1]} : vector<32x128xf32> to vector<32x32xf32>
    %200 = arith.truncf %191 : vector<8x32xf32> to vector<8x32xbf16>
    %201 = arith.truncf %199 : vector<32x32xf32> to vector<32x32xbf16>
    %cst_80 = arith.constant dense<0.000000e+00> : vector<8x32xf32>
    %202 = tpu.matmul %200, %201, %cst_80 {dimension_numbers = #tpu.dot_dimension_numbers<[1], [0], [0], [1], [0, 0, 1, 1], [], []>} : vector<8x32xbf16>, vector<32x32xbf16>, vector<8x32xf32> -> vector<8x32xf32>
    %203 = vector.broadcast %135 : vector<1x32xf32> to vector<8x32xf32>
    %204 = arith.addf %202, %203 : vector<8x32xf32>
    %205 = arith.addf %204, %116 : vector<8x32xf32>
    %cst_81 = arith.constant dense<0.000000e+00> : vector<8xf32>
    %206 = vector.multi_reduction <add>, %205, %cst_81 [1] : vector<8x32xf32> to vector<8xf32>
    %207 = vector.shape_cast %206 : vector<8xf32> to vector<8x1xf32>
    %cst_82 = arith.constant 3.200000e+01 : f32
    %208 = vector.broadcast %cst_82 : f32 to vector<8x1xf32>
    %209 = arith.divf %207, %208 : vector<8x1xf32>
    %210 = vector.broadcast %209 : vector<8x1xf32> to vector<8x32xf32>
    %211 = arith.subf %205, %210 : vector<8x32xf32>
    %212 = arith.mulf %211, %211 : vector<8x32xf32>
    %cst_83 = arith.constant dense<0.000000e+00> : vector<8xf32>
    %213 = vector.multi_reduction <add>, %212, %cst_83 [1] : vector<8x32xf32> to vector<8xf32>
    %214 = vector.shape_cast %213 : vector<8xf32> to vector<8x1xf32>
    %cst_84 = arith.constant 3.200000e+01 : f32
    %215 = vector.broadcast %cst_84 : f32 to vector<8x1xf32>
    %216 = arith.divf %214, %215 : vector<8x1xf32>
    %cst_85 = arith.constant 9.99999974E-6 : f32
    %217 = vector.broadcast %cst_85 : f32 to vector<8x1xf32>
    %218 = arith.addf %216, %217 : vector<8x1xf32>
    %219 = math.rsqrt %218 : vector<8x1xf32>
    %220 = vector.broadcast %219 : vector<8x1xf32> to vector<8x32xf32>
    %221 = arith.mulf %211, %220 : vector<8x32xf32>
    %222 = vector.broadcast %137 : vector<1x32xf32> to vector<8x32xf32>
    %223 = arith.mulf %221, %222 : vector<8x32xf32>
    %224 = vector.broadcast %138 : vector<1x32xf32> to vector<8x32xf32>
    %225 = arith.addf %223, %224 : vector<8x32xf32>
    %c0_86 = arith.constant 0 : index
    %c0_87 = arith.constant 0 : index
    %c0_88 = arith.constant 0 : index
    %226 = vector.load %arg12[%c0_86, %c0_87, %c0_88] : memref<4x32x64xf32, #tpu.memory_space<vmem>>, vector<1x32x64xf32>
    %227 = vector.shape_cast %226 : vector<1x32x64xf32> to vector<32x64xf32>
    %228 = arith.truncf %225 : vector<8x32xf32> to vector<8x32xbf16>
    %229 = arith.truncf %227 : vector<32x64xf32> to vector<32x64xbf16>
    %cst_89 = arith.constant dense<0.000000e+00> : vector<8x64xf32>
    %230 = tpu.matmul %228, %229, %cst_89 {dimension_numbers = #tpu.dot_dimension_numbers<[1], [0], [0], [1], [0, 0, 1, 1], [], []>} : vector<8x32xbf16>, vector<32x64xbf16>, vector<8x64xf32> -> vector<8x64xf32>
    %231 = vector.broadcast %141 : vector<1x64xf32> to vector<8x64xf32>
    %232 = arith.addf %230, %231 : vector<8x64xf32>
    %cst_90 = arith.constant 0.000000e+00 : f32
    %233 = vector.broadcast %cst_90 : f32 to vector<8x64xf32>
    %234 = arith.maximumf %232, %233 : vector<8x64xf32>
    %c0_91 = arith.constant 0 : index
    %c0_92 = arith.constant 0 : index
    %c0_93 = arith.constant 0 : index
    %235 = vector.load %arg13[%c0_91, %c0_92, %c0_93] : memref<4x64x32xf32, #tpu.memory_space<vmem>>, vector<1x64x32xf32>
    %236 = vector.shape_cast %235 : vector<1x64x32xf32> to vector<64x32xf32>
    %237 = arith.truncf %234 : vector<8x64xf32> to vector<8x64xbf16>
    %238 = arith.truncf %236 : vector<64x32xf32> to vector<64x32xbf16>
    %cst_94 = arith.constant dense<0.000000e+00> : vector<8x32xf32>
    %239 = tpu.matmul %237, %238, %cst_94 {dimension_numbers = #tpu.dot_dimension_numbers<[1], [0], [0], [1], [0, 0, 1, 1], [], []>} : vector<8x64xbf16>, vector<64x32xbf16>, vector<8x32xf32> -> vector<8x32xf32>
    %240 = vector.broadcast %136 : vector<1x32xf32> to vector<8x32xf32>
    %241 = arith.addf %239, %240 : vector<8x32xf32>
    %242 = arith.addf %225, %241 : vector<8x32xf32>
    %cst_95 = arith.constant dense<0.000000e+00> : vector<8xf32>
    %243 = vector.multi_reduction <add>, %242, %cst_95 [1] : vector<8x32xf32> to vector<8xf32>
    %244 = vector.shape_cast %243 : vector<8xf32> to vector<8x1xf32>
    %cst_96 = arith.constant 3.200000e+01 : f32
    %245 = vector.broadcast %cst_96 : f32 to vector<8x1xf32>
    %246 = arith.divf %244, %245 : vector<8x1xf32>
    %247 = vector.broadcast %246 : vector<8x1xf32> to vector<8x32xf32>
    %248 = arith.subf %242, %247 : vector<8x32xf32>
    %249 = arith.mulf %248, %248 : vector<8x32xf32>
    %cst_97 = arith.constant dense<0.000000e+00> : vector<8xf32>
    %250 = vector.multi_reduction <add>, %249, %cst_97 [1] : vector<8x32xf32> to vector<8xf32>
    %251 = vector.shape_cast %250 : vector<8xf32> to vector<8x1xf32>
    %cst_98 = arith.constant 3.200000e+01 : f32
    %252 = vector.broadcast %cst_98 : f32 to vector<8x1xf32>
    %253 = arith.divf %251, %252 : vector<8x1xf32>
    %cst_99 = arith.constant 9.99999974E-6 : f32
    %254 = vector.broadcast %cst_99 : f32 to vector<8x1xf32>
    %255 = arith.addf %253, %254 : vector<8x1xf32>
    %256 = math.rsqrt %255 : vector<8x1xf32>
    %257 = vector.broadcast %256 : vector<8x1xf32> to vector<8x32xf32>
    %258 = arith.mulf %248, %257 : vector<8x32xf32>
    %259 = vector.broadcast %139 : vector<1x32xf32> to vector<8x32xf32>
    %260 = arith.mulf %258, %259 : vector<8x32xf32>
    %261 = vector.broadcast %140 : vector<1x32xf32> to vector<8x32xf32>
    %262 = arith.addf %260, %261 : vector<8x32xf32>
    %c1_100 = arith.constant 1 : index
    %c0_101 = arith.constant 0 : index
    %c0_102 = arith.constant 0 : index
    %263 = vector.load %arg11[%c1_100, %c0_101, %c0_102] : memref<4x32x128xf32, #tpu.memory_space<vmem>>, vector<1x32x128xf32>
    %264 = vector.shape_cast %263 : vector<1x32x128xf32> to vector<32x128xf32>
    %c1_103 = arith.constant 1 : index
    %c0_104 = arith.constant 0 : index
    %c0_105 = arith.constant 0 : index
    %265 = vector.load %arg14[%c1_103, %c0_104, %c0_105] : memref<4x10x32xf32, #tpu.memory_space<vmem>>, vector<1x10x32xf32>
    %266 = vector.shape_cast %265 : vector<1x10x32xf32> to vector<10x32xf32>
    %267 = vector.extract_strided_slice %266 {offsets = [0, 0], sizes = [1, 32], strides = [1, 1]} : vector<10x32xf32> to vector<1x32xf32>
    %268 = vector.extract_strided_slice %266 {offsets = [1, 0], sizes = [1, 32], strides = [1, 1]} : vector<10x32xf32> to vector<1x32xf32>
    %269 = vector.extract_strided_slice %266 {offsets = [2, 0], sizes = [1, 32], strides = [1, 1]} : vector<10x32xf32> to vector<1x32xf32>
    %270 = vector.extract_strided_slice %266 {offsets = [3, 0], sizes = [1, 32], strides = [1, 1]} : vector<10x32xf32> to vector<1x32xf32>
    %271 = vector.extract_strided_slice %266 {offsets = [4, 0], sizes = [1, 32], strides = [1, 1]} : vector<10x32xf32> to vector<1x32xf32>
    %272 = vector.extract_strided_slice %266 {offsets = [5, 0], sizes = [1, 32], strides = [1, 1]} : vector<10x32xf32> to vector<1x32xf32>
    %273 = vector.extract_strided_slice %266 {offsets = [6, 0], sizes = [1, 32], strides = [1, 1]} : vector<10x32xf32> to vector<1x32xf32>
    %274 = vector.extract_strided_slice %266 {offsets = [7, 0], sizes = [1, 32], strides = [1, 1]} : vector<10x32xf32> to vector<1x32xf32>
    %275 = vector.extract_strided_slice %266 {offsets = [8, 0], sizes = [1, 32], strides = [1, 1]} : vector<10x32xf32> to vector<1x32xf32>
    %c1_106 = arith.constant 1 : index
    %c0_107 = arith.constant 0 : index
    %276 = vector.load %arg15[%c1_106, %c0_107] : memref<4x64xf32, #tpu.memory_space<vmem>>, vector<1x64xf32>
    %277 = arith.truncf %262 : vector<8x32xf32> to vector<8x32xbf16>
    %278 = arith.truncf %264 : vector<32x128xf32> to vector<32x128xbf16>
    %cst_108 = arith.constant dense<0.000000e+00> : vector<8x128xf32>
    %279 = tpu.matmul %277, %278, %cst_108 {dimension_numbers = #tpu.dot_dimension_numbers<[1], [0], [0], [1], [0, 0, 1, 1], [], []>} : vector<8x32xbf16>, vector<32x128xbf16>, vector<8x128xf32> -> vector<8x128xf32>
    %280 = vector.extract_strided_slice %279 {offsets = [0, 0], sizes = [8, 32], strides = [1, 1]} : vector<8x128xf32> to vector<8x32xf32>
    %281 = vector.broadcast %267 : vector<1x32xf32> to vector<8x32xf32>
    %282 = arith.addf %280, %281 : vector<8x32xf32>
    %283 = vector.extract_strided_slice %279 {offsets = [0, 32], sizes = [8, 32], strides = [1, 1]} : vector<8x128xf32> to vector<8x32xf32>
    %284 = vector.broadcast %268 : vector<1x32xf32> to vector<8x32xf32>
    %285 = arith.addf %283, %284 : vector<8x32xf32>
    %286 = vector.extract_strided_slice %279 {offsets = [0, 64], sizes = [8, 32], strides = [1, 1]} : vector<8x128xf32> to vector<8x32xf32>
    %287 = vector.broadcast %269 : vector<1x32xf32> to vector<8x32xf32>
    %288 = arith.addf %286, %287 : vector<8x32xf32>
    %cst_109 = arith.constant 2.500000e-01 : f32
    %289 = vector.broadcast %cst_109 : f32 to vector<1x32xf32>
    %290 = arith.mulf %7, %289 : vector<1x32xf32>
    %291 = vector.broadcast %290 : vector<1x32xf32> to vector<8x32xf32>
    %292 = arith.mulf %282, %291 : vector<8x32xf32>
    %cst_110 = arith.constant 2.500000e-01 : f32
    %293 = vector.broadcast %cst_110 : f32 to vector<1x32xf32>
    %294 = arith.mulf %14, %293 : vector<1x32xf32>
    %295 = vector.broadcast %294 : vector<1x32xf32> to vector<8x32xf32>
    %296 = arith.mulf %282, %295 : vector<8x32xf32>
    %297 = tpu.concatenate %292, %296 in 0 : vector<8x32xf32>, vector<8x32xf32> -> vector<16x32xf32>
    %298 = arith.truncf %297 : vector<16x32xf32> to vector<16x32xbf16>
    %299 = arith.truncf %285 : vector<8x32xf32> to vector<8x32xbf16>
    %cst_111 = arith.constant dense<0.000000e+00> : vector<16x8xf32>
    %300 = tpu.matmul %298, %299, %cst_111 {dimension_numbers = #tpu.dot_dimension_numbers<[1], [1], [0], [0], [0, 0, 1, 0], [], []>} : vector<16x32xbf16>, vector<8x32xbf16>, vector<16x8xf32> -> vector<16x8xf32>
    %301 = vector.broadcast %125 : vector<1x8xf32> to vector<16x8xf32>
    %302 = arith.addf %300, %301 : vector<16x8xf32>
    %cst_112 = arith.constant dense<0xFF800000> : vector<16xf32>
    %303 = vector.multi_reduction <maximumf>, %302, %cst_112 [1] : vector<16x8xf32> to vector<16xf32>
    %304 = vector.shape_cast %303 : vector<16xf32> to vector<16x1xf32>
    %305 = vector.broadcast %304 : vector<16x1xf32> to vector<16x8xf32>
    %306 = arith.subf %302, %305 : vector<16x8xf32>
    %307 = math.exp %306 : vector<16x8xf32>
    %cst_113 = arith.constant dense<0.000000e+00> : vector<16xf32>
    %308 = vector.multi_reduction <add>, %307, %cst_113 [1] : vector<16x8xf32> to vector<16xf32>
    %309 = vector.shape_cast %308 : vector<16xf32> to vector<16x1xf32>
    %310 = vector.broadcast %309 : vector<16x1xf32> to vector<16x8xf32>
    %311 = arith.divf %307, %310 : vector<16x8xf32>
    %312 = arith.truncf %311 : vector<16x8xf32> to vector<16x8xbf16>
    %313 = arith.truncf %288 : vector<8x32xf32> to vector<8x32xbf16>
    %cst_114 = arith.constant dense<0.000000e+00> : vector<16x32xf32>
    %314 = tpu.matmul %312, %313, %cst_114 {dimension_numbers = #tpu.dot_dimension_numbers<[1], [0], [0], [1], [0, 0, 1, 1], [], []>} : vector<16x8xbf16>, vector<8x32xbf16>, vector<16x32xf32> -> vector<16x32xf32>
    %315 = vector.extract_strided_slice %314 {offsets = [0, 0], sizes = [8, 32], strides = [1, 1]} : vector<16x32xf32> to vector<8x32xf32>
    %316 = vector.broadcast %7 : vector<1x32xf32> to vector<8x32xf32>
    %317 = arith.mulf %315, %316 : vector<8x32xf32>
    %cst_115 = arith.constant 0.000000e+00 : f32
    %318 = vector.broadcast %cst_115 : f32 to vector<8x32xf32>
    %319 = arith.addf %318, %317 : vector<8x32xf32>
    %320 = vector.extract_strided_slice %314 {offsets = [8, 0], sizes = [8, 32], strides = [1, 1]} : vector<16x32xf32> to vector<8x32xf32>
    %321 = vector.broadcast %14 : vector<1x32xf32> to vector<8x32xf32>
    %322 = arith.mulf %320, %321 : vector<8x32xf32>
    %323 = arith.addf %319, %322 : vector<8x32xf32>
    %324 = vector.extract_strided_slice %264 {offsets = [0, 96], sizes = [32, 32], strides = [1, 1]} : vector<32x128xf32> to vector<32x32xf32>
    %325 = arith.truncf %323 : vector<8x32xf32> to vector<8x32xbf16>
    %326 = arith.truncf %324 : vector<32x32xf32> to vector<32x32xbf16>
    %cst_116 = arith.constant dense<0.000000e+00> : vector<8x32xf32>
    %327 = tpu.matmul %325, %326, %cst_116 {dimension_numbers = #tpu.dot_dimension_numbers<[1], [0], [0], [1], [0, 0, 1, 1], [], []>} : vector<8x32xbf16>, vector<32x32xbf16>, vector<8x32xf32> -> vector<8x32xf32>
    %328 = vector.broadcast %270 : vector<1x32xf32> to vector<8x32xf32>
    %329 = arith.addf %327, %328 : vector<8x32xf32>
    %330 = arith.addf %329, %262 : vector<8x32xf32>
    %cst_117 = arith.constant dense<0.000000e+00> : vector<8xf32>
    %331 = vector.multi_reduction <add>, %330, %cst_117 [1] : vector<8x32xf32> to vector<8xf32>
    %332 = vector.shape_cast %331 : vector<8xf32> to vector<8x1xf32>
    %cst_118 = arith.constant 3.200000e+01 : f32
    %333 = vector.broadcast %cst_118 : f32 to vector<8x1xf32>
    %334 = arith.divf %332, %333 : vector<8x1xf32>
    %335 = vector.broadcast %334 : vector<8x1xf32> to vector<8x32xf32>
    %336 = arith.subf %330, %335 : vector<8x32xf32>
    %337 = arith.mulf %336, %336 : vector<8x32xf32>
    %cst_119 = arith.constant dense<0.000000e+00> : vector<8xf32>
    %338 = vector.multi_reduction <add>, %337, %cst_119 [1] : vector<8x32xf32> to vector<8xf32>
    %339 = vector.shape_cast %338 : vector<8xf32> to vector<8x1xf32>
    %cst_120 = arith.constant 3.200000e+01 : f32
    %340 = vector.broadcast %cst_120 : f32 to vector<8x1xf32>
    %341 = arith.divf %339, %340 : vector<8x1xf32>
    %cst_121 = arith.constant 9.99999974E-6 : f32
    %342 = vector.broadcast %cst_121 : f32 to vector<8x1xf32>
    %343 = arith.addf %341, %342 : vector<8x1xf32>
    %344 = math.rsqrt %343 : vector<8x1xf32>
    %345 = vector.broadcast %344 : vector<8x1xf32> to vector<8x32xf32>
    %346 = arith.mulf %336, %345 : vector<8x32xf32>
    %347 = vector.broadcast %272 : vector<1x32xf32> to vector<8x32xf32>
    %348 = arith.mulf %346, %347 : vector<8x32xf32>
    %349 = vector.broadcast %273 : vector<1x32xf32> to vector<8x32xf32>
    %350 = arith.addf %348, %349 : vector<8x32xf32>
    %c1_122 = arith.constant 1 : index
    %c0_123 = arith.constant 0 : index
    %c0_124 = arith.constant 0 : index
    %351 = vector.load %arg12[%c1_122, %c0_123, %c0_124] : memref<4x32x64xf32, #tpu.memory_space<vmem>>, vector<1x32x64xf32>
    %352 = vector.shape_cast %351 : vector<1x32x64xf32> to vector<32x64xf32>
    %353 = arith.truncf %350 : vector<8x32xf32> to vector<8x32xbf16>
    %354 = arith.truncf %352 : vector<32x64xf32> to vector<32x64xbf16>
    %cst_125 = arith.constant dense<0.000000e+00> : vector<8x64xf32>
    %355 = tpu.matmul %353, %354, %cst_125 {dimension_numbers = #tpu.dot_dimension_numbers<[1], [0], [0], [1], [0, 0, 1, 1], [], []>} : vector<8x32xbf16>, vector<32x64xbf16>, vector<8x64xf32> -> vector<8x64xf32>
    %356 = vector.broadcast %276 : vector<1x64xf32> to vector<8x64xf32>
    %357 = arith.addf %355, %356 : vector<8x64xf32>
    %cst_126 = arith.constant 0.000000e+00 : f32
    %358 = vector.broadcast %cst_126 : f32 to vector<8x64xf32>
    %359 = arith.maximumf %357, %358 : vector<8x64xf32>
    %c1_127 = arith.constant 1 : index
    %c0_128 = arith.constant 0 : index
    %c0_129 = arith.constant 0 : index
    %360 = vector.load %arg13[%c1_127, %c0_128, %c0_129] : memref<4x64x32xf32, #tpu.memory_space<vmem>>, vector<1x64x32xf32>
    %361 = vector.shape_cast %360 : vector<1x64x32xf32> to vector<64x32xf32>
    %362 = arith.truncf %359 : vector<8x64xf32> to vector<8x64xbf16>
    %363 = arith.truncf %361 : vector<64x32xf32> to vector<64x32xbf16>
    %cst_130 = arith.constant dense<0.000000e+00> : vector<8x32xf32>
    %364 = tpu.matmul %362, %363, %cst_130 {dimension_numbers = #tpu.dot_dimension_numbers<[1], [0], [0], [1], [0, 0, 1, 1], [], []>} : vector<8x64xbf16>, vector<64x32xbf16>, vector<8x32xf32> -> vector<8x32xf32>
    %365 = vector.broadcast %271 : vector<1x32xf32> to vector<8x32xf32>
    %366 = arith.addf %364, %365 : vector<8x32xf32>
    %367 = arith.addf %350, %366 : vector<8x32xf32>
    %cst_131 = arith.constant dense<0.000000e+00> : vector<8xf32>
    %368 = vector.multi_reduction <add>, %367, %cst_131 [1] : vector<8x32xf32> to vector<8xf32>
    %369 = vector.shape_cast %368 : vector<8xf32> to vector<8x1xf32>
    %cst_132 = arith.constant 3.200000e+01 : f32
    %370 = vector.broadcast %cst_132 : f32 to vector<8x1xf32>
    %371 = arith.divf %369, %370 : vector<8x1xf32>
    %372 = vector.broadcast %371 : vector<8x1xf32> to vector<8x32xf32>
    %373 = arith.subf %367, %372 : vector<8x32xf32>
    %374 = arith.mulf %373, %373 : vector<8x32xf32>
    %cst_133 = arith.constant dense<0.000000e+00> : vector<8xf32>
    %375 = vector.multi_reduction <add>, %374, %cst_133 [1] : vector<8x32xf32> to vector<8xf32>
    %376 = vector.shape_cast %375 : vector<8xf32> to vector<8x1xf32>
    %cst_134 = arith.constant 3.200000e+01 : f32
    %377 = vector.broadcast %cst_134 : f32 to vector<8x1xf32>
    %378 = arith.divf %376, %377 : vector<8x1xf32>
    %cst_135 = arith.constant 9.99999974E-6 : f32
    %379 = vector.broadcast %cst_135 : f32 to vector<8x1xf32>
    %380 = arith.addf %378, %379 : vector<8x1xf32>
    %381 = math.rsqrt %380 : vector<8x1xf32>
    %382 = vector.broadcast %381 : vector<8x1xf32> to vector<8x32xf32>
    %383 = arith.mulf %373, %382 : vector<8x32xf32>
    %384 = vector.broadcast %274 : vector<1x32xf32> to vector<8x32xf32>
    %385 = arith.mulf %383, %384 : vector<8x32xf32>
    %386 = vector.broadcast %275 : vector<1x32xf32> to vector<8x32xf32>
    %387 = arith.addf %385, %386 : vector<8x32xf32>
    %c2_136 = arith.constant 2 : index
    %c0_137 = arith.constant 0 : index
    %c0_138 = arith.constant 0 : index
    %388 = vector.load %arg11[%c2_136, %c0_137, %c0_138] : memref<4x32x128xf32, #tpu.memory_space<vmem>>, vector<1x32x128xf32>
    %389 = vector.shape_cast %388 : vector<1x32x128xf32> to vector<32x128xf32>
    %c2_139 = arith.constant 2 : index
    %c0_140 = arith.constant 0 : index
    %c0_141 = arith.constant 0 : index
    %390 = vector.load %arg14[%c2_139, %c0_140, %c0_141] : memref<4x10x32xf32, #tpu.memory_space<vmem>>, vector<1x10x32xf32>
    %391 = vector.shape_cast %390 : vector<1x10x32xf32> to vector<10x32xf32>
    %392 = vector.extract_strided_slice %391 {offsets = [0, 0], sizes = [1, 32], strides = [1, 1]} : vector<10x32xf32> to vector<1x32xf32>
    %393 = vector.extract_strided_slice %391 {offsets = [1, 0], sizes = [1, 32], strides = [1, 1]} : vector<10x32xf32> to vector<1x32xf32>
    %394 = vector.extract_strided_slice %391 {offsets = [2, 0], sizes = [1, 32], strides = [1, 1]} : vector<10x32xf32> to vector<1x32xf32>
    %395 = vector.extract_strided_slice %391 {offsets = [3, 0], sizes = [1, 32], strides = [1, 1]} : vector<10x32xf32> to vector<1x32xf32>
    %396 = vector.extract_strided_slice %391 {offsets = [4, 0], sizes = [1, 32], strides = [1, 1]} : vector<10x32xf32> to vector<1x32xf32>
    %397 = vector.extract_strided_slice %391 {offsets = [5, 0], sizes = [1, 32], strides = [1, 1]} : vector<10x32xf32> to vector<1x32xf32>
    %398 = vector.extract_strided_slice %391 {offsets = [6, 0], sizes = [1, 32], strides = [1, 1]} : vector<10x32xf32> to vector<1x32xf32>
    %399 = vector.extract_strided_slice %391 {offsets = [7, 0], sizes = [1, 32], strides = [1, 1]} : vector<10x32xf32> to vector<1x32xf32>
    %400 = vector.extract_strided_slice %391 {offsets = [8, 0], sizes = [1, 32], strides = [1, 1]} : vector<10x32xf32> to vector<1x32xf32>
    %c2_142 = arith.constant 2 : index
    %c0_143 = arith.constant 0 : index
    %401 = vector.load %arg15[%c2_142, %c0_143] : memref<4x64xf32, #tpu.memory_space<vmem>>, vector<1x64xf32>
    %402 = arith.truncf %123 : vector<8x32xf32> to vector<8x32xbf16>
    %403 = arith.truncf %389 : vector<32x128xf32> to vector<32x128xbf16>
    %cst_144 = arith.constant dense<0.000000e+00> : vector<8x128xf32>
    %404 = tpu.matmul %402, %403, %cst_144 {dimension_numbers = #tpu.dot_dimension_numbers<[1], [0], [0], [1], [0, 0, 1, 1], [], []>} : vector<8x32xbf16>, vector<32x128xbf16>, vector<8x128xf32> -> vector<8x128xf32>
    %405 = arith.truncf %387 : vector<8x32xf32> to vector<8x32xbf16>
    %406 = arith.truncf %389 : vector<32x128xf32> to vector<32x128xbf16>
    %cst_145 = arith.constant dense<0.000000e+00> : vector<8x128xf32>
    %407 = tpu.matmul %405, %406, %cst_145 {dimension_numbers = #tpu.dot_dimension_numbers<[1], [0], [0], [1], [0, 0, 1, 1], [], []>} : vector<8x32xbf16>, vector<32x128xbf16>, vector<8x128xf32> -> vector<8x128xf32>
    %408 = vector.extract_strided_slice %404 {offsets = [0, 0], sizes = [8, 32], strides = [1, 1]} : vector<8x128xf32> to vector<8x32xf32>
    %409 = vector.broadcast %392 : vector<1x32xf32> to vector<8x32xf32>
    %410 = arith.addf %408, %409 : vector<8x32xf32>
    %411 = vector.extract_strided_slice %407 {offsets = [0, 32], sizes = [8, 32], strides = [1, 1]} : vector<8x128xf32> to vector<8x32xf32>
    %412 = vector.broadcast %393 : vector<1x32xf32> to vector<8x32xf32>
    %413 = arith.addf %411, %412 : vector<8x32xf32>
    %414 = vector.extract_strided_slice %407 {offsets = [0, 64], sizes = [8, 32], strides = [1, 1]} : vector<8x128xf32> to vector<8x32xf32>
    %415 = vector.broadcast %394 : vector<1x32xf32> to vector<8x32xf32>
    %416 = arith.addf %414, %415 : vector<8x32xf32>
    %cst_146 = arith.constant 2.500000e-01 : f32
    %417 = vector.broadcast %cst_146 : f32 to vector<1x32xf32>
    %418 = arith.mulf %7, %417 : vector<1x32xf32>
    %419 = vector.broadcast %418 : vector<1x32xf32> to vector<8x32xf32>
    %420 = arith.mulf %410, %419 : vector<8x32xf32>
    %cst_147 = arith.constant 2.500000e-01 : f32
    %421 = vector.broadcast %cst_147 : f32 to vector<1x32xf32>
    %422 = arith.mulf %14, %421 : vector<1x32xf32>
    %423 = vector.broadcast %422 : vector<1x32xf32> to vector<8x32xf32>
    %424 = arith.mulf %410, %423 : vector<8x32xf32>
    %425 = tpu.concatenate %420, %424 in 0 : vector<8x32xf32>, vector<8x32xf32> -> vector<16x32xf32>
    %426 = arith.truncf %425 : vector<16x32xf32> to vector<16x32xbf16>
    %427 = arith.truncf %413 : vector<8x32xf32> to vector<8x32xbf16>
    %cst_148 = arith.constant dense<0.000000e+00> : vector<16x8xf32>
    %428 = tpu.matmul %426, %427, %cst_148 {dimension_numbers = #tpu.dot_dimension_numbers<[1], [1], [0], [0], [0, 0, 1, 0], [], []>} : vector<16x32xbf16>, vector<8x32xbf16>, vector<16x8xf32> -> vector<16x8xf32>
    %429 = vector.broadcast %125 : vector<1x8xf32> to vector<16x8xf32>
    %430 = arith.addf %428, %429 : vector<16x8xf32>
    %cst_149 = arith.constant dense<0xFF800000> : vector<16xf32>
    %431 = vector.multi_reduction <maximumf>, %430, %cst_149 [1] : vector<16x8xf32> to vector<16xf32>
    %432 = vector.shape_cast %431 : vector<16xf32> to vector<16x1xf32>
    %433 = vector.broadcast %432 : vector<16x1xf32> to vector<16x8xf32>
    %434 = arith.subf %430, %433 : vector<16x8xf32>
    %435 = math.exp %434 : vector<16x8xf32>
    %cst_150 = arith.constant dense<0.000000e+00> : vector<16xf32>
    %436 = vector.multi_reduction <add>, %435, %cst_150 [1] : vector<16x8xf32> to vector<16xf32>
    %437 = vector.shape_cast %436 : vector<16xf32> to vector<16x1xf32>
    %438 = vector.broadcast %437 : vector<16x1xf32> to vector<16x8xf32>
    %439 = arith.divf %435, %438 : vector<16x8xf32>
    %440 = arith.truncf %439 : vector<16x8xf32> to vector<16x8xbf16>
    %441 = arith.truncf %416 : vector<8x32xf32> to vector<8x32xbf16>
    %cst_151 = arith.constant dense<0.000000e+00> : vector<16x32xf32>
    %442 = tpu.matmul %440, %441, %cst_151 {dimension_numbers = #tpu.dot_dimension_numbers<[1], [0], [0], [1], [0, 0, 1, 1], [], []>} : vector<16x8xbf16>, vector<8x32xbf16>, vector<16x32xf32> -> vector<16x32xf32>
    %443 = vector.extract_strided_slice %442 {offsets = [0, 0], sizes = [8, 32], strides = [1, 1]} : vector<16x32xf32> to vector<8x32xf32>
    %444 = vector.broadcast %7 : vector<1x32xf32> to vector<8x32xf32>
    %445 = arith.mulf %443, %444 : vector<8x32xf32>
    %cst_152 = arith.constant 0.000000e+00 : f32
    %446 = vector.broadcast %cst_152 : f32 to vector<8x32xf32>
    %447 = arith.addf %446, %445 : vector<8x32xf32>
    %448 = vector.extract_strided_slice %442 {offsets = [8, 0], sizes = [8, 32], strides = [1, 1]} : vector<16x32xf32> to vector<8x32xf32>
    %449 = vector.broadcast %14 : vector<1x32xf32> to vector<8x32xf32>
    %450 = arith.mulf %448, %449 : vector<8x32xf32>
    %451 = arith.addf %447, %450 : vector<8x32xf32>
    %452 = vector.extract_strided_slice %439 {offsets = [0, 0], sizes = [8, 8], strides = [1, 1]} : vector<16x8xf32> to vector<8x8xf32>
    %cst_153 = arith.constant 0.000000e+00 : f32
    %453 = vector.broadcast %cst_153 : f32 to vector<8x8xf32>
    %454 = arith.addf %453, %452 : vector<8x8xf32>
    %455 = vector.extract_strided_slice %439 {offsets = [8, 0], sizes = [8, 8], strides = [1, 1]} : vector<16x8xf32> to vector<8x8xf32>
    %456 = arith.addf %454, %455 : vector<8x8xf32>
    %cst_154 = arith.constant 5.000000e-01 : f32
    %457 = vector.broadcast %cst_154 : f32 to vector<8x8xf32>
    %458 = arith.mulf %456, %457 : vector<8x8xf32>
    %459 = vector.extract_strided_slice %389 {offsets = [0, 96], sizes = [32, 32], strides = [1, 1]} : vector<32x128xf32> to vector<32x32xf32>
    %460 = arith.truncf %451 : vector<8x32xf32> to vector<8x32xbf16>
    %461 = arith.truncf %459 : vector<32x32xf32> to vector<32x32xbf16>
    %cst_155 = arith.constant dense<0.000000e+00> : vector<8x32xf32>
    %462 = tpu.matmul %460, %461, %cst_155 {dimension_numbers = #tpu.dot_dimension_numbers<[1], [0], [0], [1], [0, 0, 1, 1], [], []>} : vector<8x32xbf16>, vector<32x32xbf16>, vector<8x32xf32> -> vector<8x32xf32>
    %463 = vector.broadcast %395 : vector<1x32xf32> to vector<8x32xf32>
    %464 = arith.addf %462, %463 : vector<8x32xf32>
    %465 = arith.addf %464, %123 : vector<8x32xf32>
    %cst_156 = arith.constant dense<0.000000e+00> : vector<8xf32>
    %466 = vector.multi_reduction <add>, %465, %cst_156 [1] : vector<8x32xf32> to vector<8xf32>
    %467 = vector.shape_cast %466 : vector<8xf32> to vector<8x1xf32>
    %cst_157 = arith.constant 3.200000e+01 : f32
    %468 = vector.broadcast %cst_157 : f32 to vector<8x1xf32>
    %469 = arith.divf %467, %468 : vector<8x1xf32>
    %470 = vector.broadcast %469 : vector<8x1xf32> to vector<8x32xf32>
    %471 = arith.subf %465, %470 : vector<8x32xf32>
    %472 = arith.mulf %471, %471 : vector<8x32xf32>
    %cst_158 = arith.constant dense<0.000000e+00> : vector<8xf32>
    %473 = vector.multi_reduction <add>, %472, %cst_158 [1] : vector<8x32xf32> to vector<8xf32>
    %474 = vector.shape_cast %473 : vector<8xf32> to vector<8x1xf32>
    %cst_159 = arith.constant 3.200000e+01 : f32
    %475 = vector.broadcast %cst_159 : f32 to vector<8x1xf32>
    %476 = arith.divf %474, %475 : vector<8x1xf32>
    %cst_160 = arith.constant 9.99999974E-6 : f32
    %477 = vector.broadcast %cst_160 : f32 to vector<8x1xf32>
    %478 = arith.addf %476, %477 : vector<8x1xf32>
    %479 = math.rsqrt %478 : vector<8x1xf32>
    %480 = vector.broadcast %479 : vector<8x1xf32> to vector<8x32xf32>
    %481 = arith.mulf %471, %480 : vector<8x32xf32>
    %482 = vector.broadcast %397 : vector<1x32xf32> to vector<8x32xf32>
    %483 = arith.mulf %481, %482 : vector<8x32xf32>
    %484 = vector.broadcast %398 : vector<1x32xf32> to vector<8x32xf32>
    %485 = arith.addf %483, %484 : vector<8x32xf32>
    %c2_161 = arith.constant 2 : index
    %c0_162 = arith.constant 0 : index
    %c0_163 = arith.constant 0 : index
    %486 = vector.load %arg12[%c2_161, %c0_162, %c0_163] : memref<4x32x64xf32, #tpu.memory_space<vmem>>, vector<1x32x64xf32>
    %487 = vector.shape_cast %486 : vector<1x32x64xf32> to vector<32x64xf32>
    %488 = arith.truncf %485 : vector<8x32xf32> to vector<8x32xbf16>
    %489 = arith.truncf %487 : vector<32x64xf32> to vector<32x64xbf16>
    %cst_164 = arith.constant dense<0.000000e+00> : vector<8x64xf32>
    %490 = tpu.matmul %488, %489, %cst_164 {dimension_numbers = #tpu.dot_dimension_numbers<[1], [0], [0], [1], [0, 0, 1, 1], [], []>} : vector<8x32xbf16>, vector<32x64xbf16>, vector<8x64xf32> -> vector<8x64xf32>
    %491 = vector.broadcast %401 : vector<1x64xf32> to vector<8x64xf32>
    %492 = arith.addf %490, %491 : vector<8x64xf32>
    %cst_165 = arith.constant 0.000000e+00 : f32
    %493 = vector.broadcast %cst_165 : f32 to vector<8x64xf32>
    %494 = arith.maximumf %492, %493 : vector<8x64xf32>
    %c2_166 = arith.constant 2 : index
    %c0_167 = arith.constant 0 : index
    %c0_168 = arith.constant 0 : index
    %495 = vector.load %arg13[%c2_166, %c0_167, %c0_168] : memref<4x64x32xf32, #tpu.memory_space<vmem>>, vector<1x64x32xf32>
    %496 = vector.shape_cast %495 : vector<1x64x32xf32> to vector<64x32xf32>
    %497 = arith.truncf %494 : vector<8x64xf32> to vector<8x64xbf16>
    %498 = arith.truncf %496 : vector<64x32xf32> to vector<64x32xbf16>
    %cst_169 = arith.constant dense<0.000000e+00> : vector<8x32xf32>
    %499 = tpu.matmul %497, %498, %cst_169 {dimension_numbers = #tpu.dot_dimension_numbers<[1], [0], [0], [1], [0, 0, 1, 1], [], []>} : vector<8x64xbf16>, vector<64x32xbf16>, vector<8x32xf32> -> vector<8x32xf32>
    %500 = vector.broadcast %396 : vector<1x32xf32> to vector<8x32xf32>
    %501 = arith.addf %499, %500 : vector<8x32xf32>
    %502 = arith.addf %485, %501 : vector<8x32xf32>
    %cst_170 = arith.constant dense<0.000000e+00> : vector<8xf32>
    %503 = vector.multi_reduction <add>, %502, %cst_170 [1] : vector<8x32xf32> to vector<8xf32>
    %504 = vector.shape_cast %503 : vector<8xf32> to vector<8x1xf32>
    %cst_171 = arith.constant 3.200000e+01 : f32
    %505 = vector.broadcast %cst_171 : f32 to vector<8x1xf32>
    %506 = arith.divf %504, %505 : vector<8x1xf32>
    %507 = vector.broadcast %506 : vector<8x1xf32> to vector<8x32xf32>
    %508 = arith.subf %502, %507 : vector<8x32xf32>
    %509 = arith.mulf %508, %508 : vector<8x32xf32>
    %cst_172 = arith.constant dense<0.000000e+00> : vector<8xf32>
    %510 = vector.multi_reduction <add>, %509, %cst_172 [1] : vector<8x32xf32> to vector<8xf32>
    %511 = vector.shape_cast %510 : vector<8xf32> to vector<8x1xf32>
    %cst_173 = arith.constant 3.200000e+01 : f32
    %512 = vector.broadcast %cst_173 : f32 to vector<8x1xf32>
    %513 = arith.divf %511, %512 : vector<8x1xf32>
    %cst_174 = arith.constant 9.99999974E-6 : f32
    %514 = vector.broadcast %cst_174 : f32 to vector<8x1xf32>
    %515 = arith.addf %513, %514 : vector<8x1xf32>
    %516 = math.rsqrt %515 : vector<8x1xf32>
    %517 = vector.broadcast %516 : vector<8x1xf32> to vector<8x32xf32>
    %518 = arith.mulf %508, %517 : vector<8x32xf32>
    %519 = vector.broadcast %399 : vector<1x32xf32> to vector<8x32xf32>
    %520 = arith.mulf %518, %519 : vector<8x32xf32>
    %521 = vector.broadcast %400 : vector<1x32xf32> to vector<8x32xf32>
    %522 = arith.addf %520, %521 : vector<8x32xf32>
    %c3_175 = arith.constant 3 : index
    %c0_176 = arith.constant 0 : index
    %c0_177 = arith.constant 0 : index
    %523 = vector.load %arg11[%c3_175, %c0_176, %c0_177] : memref<4x32x128xf32, #tpu.memory_space<vmem>>, vector<1x32x128xf32>
    %524 = vector.shape_cast %523 : vector<1x32x128xf32> to vector<32x128xf32>
    %c3_178 = arith.constant 3 : index
    %c0_179 = arith.constant 0 : index
    %c0_180 = arith.constant 0 : index
    %525 = vector.load %arg14[%c3_178, %c0_179, %c0_180] : memref<4x10x32xf32, #tpu.memory_space<vmem>>, vector<1x10x32xf32>
    %526 = vector.shape_cast %525 : vector<1x10x32xf32> to vector<10x32xf32>
    %527 = vector.extract_strided_slice %526 {offsets = [0, 0], sizes = [1, 32], strides = [1, 1]} : vector<10x32xf32> to vector<1x32xf32>
    %528 = vector.extract_strided_slice %526 {offsets = [1, 0], sizes = [1, 32], strides = [1, 1]} : vector<10x32xf32> to vector<1x32xf32>
    %529 = vector.extract_strided_slice %526 {offsets = [2, 0], sizes = [1, 32], strides = [1, 1]} : vector<10x32xf32> to vector<1x32xf32>
    %530 = vector.extract_strided_slice %526 {offsets = [3, 0], sizes = [1, 32], strides = [1, 1]} : vector<10x32xf32> to vector<1x32xf32>
    %531 = vector.extract_strided_slice %526 {offsets = [4, 0], sizes = [1, 32], strides = [1, 1]} : vector<10x32xf32> to vector<1x32xf32>
    %532 = vector.extract_strided_slice %526 {offsets = [5, 0], sizes = [1, 32], strides = [1, 1]} : vector<10x32xf32> to vector<1x32xf32>
    %533 = vector.extract_strided_slice %526 {offsets = [6, 0], sizes = [1, 32], strides = [1, 1]} : vector<10x32xf32> to vector<1x32xf32>
    %534 = vector.extract_strided_slice %526 {offsets = [7, 0], sizes = [1, 32], strides = [1, 1]} : vector<10x32xf32> to vector<1x32xf32>
    %535 = vector.extract_strided_slice %526 {offsets = [8, 0], sizes = [1, 32], strides = [1, 1]} : vector<10x32xf32> to vector<1x32xf32>
    %c3_181 = arith.constant 3 : index
    %c0_182 = arith.constant 0 : index
    %536 = vector.load %arg15[%c3_181, %c0_182] : memref<4x64xf32, #tpu.memory_space<vmem>>, vector<1x64xf32>
    %537 = arith.truncf %522 : vector<8x32xf32> to vector<8x32xbf16>
    %538 = arith.truncf %524 : vector<32x128xf32> to vector<32x128xbf16>
    %cst_183 = arith.constant dense<0.000000e+00> : vector<8x128xf32>
    %539 = tpu.matmul %537, %538, %cst_183 {dimension_numbers = #tpu.dot_dimension_numbers<[1], [0], [0], [1], [0, 0, 1, 1], [], []>} : vector<8x32xbf16>, vector<32x128xbf16>, vector<8x128xf32> -> vector<8x128xf32>
    %540 = vector.extract_strided_slice %539 {offsets = [0, 0], sizes = [8, 32], strides = [1, 1]} : vector<8x128xf32> to vector<8x32xf32>
    %541 = vector.broadcast %527 : vector<1x32xf32> to vector<8x32xf32>
    %542 = arith.addf %540, %541 : vector<8x32xf32>
    %543 = vector.extract_strided_slice %539 {offsets = [0, 32], sizes = [8, 32], strides = [1, 1]} : vector<8x128xf32> to vector<8x32xf32>
    %544 = vector.broadcast %528 : vector<1x32xf32> to vector<8x32xf32>
    %545 = arith.addf %543, %544 : vector<8x32xf32>
    %546 = vector.extract_strided_slice %539 {offsets = [0, 64], sizes = [8, 32], strides = [1, 1]} : vector<8x128xf32> to vector<8x32xf32>
    %547 = vector.broadcast %529 : vector<1x32xf32> to vector<8x32xf32>
    %548 = arith.addf %546, %547 : vector<8x32xf32>
    %cst_184 = arith.constant 2.500000e-01 : f32
    %549 = vector.broadcast %cst_184 : f32 to vector<1x32xf32>
    %550 = arith.mulf %7, %549 : vector<1x32xf32>
    %551 = vector.broadcast %550 : vector<1x32xf32> to vector<8x32xf32>
    %552 = arith.mulf %542, %551 : vector<8x32xf32>
    %cst_185 = arith.constant 2.500000e-01 : f32
    %553 = vector.broadcast %cst_185 : f32 to vector<1x32xf32>
    %554 = arith.mulf %14, %553 : vector<1x32xf32>
    %555 = vector.broadcast %554 : vector<1x32xf32> to vector<8x32xf32>
    %556 = arith.mulf %542, %555 : vector<8x32xf32>
    %557 = tpu.concatenate %552, %556 in 0 : vector<8x32xf32>, vector<8x32xf32> -> vector<16x32xf32>
    %558 = arith.truncf %557 : vector<16x32xf32> to vector<16x32xbf16>
    %559 = arith.truncf %545 : vector<8x32xf32> to vector<8x32xbf16>
    %cst_186 = arith.constant dense<0.000000e+00> : vector<16x8xf32>
    %560 = tpu.matmul %558, %559, %cst_186 {dimension_numbers = #tpu.dot_dimension_numbers<[1], [1], [0], [0], [0, 0, 1, 0], [], []>} : vector<16x32xbf16>, vector<8x32xbf16>, vector<16x8xf32> -> vector<16x8xf32>
    %561 = vector.broadcast %127 : vector<1x8xf32> to vector<16x8xf32>
    %562 = arith.addf %560, %561 : vector<16x8xf32>
    %cst_187 = arith.constant dense<0xFF800000> : vector<16xf32>
    %563 = vector.multi_reduction <maximumf>, %562, %cst_187 [1] : vector<16x8xf32> to vector<16xf32>
    %564 = vector.shape_cast %563 : vector<16xf32> to vector<16x1xf32>
    %565 = vector.broadcast %564 : vector<16x1xf32> to vector<16x8xf32>
    %566 = arith.subf %562, %565 : vector<16x8xf32>
    %567 = math.exp %566 : vector<16x8xf32>
    %cst_188 = arith.constant dense<0.000000e+00> : vector<16xf32>
    %568 = vector.multi_reduction <add>, %567, %cst_188 [1] : vector<16x8xf32> to vector<16xf32>
    %569 = vector.shape_cast %568 : vector<16xf32> to vector<16x1xf32>
    %570 = vector.broadcast %569 : vector<16x1xf32> to vector<16x8xf32>
    %571 = arith.divf %567, %570 : vector<16x8xf32>
    %572 = arith.truncf %571 : vector<16x8xf32> to vector<16x8xbf16>
    %573 = arith.truncf %548 : vector<8x32xf32> to vector<8x32xbf16>
    %cst_189 = arith.constant dense<0.000000e+00> : vector<16x32xf32>
    %574 = tpu.matmul %572, %573, %cst_189 {dimension_numbers = #tpu.dot_dimension_numbers<[1], [0], [0], [1], [0, 0, 1, 1], [], []>} : vector<16x8xbf16>, vector<8x32xbf16>, vector<16x32xf32> -> vector<16x32xf32>
    %575 = vector.extract_strided_slice %574 {offsets = [0, 0], sizes = [8, 32], strides = [1, 1]} : vector<16x32xf32> to vector<8x32xf32>
    %576 = vector.broadcast %7 : vector<1x32xf32> to vector<8x32xf32>
    %577 = arith.mulf %575, %576 : vector<8x32xf32>
    %cst_190 = arith.constant 0.000000e+00 : f32
    %578 = vector.broadcast %cst_190 : f32 to vector<8x32xf32>
    %579 = arith.addf %578, %577 : vector<8x32xf32>
    %580 = vector.extract_strided_slice %574 {offsets = [8, 0], sizes = [8, 32], strides = [1, 1]} : vector<16x32xf32> to vector<8x32xf32>
    %581 = vector.broadcast %14 : vector<1x32xf32> to vector<8x32xf32>
    %582 = arith.mulf %580, %581 : vector<8x32xf32>
    %583 = arith.addf %579, %582 : vector<8x32xf32>
    %584 = vector.extract_strided_slice %524 {offsets = [0, 96], sizes = [32, 32], strides = [1, 1]} : vector<32x128xf32> to vector<32x32xf32>
    %585 = arith.truncf %583 : vector<8x32xf32> to vector<8x32xbf16>
    %586 = arith.truncf %584 : vector<32x32xf32> to vector<32x32xbf16>
    %cst_191 = arith.constant dense<0.000000e+00> : vector<8x32xf32>
    %587 = tpu.matmul %585, %586, %cst_191 {dimension_numbers = #tpu.dot_dimension_numbers<[1], [0], [0], [1], [0, 0, 1, 1], [], []>} : vector<8x32xbf16>, vector<32x32xbf16>, vector<8x32xf32> -> vector<8x32xf32>
    %588 = vector.broadcast %530 : vector<1x32xf32> to vector<8x32xf32>
    %589 = arith.addf %587, %588 : vector<8x32xf32>
    %590 = arith.addf %589, %522 : vector<8x32xf32>
    %cst_192 = arith.constant dense<0.000000e+00> : vector<8xf32>
    %591 = vector.multi_reduction <add>, %590, %cst_192 [1] : vector<8x32xf32> to vector<8xf32>
    %592 = vector.shape_cast %591 : vector<8xf32> to vector<8x1xf32>
    %cst_193 = arith.constant 3.200000e+01 : f32
    %593 = vector.broadcast %cst_193 : f32 to vector<8x1xf32>
    %594 = arith.divf %592, %593 : vector<8x1xf32>
    %595 = vector.broadcast %594 : vector<8x1xf32> to vector<8x32xf32>
    %596 = arith.subf %590, %595 : vector<8x32xf32>
    %597 = arith.mulf %596, %596 : vector<8x32xf32>
    %cst_194 = arith.constant dense<0.000000e+00> : vector<8xf32>
    %598 = vector.multi_reduction <add>, %597, %cst_194 [1] : vector<8x32xf32> to vector<8xf32>
    %599 = vector.shape_cast %598 : vector<8xf32> to vector<8x1xf32>
    %cst_195 = arith.constant 3.200000e+01 : f32
    %600 = vector.broadcast %cst_195 : f32 to vector<8x1xf32>
    %601 = arith.divf %599, %600 : vector<8x1xf32>
    %cst_196 = arith.constant 9.99999974E-6 : f32
    %602 = vector.broadcast %cst_196 : f32 to vector<8x1xf32>
    %603 = arith.addf %601, %602 : vector<8x1xf32>
    %604 = math.rsqrt %603 : vector<8x1xf32>
    %605 = vector.broadcast %604 : vector<8x1xf32> to vector<8x32xf32>
    %606 = arith.mulf %596, %605 : vector<8x32xf32>
    %607 = vector.broadcast %532 : vector<1x32xf32> to vector<8x32xf32>
    %608 = arith.mulf %606, %607 : vector<8x32xf32>
    %609 = vector.broadcast %533 : vector<1x32xf32> to vector<8x32xf32>
    %610 = arith.addf %608, %609 : vector<8x32xf32>
    %c3_197 = arith.constant 3 : index
    %c0_198 = arith.constant 0 : index
    %c0_199 = arith.constant 0 : index
    %611 = vector.load %arg12[%c3_197, %c0_198, %c0_199] : memref<4x32x64xf32, #tpu.memory_space<vmem>>, vector<1x32x64xf32>
    %612 = vector.shape_cast %611 : vector<1x32x64xf32> to vector<32x64xf32>
    %613 = arith.truncf %610 : vector<8x32xf32> to vector<8x32xbf16>
    %614 = arith.truncf %612 : vector<32x64xf32> to vector<32x64xbf16>
    %cst_200 = arith.constant dense<0.000000e+00> : vector<8x64xf32>
    %615 = tpu.matmul %613, %614, %cst_200 {dimension_numbers = #tpu.dot_dimension_numbers<[1], [0], [0], [1], [0, 0, 1, 1], [], []>} : vector<8x32xbf16>, vector<32x64xbf16>, vector<8x64xf32> -> vector<8x64xf32>
    %616 = vector.broadcast %536 : vector<1x64xf32> to vector<8x64xf32>
    %617 = arith.addf %615, %616 : vector<8x64xf32>
    %cst_201 = arith.constant 0.000000e+00 : f32
    %618 = vector.broadcast %cst_201 : f32 to vector<8x64xf32>
    %619 = arith.maximumf %617, %618 : vector<8x64xf32>
    %c3_202 = arith.constant 3 : index
    %c0_203 = arith.constant 0 : index
    %c0_204 = arith.constant 0 : index
    %620 = vector.load %arg13[%c3_202, %c0_203, %c0_204] : memref<4x64x32xf32, #tpu.memory_space<vmem>>, vector<1x64x32xf32>
    %621 = vector.shape_cast %620 : vector<1x64x32xf32> to vector<64x32xf32>
    %622 = arith.truncf %619 : vector<8x64xf32> to vector<8x64xbf16>
    %623 = arith.truncf %621 : vector<64x32xf32> to vector<64x32xbf16>
    %cst_205 = arith.constant dense<0.000000e+00> : vector<8x32xf32>
    %624 = tpu.matmul %622, %623, %cst_205 {dimension_numbers = #tpu.dot_dimension_numbers<[1], [0], [0], [1], [0, 0, 1, 1], [], []>} : vector<8x64xbf16>, vector<64x32xbf16>, vector<8x32xf32> -> vector<8x32xf32>
    %625 = vector.broadcast %531 : vector<1x32xf32> to vector<8x32xf32>
    %626 = arith.addf %624, %625 : vector<8x32xf32>
    %627 = arith.addf %610, %626 : vector<8x32xf32>
    %cst_206 = arith.constant dense<0.000000e+00> : vector<8xf32>
    %628 = vector.multi_reduction <add>, %627, %cst_206 [1] : vector<8x32xf32> to vector<8xf32>
    %629 = vector.shape_cast %628 : vector<8xf32> to vector<8x1xf32>
    %cst_207 = arith.constant 3.200000e+01 : f32
    %630 = vector.broadcast %cst_207 : f32 to vector<8x1xf32>
    %631 = arith.divf %629, %630 : vector<8x1xf32>
    %632 = vector.broadcast %631 : vector<8x1xf32> to vector<8x32xf32>
    %633 = arith.subf %627, %632 : vector<8x32xf32>
    %634 = arith.mulf %633, %633 : vector<8x32xf32>
    %cst_208 = arith.constant dense<0.000000e+00> : vector<8xf32>
    %635 = vector.multi_reduction <add>, %634, %cst_208 [1] : vector<8x32xf32> to vector<8xf32>
    %636 = vector.shape_cast %635 : vector<8xf32> to vector<8x1xf32>
    %cst_209 = arith.constant 3.200000e+01 : f32
    %637 = vector.broadcast %cst_209 : f32 to vector<8x1xf32>
    %638 = arith.divf %636, %637 : vector<8x1xf32>
    %cst_210 = arith.constant 9.99999974E-6 : f32
    %639 = vector.broadcast %cst_210 : f32 to vector<8x1xf32>
    %640 = arith.addf %638, %639 : vector<8x1xf32>
    %641 = math.rsqrt %640 : vector<8x1xf32>
    %642 = vector.broadcast %641 : vector<8x1xf32> to vector<8x32xf32>
    %643 = arith.mulf %633, %642 : vector<8x32xf32>
    %644 = vector.broadcast %534 : vector<1x32xf32> to vector<8x32xf32>
    %645 = arith.mulf %643, %644 : vector<8x32xf32>
    %646 = vector.broadcast %535 : vector<1x32xf32> to vector<8x32xf32>
    %647 = arith.addf %645, %646 : vector<8x32xf32>
    %cst_211 = arith.constant 0.000000e+00 : f32
    %648 = vector.broadcast %cst_211 : f32 to vector<1x8xf32>
    %649 = arith.cmpf oeq, %125, %648 : vector<1x8xf32>
    %cst_212 = arith.constant 1.000000e+00 : f32
    %cst_213 = arith.constant 0.000000e+00 : f32
    %650 = vector.broadcast %cst_212 : f32 to vector<1x8xf32>
    %651 = vector.broadcast %cst_213 : f32 to vector<1x8xf32>
    %652 = arith.select %649, %650, %651 : vector<1x8xi1>, vector<1x8xf32>
    %cst_214 = arith.constant dense<0.000000e+00> : vector<1xf32>
    %653 = vector.multi_reduction <add>, %652, %cst_214 [1] : vector<1x8xf32> to vector<1xf32>
    %654 = vector.shape_cast %653 : vector<1xf32> to vector<1x1xf32>
    %cst_215 = arith.constant 9.99999997E-7 : f32
    %655 = vector.broadcast %cst_215 : f32 to vector<1x1xf32>
    %656 = arith.maximumf %654, %655 : vector<1x1xf32>
    %657 = arith.truncf %652 : vector<1x8xf32> to vector<1x8xbf16>
    %658 = arith.truncf %387 : vector<8x32xf32> to vector<8x32xbf16>
    %cst_216 = arith.constant dense<0.000000e+00> : vector<1x32xf32>
    %659 = tpu.matmul %657, %658, %cst_216 {dimension_numbers = #tpu.dot_dimension_numbers<[1], [0], [0], [1], [0, 0, 1, 1], [], []>} : vector<1x8xbf16>, vector<8x32xbf16>, vector<1x32xf32> -> vector<1x32xf32>
    %660 = vector.broadcast %656 : vector<1x1xf32> to vector<1x32xf32>
    %661 = arith.divf %659, %660 : vector<1x32xf32>
    %662 = vector.extract_strided_slice %647 {offsets = [0, 0], sizes = [1, 32], strides = [1, 1]} : vector<8x32xf32> to vector<1x32xf32>
    %c1_217 = arith.constant 1 : index
    %c0_218 = arith.constant 0 : index
    %663 = vector.load %arg16[%c1_217, %c0_218] : memref<4x32xf32, #tpu.memory_space<vmem>>, vector<1x32xf32>
    %c2_219 = arith.constant 2 : index
    %c0_220 = arith.constant 0 : index
    %664 = vector.load %arg16[%c2_219, %c0_220] : memref<4x32xf32, #tpu.memory_space<vmem>>, vector<1x32xf32>
    %c3_221 = arith.constant 3 : index
    %c0_222 = arith.constant 0 : index
    %665 = vector.load %arg16[%c3_221, %c0_222] : memref<4x32xf32, #tpu.memory_space<vmem>>, vector<1x1xf32>
    %666 = arith.mulf %661, %663 : vector<1x32xf32>
    %cst_223 = arith.constant dense<0.000000e+00> : vector<1xf32>
    %667 = vector.multi_reduction <add>, %666, %cst_223 [1] : vector<1x32xf32> to vector<1xf32>
    %668 = vector.shape_cast %667 : vector<1xf32> to vector<1x1xf32>
    %669 = arith.mulf %662, %664 : vector<1x32xf32>
    %cst_224 = arith.constant dense<0.000000e+00> : vector<1xf32>
    %670 = vector.multi_reduction <add>, %669, %cst_224 [1] : vector<1x32xf32> to vector<1xf32>
    %671 = vector.shape_cast %670 : vector<1xf32> to vector<1x1xf32>
    %672 = arith.addf %668, %671 : vector<1x1xf32>
    %673 = arith.addf %672, %665 : vector<1x1xf32>
    %cst_225 = arith.constant 0.000000e+00 : f32
    %674 = vector.broadcast %cst_225 : f32 to vector<7x1xf32>
    %675 = tpu.concatenate %673, %674 in 0 : vector<1x1xf32>, vector<7x1xf32> -> vector<8x1xf32>
    %cst_226 = arith.constant 0.000000e+00 : f32
    %676 = vector.broadcast %cst_226 : f32 to vector<8x111xf32>
    %677 = tpu.concatenate %198, %458, %675, %676 in 1 : vector<8x8xf32>, vector<8x8xf32>, vector<8x1xf32>, vector<8x111xf32> -> vector<8x128xf32>
    %c0_227 = arith.constant 0 : index
    %c0_228 = arith.constant 0 : index
    %c0_229 = arith.constant 0 : index
    %678 = vector.load %arg17[%c0_227, %c0_228, %c0_229] : memref<1x8x128xf32, #tpu.memory_space<vmem>>, vector<1x8x128xf32>
    %679 = vector.shape_cast %678 : vector<1x8x128xf32> to vector<8x128xf32>
    %680 = vector.shape_cast %677 : vector<8x128xf32> to vector<1x8x128xf32>
    tpu.vector_store %arg17[%c0_227, %c0_228, %c0_229], %680 {strides = array<i32>} : memref<1x8x128xf32, #tpu.memory_space<vmem>>, vector<1x8x128xf32>,
    return
  }
  func.func @transform_0(%arg0: i32) -> (i32, i32, i32, i32) {
    %c0_i32 = arith.constant 0 : i32
    %c0_i32_0 = arith.constant 0 : i32
    %c0_i32_1 = arith.constant 0 : i32
    %c0_i32_2 = arith.constant 0 : i32
    return %arg0, %c0_i32, %c0_i32_0, %c0_i32_1 : i32, i32, i32, i32
  }
  func.func @transform_1(%arg0: i32) -> (i32, i32, i32) {
    %c0_i32 = arith.constant 0 : i32
    %c0_i32_0 = arith.constant 0 : i32
    %c0_i32_1 = arith.constant 0 : i32
    return %arg0, %c0_i32, %c0_i32_0 : i32, i32, i32
  }
  func.func @transform_2(%arg0: i32) -> (i32, i32, i32) {
    %c0_i32 = arith.constant 0 : i32
    %c0_i32_0 = arith.constant 0 : i32
    %c0_i32_1 = arith.constant 0 : i32
    return %arg0, %c0_i32, %c0_i32_0 : i32, i32, i32
  }
  func.func @transform_3(%arg0: i32) -> (i32, i32, i32) {
    %c0_i32 = arith.constant 0 : i32
    %c0_i32_0 = arith.constant 0 : i32
    %c0_i32_1 = arith.constant 0 : i32
    return %arg0, %c0_i32, %c0_i32_0 : i32, i32, i32
  }
  func.func @transform_4(%arg0: i32) -> (i32, i32, i32) {
    %c0_i32 = arith.constant 0 : i32
    %c0_i32_0 = arith.constant 0 : i32
    %c0_i32_1 = arith.constant 0 : i32
    return %arg0, %c0_i32, %c0_i32_0 : i32, i32, i32
  }
  func.func @transform_5(%arg0: i32) -> (i32, i32) {
    %c0_i32 = arith.constant 0 : i32
    %c0_i32_0 = arith.constant 0 : i32
    %c0_i32_1 = arith.constant 0 : i32
    return %c0_i32, %c0_i32_0 : i32, i32
  }
  func.func @transform_6(%arg0: i32) -> (i32, i32, i32) {
    %c0_i32 = arith.constant 0 : i32
    %c0_i32_0 = arith.constant 0 : i32
    %c0_i32_1 = arith.constant 0 : i32
    %c0_i32_2 = arith.constant 0 : i32
    return %c0_i32, %c0_i32_0, %c0_i32_1 : i32, i32, i32
  }
  func.func @transform_7(%arg0: i32) -> (i32, i32) {
    %c0_i32 = arith.constant 0 : i32
    %c0_i32_0 = arith.constant 0 : i32
    %c0_i32_1 = arith.constant 0 : i32
    return %c0_i32, %c0_i32_0 : i32, i32
  }
  func.func @transform_8(%arg0: i32) -> (i32, i32) {
    %c0_i32 = arith.constant 0 : i32
    %c0_i32_0 = arith.constant 0 : i32
    %c0_i32_1 = arith.constant 0 : i32
    return %c0_i32, %c0_i32_0 : i32, i32
  }
  func.func @transform_9(%arg0: i32) -> (i32, i32) {
    %c0_i32 = arith.constant 0 : i32
    %c0_i32_0 = arith.constant 0 : i32
    %c0_i32_1 = arith.constant 0 : i32
    return %c0_i32, %c0_i32_0 : i32, i32
  }
  func.func @transform_10(%arg0: i32) -> (i32, i32, i32) {
    %c0_i32 = arith.constant 0 : i32
    %c0_i32_0 = arith.constant 0 : i32
    %c0_i32_1 = arith.constant 0 : i32
    %c0_i32_2 = arith.constant 0 : i32
    return %c0_i32, %c0_i32_0, %c0_i32_1 : i32, i32, i32
  }
  func.func @transform_11(%arg0: i32) -> (i32, i32, i32) {
    %c0_i32 = arith.constant 0 : i32
    %c0_i32_0 = arith.constant 0 : i32
    %c0_i32_1 = arith.constant 0 : i32
    %c0_i32_2 = arith.constant 0 : i32
    return %c0_i32, %c0_i32_0, %c0_i32_1 : i32, i32, i32
  }
  func.func @transform_12(%arg0: i32) -> (i32, i32, i32) {
    %c0_i32 = arith.constant 0 : i32
    %c0_i32_0 = arith.constant 0 : i32
    %c0_i32_1 = arith.constant 0 : i32
    %c0_i32_2 = arith.constant 0 : i32
    return %c0_i32, %c0_i32_0, %c0_i32_1 : i32, i32, i32
  }
  func.func @transform_13(%arg0: i32) -> (i32, i32, i32) {
    %c0_i32 = arith.constant 0 : i32
    %c0_i32_0 = arith.constant 0 : i32
    %c0_i32_1 = arith.constant 0 : i32
    %c0_i32_2 = arith.constant 0 : i32
    return %c0_i32, %c0_i32_0, %c0_i32_1 : i32, i32, i32
  }
  func.func @transform_14(%arg0: i32) -> (i32, i32) {
    %c0_i32 = arith.constant 0 : i32
    %c0_i32_0 = arith.constant 0 : i32
    %c0_i32_1 = arith.constant 0 : i32
    return %c0_i32, %c0_i32_0 : i32, i32
  }
  func.func @transform_15(%arg0: i32) -> (i32, i32) {
    %c0_i32 = arith.constant 0 : i32
    %c0_i32_0 = arith.constant 0 : i32
    %c0_i32_1 = arith.constant 0 : i32
    return %c0_i32, %c0_i32_0 : i32, i32
  }
  func.func @transform_16(%arg0: i32) -> (i32, i32, i32) {
    %c0_i32 = arith.constant 0 : i32
    %c0_i32_0 = arith.constant 0 : i32
    %c0_i32_1 = arith.constant 0 : i32
    return %arg0, %c0_i32, %c0_i32_0 : i32, i32, i32
  }
}

</mosaic_0001>

<llo_original>
// kernel: forward.1
$region0: #{forward.1}
  #allocation0 [shape = 'u32[]', space=smem, size = 0x4, offset = 0x4, fixed_abs, tag = 'smem constant byte address 0x4 - core index']
  #allocation1 [shape = 'u32[144,128]{1,0:T(1,128)}', space=vmem, size = 0x12000, scoped, tag = 'internal scratch']
  %s0 = inlined_call_operand.vmem [shape: f32[2,3,8,8], index: 0, kind: input, shape index: {}]
  %s1 = inlined_call_operand.vmem [shape: f32[2,8,32], index: 1, kind: input, shape index: {}]
  %s2 = inlined_call_operand.vmem [shape: bf16[2,8,768], index: 2, kind: input, shape index: {}]
  %s3 = inlined_call_operand.vmem [shape: f32[2,1,8], index: 3, kind: input, shape index: {}]
  %s4 = inlined_call_operand.vmem [shape: f32[2,1,8], index: 4, kind: input, shape index: {}]
  %s5 = inlined_call_operand.vmem [shape: f32[32,96], index: 5, kind: input, shape index: {}]
  %s6 = inlined_call_operand.vmem [shape: f32[3,32,32], index: 6, kind: input, shape index: {}]
  %s7 = inlined_call_operand.vmem [shape: f32[96,32], index: 7, kind: input, shape index: {}]
  %s8 = inlined_call_operand.vmem [shape: f32[8,32], index: 8, kind: input, shape index: {}]
  %s9 = inlined_call_operand.vmem [shape: bf16[768,32], index: 9, kind: input, shape index: {}]
  %s10 = inlined_call_operand.vmem [shape: f32[4,32,128], index: 10, kind: input, shape index: {}]
  %s11 = inlined_call_operand.vmem [shape: f32[4,32,64], index: 11, kind: input, shape index: {}]
  %s12 = inlined_call_operand.vmem [shape: f32[4,64,32], index: 12, kind: input, shape index: {}]
  %s13 = inlined_call_operand.vmem [shape: f32[4,10,32], index: 13, kind: input, shape index: {}]
  %s14 = inlined_call_operand.vmem [shape: f32[4,64], index: 14, kind: input, shape index: {}]
  %s15 = inlined_call_operand.vmem [shape: f32[4,32], index: 15, kind: input, shape index: {}]
  %s16 = inlined_call_operand.vmem [shape: f32[2,8,128], index: 16, kind: output, shape index: {}]
  %s17 = sld [smem:[#allocation0]]
  $region97: #{forward.1} parent=0
    _
  %s19 = ssub.s32 1, %s17
  %s20 = scalar_select 0, %s19, %s17
  loop: start=0, step=1, limit=4
  $region2: #{forward.1} parent=0 // loop_pre_header
    _
  $region3: #{forward.1} parent=0 // loop_header
    %s22 = sphi 0, %s26
    %p23 = scmp.ge.s32.totalorder %s22, 4
    %s32 = sphi 0, %s34
    %s35 = sphi 0, %s32
    %s36 = sphi 0, %s35
    %s52 = sphi 0, %s36
    %s58 = sphi 0, %s60
    %s61 = sphi 0, %s58
    %s62 = sphi 0, %s61
    %s78 = sphi 0, %s62
    %s84 = sphi 0, %s86
    %s87 = sphi 0, %s84
    %s88 = sphi 0, %s87
    %s104 = sphi 0, %s88
    %s110 = sphi 0, %s112
    %s113 = sphi 0, %s110
    %s114 = sphi 0, %s113
    %s130 = sphi 0, %s114
    %s136 = sphi 0, %s138
    %s139 = sphi 0, %s136
    %s140 = sphi 0, %s139
    %s156 = sphi 0, %s140
    %s160 = sphi 0, %s160
    %s162 = sphi 0, %s160
    %s163 = sphi 0, %s162
    %s177 = sphi 0, %s163
    %s181 = sphi 0, %s181
    %s183 = sphi 0, %s181
    %s184 = sphi 0, %s183
    %s198 = sphi 0, %s184
    %s202 = sphi 0, %s202
    %s204 = sphi 0, %s202
    %s205 = sphi 0, %s204
    %s219 = sphi 0, %s205
    %s223 = sphi 0, %s223
    %s225 = sphi 0, %s223
    %s226 = sphi 0, %s225
    %s240 = sphi 0, %s226
    %s244 = sphi 0, %s244
    %s246 = sphi 0, %s244
    %s247 = sphi 0, %s246
    %s261 = sphi 0, %s247
    %s265 = sphi 0, %s265
    %s267 = sphi 0, %s265
    %s268 = sphi 0, %s267
    %s282 = sphi 0, %s268
    %s286 = sphi 0, %s286
    %s288 = sphi 0, %s286
    %s289 = sphi 0, %s288
    %s303 = sphi 0, %s289
    %s307 = sphi 0, %s307
    %s309 = sphi 0, %s307
    %s310 = sphi 0, %s309
    %s324 = sphi 0, %s310
    %s328 = sphi 0, %s328
    %s330 = sphi 0, %s328
    %s331 = sphi 0, %s330
    %s345 = sphi 0, %s331
    %s349 = sphi 0, %s349
    %s351 = sphi 0, %s349
    %s352 = sphi 0, %s351
    %s366 = sphi 0, %s352
    %s370 = sphi 0, %s370
    %s372 = sphi 0, %s370
    %s373 = sphi 0, %s372
    %s387 = sphi 0, %s373
    %s393 = sphi 0, %s395
    %s396 = sphi 0, %s393
    %s397 = sphi 0, %s396
    %s413 = sphi 0, %s397
  $region4: #{forward.1} parent=0 // loop_header_branch
    %25 = sbr.rel (%p23) target = $region8
  $region5: #{forward.1} parent=0 // loop_body
    %s27 = ssub.s32 %s22, 1
    %s28 = ssub.s32 %s22, 2
    %s29 = sadd.s32 %s22, 1
    %s30 = ssub.s32 %s22, %s29
    %p31 = scmp.eq.s32.totalorder %s30, 0
    %s33 = sadd.s32 %s32, 1
    %s34 = scalar_select %p31, %s32, %s33
    %p37 = pneg %p31
    %p38 = scmp.eq.s32.totalorder %s22, 1
    %p39 = por %p37, %p38
    %p40 = scmp.ne.s32.totalorder %s32, %s35
    %p41 = scmp.eq.s32.totalorder %s22, 0
    %p42 = por %p40, %p41
    %p43 = scmp.ne.s32.totalorder %s32, %s35
    %p44 = scmp.eq.s32.totalorder %s27, 1
    %p45 = por %p43, %p44
    %p46 = scmp.ne.s32.totalorder %s35, %s36
    %p47 = scmp.eq.s32.totalorder %s27, 0
    %p48 = por %p46, %p47
    %p49 = scmp.ne.s32.totalorder %s35, %s36
    %p50 = scmp.eq.s32.totalorder %s28, 1
    %p51 = por %p49, %p50
    %p53 = scmp.ne.s32.totalorder %s36, %s52
    %p54 = scmp.eq.s32.totalorder %s28, 0
    %p55 = por %p53, %p54
    %s56 = ssub.s32 %s22, %s29
    %p57 = scmp.eq.s32.totalorder %s56, 0
    %s59 = sadd.s32 %s58, 1
    %s60 = scalar_select %p57, %s58, %s59
    %p63 = pneg %p57
    %p64 = scmp.eq.s32.totalorder %s22, 1
    %p65 = por %p63, %p64
    %p66 = scmp.ne.s32.totalorder %s58, %s61
    %p67 = scmp.eq.s32.totalorder %s22, 0
    %p68 = por %p66, %p67
    %p69 = scmp.ne.s32.totalorder %s58, %s61
    %p70 = scmp.eq.s32.totalorder %s27, 1
    %p71 = por %p69, %p70
    %p72 = scmp.ne.s32.totalorder %s61, %s62
    %p73 = scmp.eq.s32.totalorder %s27, 0
    %p74 = por %p72, %p73
    %p75 = scmp.ne.s32.totalorder %s61, %s62
    %p76 = scmp.eq.s32.totalorder %s28, 1
    %p77 = por %p75, %p76
    %p79 = scmp.ne.s32.totalorder %s62, %s78
    %p80 = scmp.eq.s32.totalorder %s28, 0
    %p81 = por %p79, %p80
    %s82 = ssub.s32 %s22, %s29
    %p83 = scmp.eq.s32.totalorder %s82, 0
    %s85 = sadd.s32 %s84, 1
    %s86 = scalar_select %p83, %s84, %s85
    %p89 = pneg %p83
    %p90 = scmp.eq.s32.totalorder %s22, 1
    %p91 = por %p89, %p90
    %p92 = scmp.ne.s32.totalorder %s84, %s87
    %p93 = scmp.eq.s32.totalorder %s22, 0
    %p94 = por %p92, %p93
    %p95 = scmp.ne.s32.totalorder %s84, %s87
    %p96 = scmp.eq.s32.totalorder %s27, 1
    %p97 = por %p95, %p96
    %p98 = scmp.ne.s32.totalorder %s87, %s88
    %p99 = scmp.eq.s32.totalorder %s27, 0
    %p100 = por %p98, %p99
    %p101 = scmp.ne.s32.totalorder %s87, %s88
    %p102 = scmp.eq.s32.totalorder %s28, 1
    %p103 = por %p101, %p102
    %p105 = scmp.ne.s32.totalorder %s88, %s104
    %p106 = scmp.eq.s32.totalorder %s28, 0
    %p107 = por %p105, %p106
    %s108 = ssub.s32 %s22, %s29
    %p109 = scmp.eq.s32.totalorder %s108, 0
    %s111 = sadd.s32 %s110, 1
    %s112 = scalar_select %p109, %s110, %s111
    %p115 = pneg %p109
    %p116 = scmp.eq.s32.totalorder %s22, 1
    %p117 = por %p115, %p116
    %p118 = scmp.ne.s32.totalorder %s110, %s113
    %p119 = scmp.eq.s32.totalorder %s22, 0
    %p120 = por %p118, %p119
    %p121 = scmp.ne.s32.totalorder %s110, %s113
    %p122 = scmp.eq.s32.totalorder %s27, 1
    %p123 = por %p121, %p122
    %p124 = scmp.ne.s32.totalorder %s113, %s114
    %p125 = scmp.eq.s32.totalorder %s27, 0
    %p126 = por %p124, %p125
    %p127 = scmp.ne.s32.totalorder %s113, %s114
    %p128 = scmp.eq.s32.totalorder %s28, 1
    %p129 = por %p127, %p128
    %p131 = scmp.ne.s32.totalorder %s114, %s130
    %p132 = scmp.eq.s32.totalorder %s28, 0
    %p133 = por %p131, %p132
    %s134 = ssub.s32 %s22, %s29
    %p135 = scmp.eq.s32.totalorder %s134, 0
    %s137 = sadd.s32 %s136, 1
    %s138 = scalar_select %p135, %s136, %s137
    %p141 = pneg %p135
    %p142 = scmp.eq.s32.totalorder %s22, 1
    %p143 = por %p141, %p142
    %p144 = scmp.ne.s32.totalorder %s136, %s139
    %p145 = scmp.eq.s32.totalorder %s22, 0
    %p146 = por %p144, %p145
    %p147 = scmp.ne.s32.totalorder %s136, %s139
    %p148 = scmp.eq.s32.totalorder %s27, 1
    %p149 = por %p147, %p148
    %p150 = scmp.ne.s32.totalorder %s139, %s140
    %p151 = scmp.eq.s32.totalorder %s27, 0
    %p152 = por %p150, %p151
    %p153 = scmp.ne.s32.totalorder %s139, %s140
    %p154 = scmp.eq.s32.totalorder %s28, 1
    %p155 = por %p153, %p154
    %p157 = scmp.ne.s32.totalorder %s140, %s156
    %p158 = scmp.eq.s32.totalorder %s28, 0
    %p159 = por %p157, %p158
    %s161 = sadd.s32 %s160, 1
    %p164 = scmp.eq.s32.totalorder %s22, 1
    %p165 = scmp.ne.s32.totalorder %s160, %s162
    %p166 = scmp.eq.s32.totalorder %s22, 0
    %p167 = por %p165, %p166
    %p168 = scmp.ne.s32.totalorder %s160, %s162
    %p169 = scmp.eq.s32.totalorder %s27, 1
    %p170 = por %p168, %p169
    %p171 = scmp.ne.s32.totalorder %s162, %s163
    %p172 = scmp.eq.s32.totalorder %s27, 0
    %p173 = por %p171, %p172
    %p174 = scmp.ne.s32.totalorder %s162, %s163
    %p175 = scmp.eq.s32.totalorder %s28, 1
    %p176 = por %p174, %p175
    %p178 = scmp.ne.s32.totalorder %s163, %s177
    %p179 = scmp.eq.s32.totalorder %s28, 0
    %p180 = por %p178, %p179
    %s182 = sadd.s32 %s181, 1
    %p185 = scmp.eq.s32.totalorder %s22, 1
    %p186 = scmp.ne.s32.totalorder %s181, %s183
    %p187 = scmp.eq.s32.totalorder %s22, 0
    %p188 = por %p186, %p187
    %p189 = scmp.ne.s32.totalorder %s181, %s183
    %p190 = scmp.eq.s32.totalorder %s27, 1
    %p191 = por %p189, %p190
    %p192 = scmp.ne.s32.totalorder %s183, %s184
    %p193 = scmp.eq.s32.totalorder %s27, 0
    %p194 = por %p192, %p193
    %p195 = scmp.ne.s32.totalorder %s183, %s184
    %p196 = scmp.eq.s32.totalorder %s28, 1
    %p197 = por %p195, %p196
    %p199 = scmp.ne.s32.totalorder %s184, %s198
    %p200 = scmp.eq.s32.totalorder %s28, 0
    %p201 = por %p199, %p200
    %s203 = sadd.s32 %s202, 1
    %p206 = scmp.eq.s32.totalorder %s22, 1
    %p207 = scmp.ne.s32.totalorder %s202, %s204
    %p208 = scmp.eq.s32.totalorder %s22, 0
    %p209 = por %p207, %p208
    %p210 = scmp.ne.s32.totalorder %s202, %s204
    %p211 = scmp.eq.s32.totalorder %s27, 1
    %p212 = por %p210, %p211
    %p213 = scmp.ne.s32.totalorder %s204, %s205
    %p214 = scmp.eq.s32.totalorder %s27, 0
    %p215 = por %p213, %p214
    %p216 = scmp.ne.s32.totalorder %s204, %s205
    %p217 = scmp.eq.s32.totalorder %s28, 1
    %p218 = por %p216, %p217
    %p220 = scmp.ne.s32.totalorder %s205, %s219
    %p221 = scmp.eq.s32.totalorder %s28, 0
    %p222 = por %p220, %p221
    %s224 = sadd.s32 %s223, 1
    %p227 = scmp.eq.s32.totalorder %s22, 1
    %p228 = scmp.ne.s32.totalorder %s223, %s225
    %p229 = scmp.eq.s32.totalorder %s22, 0
    %p230 = por %p228, %p229
    %p231 = scmp.ne.s32.totalorder %s223, %s225
    %p232 = scmp.eq.s32.totalorder %s27, 1
    %p233 = por %p231, %p232
    %p234 = scmp.ne.s32.totalorder %s225, %s226
    %p235 = scmp.eq.s32.totalorder %s27, 0
    %p236 = por %p234, %p235
    %p237 = scmp.ne.s32.totalorder %s225, %s226
    %p238 = scmp.eq.s32.totalorder %s28, 1
    %p239 = por %p237, %p238
    %p241 = scmp.ne.s32.totalorder %s226, %s240
    %p242 = scmp.eq.s32.totalorder %s28, 0
    %p243 = por %p241, %p242
    %s245 = sadd.s32 %s244, 1
    %p248 = scmp.eq.s32.totalorder %s22, 1
    %p249 = scmp.ne.s32.totalorder %s244, %s246
    %p250 = scmp.eq.s32.totalorder %s22, 0
    %p251 = por %p249, %p250
    %p252 = scmp.ne.s32.totalorder %s244, %s246
    %p253 = scmp.eq.s32.totalorder %s27, 1
    %p254 = por %p252, %p253
    %p255 = scmp.ne.s32.totalorder %s246, %s247
    %p256 = scmp.eq.s32.totalorder %s27, 0
    %p257 = por %p255, %p256
    %p258 = scmp.ne.s32.totalorder %s246, %s247
    %p259 = scmp.eq.s32.totalorder %s28, 1
    %p260 = por %p258, %p259
    %p262 = scmp.ne.s32.totalorder %s247, %s261
    %p263 = scmp.eq.s32.totalorder %s28, 0
    %p264 = por %p262, %p263
    %s266 = sadd.s32 %s265, 1
    %p269 = scmp.eq.s32.totalorder %s22, 1
    %p270 = scmp.ne.s32.totalorder %s265, %s267
    %p271 = scmp.eq.s32.totalorder %s22, 0
    %p272 = por %p270, %p271
    %p273 = scmp.ne.s32.totalorder %s265, %s267
    %p274 = scmp.eq.s32.totalorder %s27, 1
    %p275 = por %p273, %p274
    %p276 = scmp.ne.s32.totalorder %s267, %s268
    %p277 = scmp.eq.s32.totalorder %s27, 0
    %p278 = por %p276, %p277
    %p279 = scmp.ne.s32.totalorder %s267, %s268
    %p280 = scmp.eq.s32.totalorder %s28, 1
    %p281 = por %p279, %p280
    %p283 = scmp.ne.s32.totalorder %s268, %s282
    %p284 = scmp.eq.s32.totalorder %s28, 0
    %p285 = por %p283, %p284
    %s287 = sadd.s32 %s286, 1
    %p290 = scmp.eq.s32.totalorder %s22, 1
    %p291 = scmp.ne.s32.totalorder %s286, %s288
    %p292 = scmp.eq.s32.totalorder %s22, 0
    %p293 = por %p291, %p292
    %p294 = scmp.ne.s32.totalorder %s286, %s288
    %p295 = scmp.eq.s32.totalorder %s27, 1
    %p296 = por %p294, %p295
    %p297 = scmp.ne.s32.totalorder %s288, %s289
    %p298 = scmp.eq.s32.totalorder %s27, 0
    %p299 = por %p297, %p298
    %p300 = scmp.ne.s32.totalorder %s288, %s289
    %p301 = scmp.eq.s32.totalorder %s28, 1
    %p302 = por %p300, %p301
    %p304 = scmp.ne.s32.totalorder %s289, %s303
    %p305 = scmp.eq.s32.totalorder %s28, 0
    %p306 = por %p304, %p305
    %s308 = sadd.s32 %s307, 1
    %p311 = scmp.eq.s32.totalorder %s22, 1
    %p312 = scmp.ne.s32.totalorder %s307, %s309
    %p313 = scmp.eq.s32.totalorder %s22, 0
    %p314 = por %p312, %p313
    %p315 = scmp.ne.s32.totalorder %s307, %s309
    %p316 = scmp.eq.s32.totalorder %s27, 1
    %p317 = por %p315, %p316
    %p318 = scmp.ne.s32.totalorder %s309, %s310
    %p319 = scmp.eq.s32.totalorder %s27, 0
    %p320 = por %p318, %p319
    %p321 = scmp.ne.s32.totalorder %s309, %s310
    %p322 = scmp.eq.s32.totalorder %s28, 1
    %p323 = por %p321, %p322
    %p325 = scmp.ne.s32.totalorder %s310, %s324
    %p326 = scmp.eq.s32.totalorder %s28, 0
    %p327 = por %p325, %p326
    %s329 = sadd.s32 %s328, 1
    %p332 = scmp.eq.s32.totalorder %s22, 1
    %p333 = scmp.ne.s32.totalorder %s328, %s330
    %p334 = scmp.eq.s32.totalorder %s22, 0
    %p335 = por %p333, %p334
    %p336 = scmp.ne.s32.totalorder %s328, %s330
    %p337 = scmp.eq.s32.totalorder %s27, 1
    %p338 = por %p336, %p337
    %p339 = scmp.ne.s32.totalorder %s330, %s331
    %p340 = scmp.eq.s32.totalorder %s27, 0
    %p341 = por %p339, %p340
    %p342 = scmp.ne.s32.totalorder %s330, %s331
    %p343 = scmp.eq.s32.totalorder %s28, 1
    %p344 = por %p342, %p343
    %p346 = scmp.ne.s32.totalorder %s331, %s345
    %p347 = scmp.eq.s32.totalorder %s28, 0
    %p348 = por %p346, %p347
    %s350 = sadd.s32 %s349, 1
    %p353 = scmp.eq.s32.totalorder %s22, 1
    %p354 = scmp.ne.s32.totalorder %s349, %s351
    %p355 = scmp.eq.s32.totalorder %s22, 0
    %p356 = por %p354, %p355
    %p357 = scmp.ne.s32.totalorder %s349, %s351
    %p358 = scmp.eq.s32.totalorder %s27, 1
    %p359 = por %p357, %p358
    %p360 = scmp.ne.s32.totalorder %s351, %s352
    %p361 = scmp.eq.s32.totalorder %s27, 0
    %p362 = por %p360, %p361
    %p363 = scmp.ne.s32.totalorder %s351, %s352
    %p364 = scmp.eq.s32.totalorder %s28, 1
    %p365 = por %p363, %p364
    %p367 = scmp.ne.s32.totalorder %s352, %s366
    %p368 = scmp.eq.s32.totalorder %s28, 0
    %p369 = por %p367, %p368
    %s371 = sadd.s32 %s370, 1
    %p374 = scmp.eq.s32.totalorder %s22, 1
    %p375 = scmp.ne.s32.totalorder %s370, %s372
    %p376 = scmp.eq.s32.totalorder %s22, 0
    %p377 = por %p375, %p376
    %p378 = scmp.ne.s32.totalorder %s370, %s372
    %p379 = scmp.eq.s32.totalorder %s27, 1
    %p380 = por %p378, %p379
    %p381 = scmp.ne.s32.totalorder %s372, %s373
    %p382 = scmp.eq.s32.totalorder %s27, 0
    %p383 = por %p381, %p382
    %p384 = scmp.ne.s32.totalorder %s372, %s373
    %p385 = scmp.eq.s32.totalorder %s28, 1
    %p386 = por %p384, %p385
    %p388 = scmp.ne.s32.totalorder %s373, %s387
    %p389 = scmp.eq.s32.totalorder %s28, 0
    %p390 = por %p388, %p389
    %s391 = ssub.s32 %s22, %s29
    %p392 = scmp.eq.s32.totalorder %s391, 0
    %s394 = sadd.s32 %s393, 1
    %s395 = scalar_select %p392, %s393, %s394
    %p398 = pneg %p392
    %p399 = scmp.eq.s32.totalorder %s22, 1
    %p400 = por %p398, %p399
    %p401 = scmp.ne.s32.totalorder %s393, %s396
    %p402 = scmp.eq.s32.totalorder %s22, 0
    %p403 = por %p401, %p402
    %p404 = scmp.ne.s32.totalorder %s393, %s396
    %p405 = scmp.eq.s32.totalorder %s27, 1
    %p406 = por %p404, %p405
    %p407 = scmp.ne.s32.totalorder %s396, %s397
    %p408 = scmp.eq.s32.totalorder %s27, 0
    %p409 = por %p407, %p408
    %p410 = scmp.ne.s32.totalorder %s396, %s397
    %p411 = scmp.eq.s32.totalorder %s28, 1
    %p412 = por %p410, %p411
    %p414 = scmp.ne.s32.totalorder %s397, %s413
    %p415 = scmp.eq.s32.totalorder %s28, 0
    %p416 = por %p414, %p415
    %p417 = scmp.le.s32.totalorder 1, %s22
    %p418 = scmp.lt.s32.totalorder %s22, 3
    %p419 = pnand %p417, %p418
    %p420 = pneg %p419
    // Predicated region
    $region9: #{forward.1} parent=5 // pred_check
      _
    $region10: #{forward.1} parent=5 // pred_check_branch
      %422 = sbr.rel (%p419) target = $region12
    $region11: #{forward.1} parent=5 // pred_region
      %s423 = ssub.s32 %s22, 1
      // Predicated region
      $region13: #{forward.1} parent=11 // pred_check
        %p424 = pneg %p173
      $region14: #{forward.1} parent=11 // pred_check_branch
        %426 = sbr.rel (%p424) target = $region16
      $region15: #{forward.1} parent=11 // pred_region
        _
      $region16: #{forward.1} parent=11 // pred_fallthru
        _
      // Predicated region
      $region17: #{forward.1} parent=11 // pred_check
        %p427 = pneg %p194
      $region18: #{forward.1} parent=11 // pred_check_branch
        %429 = sbr.rel (%p427) target = $region20
      $region19: #{forward.1} parent=11 // pred_region
        _
      $region20: #{forward.1} parent=11 // pred_fallthru
        _
      // Predicated region
      $region21: #{forward.1} parent=11 // pred_check
        %p430 = pneg %p215
      $region22: #{forward.1} parent=11 // pred_check_branch
        %432 = sbr.rel (%p430) target = $region24
      $region23: #{forward.1} parent=11 // pred_region
        _
      $region24: #{forward.1} parent=11 // pred_fallthru
        _
      // Predicated region
      $region25: #{forward.1} parent=11 // pred_check
        %p433 = pneg %p236
      $region26: #{forward.1} parent=11 // pred_check_branch
        %435 = sbr.rel (%p433) target = $region28
      $region27: #{forward.1} parent=11 // pred_region
        _
      $region28: #{forward.1} parent=11 // pred_fallthru
        _
      // Predicated region
      $region29: #{forward.1} parent=11 // pred_check
        %p436 = pneg %p257
      $region30: #{forward.1} parent=11 // pred_check_branch
        %438 = sbr.rel (%p436) target = $region32
      $region31: #{forward.1} parent=11 // pred_region
        _
      $region32: #{forward.1} parent=11 // pred_fallthru
        _
      // Predicated region
      $region33: #{forward.1} parent=11 // pred_check
        %p439 = pneg %p278
      $region34: #{forward.1} parent=11 // pred_check_branch
        %441 = sbr.rel (%p439) target = $region36
      $region35: #{forward.1} parent=11 // pred_region
        _
      $region36: #{forward.1} parent=11 // pred_fallthru
        _
      // Predicated region
      $region37: #{forward.1} parent=11 // pred_check
        %p442 = pneg %p299
      $region38: #{forward.1} parent=11 // pred_check_branch
        %444 = sbr.rel (%p442) target = $region40
      $region39: #{forward.1} parent=11 // pred_region
        _
      $region40: #{forward.1} parent=11 // pred_fallthru
        _
      // Predicated region
      $region41: #{forward.1} parent=11 // pred_check
        %p445 = pneg %p320
      $region42: #{forward.1} parent=11 // pred_check_branch
        %447 = sbr.rel (%p445) target = $region44
      $region43: #{forward.1} parent=11 // pred_region
        _
      $region44: #{forward.1} parent=11 // pred_fallthru
        _
      // Predicated region
      $region45: #{forward.1} parent=11 // pred_check
        %p448 = pneg %p341
      $region46: #{forward.1} parent=11 // pred_check_branch
        %450 = sbr.rel (%p448) target = $region48
      $region47: #{forward.1} parent=11 // pred_region
        _
      $region48: #{forward.1} parent=11 // pred_fallthru
        _
      // Predicated region
      $region49: #{forward.1} parent=11 // pred_check
        %p451 = pneg %p362
      $region50: #{forward.1} parent=11 // pred_check_branch
        %453 = sbr.rel (%p451) target = $region52
      $region51: #{forward.1} parent=11 // pred_region
        _
      $region52: #{forward.1} parent=11 // pred_fallthru
        _
      // Predicated region
      $region53: #{forward.1} parent=11 // pred_check
        %p454 = pneg %p383
      $region54: #{forward.1} parent=11 // pred_check_branch
        %456 = sbr.rel (%p454) target = $region56
      $region55: #{forward.1} parent=11 // pred_region
        _
      $region56: #{forward.1} parent=11 // pred_fallthru
        _
    $region12: #{forward.1} parent=5 // pred_fallthru
      _
    %p457 = scmp.lt.s32.totalorder %s22, 2
    // Predicated region
    $region57: #{forward.1} parent=5 // pred_check
      %p458 = pneg %p457
    $region58: #{forward.1} parent=5 // pred_check_branch
      %460 = sbr.rel (%p458) target = $region60
    $region59: #{forward.1} parent=5 // pred_region
      // Predicated region
      $region61: #{forward.1} parent=59 // pred_check
        %p461 = pneg %p42
      $region62: #{forward.1} parent=59 // pred_check_branch
        %463 = sbr.rel (%p461) target = $region64
      $region63: #{forward.1} parent=59 // pred_region
        %p464 = scmp.lt.s32.totalorder %s22, 1
        %s465 = scalar_select %p464, %s22, 1
        %s466 = smul.addr %s465, 3
        %s467 = smul.addr %s466, 8
        %s468 = scalar_lea.vmem %s0, %s467
      $region64: #{forward.1} parent=59 // pred_fallthru
        _
      // Predicated region
      $region65: #{forward.1} parent=59 // pred_check
        %p469 = pneg %p68
      $region66: #{forward.1} parent=59 // pred_check_branch
        %471 = sbr.rel (%p469) target = $region68
      $region67: #{forward.1} parent=59 // pred_region
        %p472 = scmp.lt.s32.totalorder %s22, 1
        %s473 = scalar_select %p472, %s22, 1
        %s474 = smul.addr %s473, 8
        %s475 = scalar_lea.vmem %s1, %s474
      $region68: #{forward.1} parent=59 // pred_fallthru
        _
      // Predicated region
      $region69: #{forward.1} parent=59 // pred_check
        %p476 = pneg %p94
      $region70: #{forward.1} parent=59 // pred_check_branch
        %478 = sbr.rel (%p476) target = $region72
      $region71: #{forward.1} parent=59 // pred_region
        %p479 = scmp.lt.s32.totalorder %s22, 1
        %s480 = scalar_select %p479, %s22, 1
        %s481 = smul.addr %s480, 6
        %s482 = smul.addr %s481, 4
        %s483 = scalar_lea.vmem %s2, %s482
      $region72: #{forward.1} parent=59 // pred_fallthru
        _
      // Predicated region
      $region73: #{forward.1} parent=59 // pred_check
        %p484 = pneg %p120
      $region74: #{forward.1} parent=59 // pred_check_branch
        %486 = sbr.rel (%p484) target = $region76
      $region75: #{forward.1} parent=59 // pred_region
        %p487 = scmp.lt.s32.totalorder %s22, 1
        %s488 = scalar_select %p487, %s22, 1
        %s489 = scalar_lea.vmem %s3, %s488
      $region76: #{forward.1} parent=59 // pred_fallthru
        _
      // Predicated region
      $region77: #{forward.1} parent=59 // pred_check
        %p490 = pneg %p146
      $region78: #{forward.1} parent=59 // pred_check_branch
        %492 = sbr.rel (%p490) target = $region80
      $region79: #{forward.1} parent=59 // pred_region
        %p493 = scmp.lt.s32.totalorder %s22, 1
        %s494 = scalar_select %p493, %s22, 1
        %s495 = scalar_lea.vmem %s4, %s494
      $region80: #{forward.1} parent=59 // pred_fallthru
        _
    $region60: #{forward.1} parent=5 // pred_fallthru
      _
    %p496 = scmp.le.s32.totalorder 1, %s22
    %p497 = scmp.lt.s32.totalorder %s22, 3
    %p498 = pnand %p496, %p497
    %p499 = pneg %p498
    // Predicated region
    $region81: #{forward.1} parent=5 // pred_check
      _
    $region82: #{forward.1} parent=5 // pred_check_branch
      %501 = sbr.rel (%p498) target = $region84
    $region83: #{forward.1} parent=5 // pred_region
      %s502 = ssub.s32 %s22, 1
      %p503 = scmp.lt.s32.totalorder %s27, 1
      %s504 = scalar_select %p503, %s27, 1
      %s505 = smul.addr %s504, 3
      %s506 = smul.addr %s505, 8
      %s507 = scalar_lea.vmem %s0, %s506
      %p508 = pneg %p48
      %p509 = pneg %p45
      %p510 = scmp.lt.s32.totalorder %s27, 1
      %s511 = scalar_select %p510, %s27, 1
      %s512 = smul.addr %s511, 8
      %s513 = scalar_lea.vmem %s1, %s512
      %p514 = pneg %p74
      %p515 = pneg %p71
      %p516 = scmp.lt.s32.totalorder %s27, 1
      %s517 = scalar_select %p516, %s27, 1
      %s518 = smul.addr %s517, 6
      %s519 = smul.addr %s518, 4
      %s520 = scalar_lea.vmem %s2, %s519
      %p521 = pneg %p100
      %p522 = pneg %p97
      %p523 = scmp.lt.s32.totalorder %s27, 1
      %s524 = scalar_select %p523, %s27, 1
      %s525 = scalar_lea.vmem %s3, %s524
      %p526 = pneg %p126
      %p527 = pneg %p123
      %p528 = scmp.lt.s32.totalorder %s27, 1
      %s529 = scalar_select %p528, %s27, 1
      %s530 = scalar_lea.vmem %s4, %s529
      %p531 = pneg %p152
      %p532 = pneg %p149
      %p533 = pneg %p173
      %p534 = pneg %p170
      %p535 = pneg %p194
      %p536 = pneg %p191
      %p537 = pneg %p215
      %p538 = pneg %p212
      %p539 = pneg %p236
      %p540 = pneg %p233
      %p541 = pneg %p257
      %p542 = pneg %p254
      %p543 = pneg %p278
      %p544 = pneg %p275
      %p545 = pneg %p299
      %p546 = pneg %p296
      %p547 = pneg %p320
      %p548 = pneg %p317
      %p549 = pneg %p341
      %p550 = pneg %p338
      %p551 = pneg %p362
      %p552 = pneg %p359
      %p553 = pneg %p383
      %p554 = pneg %p380
      %p555 = pneg %p409
      %p556 = pneg %p406
      %p557 = scmp.lt.s32.totalorder %s27, 1
      %s558 = scalar_select %p557, %s27, 1
      %s559 = smul.addr %s558, 8
      %s560 = scalar_lea.vmem %s16, %s559
      %p561 = scmp.lt.s32.totalorder %s27, 1
      %s562 = scalar_select %p561, %s27, 1
      %s563 = smul.addr %s562, 3
      %s564 = smul.addr %s563, 8
      %s565 = scalar_lea.vmem %s0, %s564
      %p566 = scmp.lt.s32.totalorder %s27, 1
      %s567 = scalar_select %p566, %s27, 1
      %s568 = smul.addr %s567, 8
      %s569 = scalar_lea.vmem %s1, %s568
      %p570 = scmp.lt.s32.totalorder %s27, 1
      %s571 = scalar_select %p570, %s27, 1
      %s572 = smul.addr %s571, 6
      %s573 = smul.addr %s572, 4
      %s574 = scalar_lea.vmem %s2, %s573
      %p575 = scmp.lt.s32.totalorder %s27, 1
      %s576 = scalar_select %p575, %s27, 1
      %s577 = scalar_lea.vmem %s3, %s576
      %p578 = scmp.lt.s32.totalorder %s27, 1
      %s579 = scalar_select %p578, %s27, 1
      %s580 = scalar_lea.vmem %s4, %s579
      %p581 = scmp.lt.s32.totalorder %s27, 1
      %s582 = scalar_select %p581, %s27, 1
      %s583 = smul.addr %s582, 8
      %s584 = scalar_lea.vmem %s16, %s583
      %v586 = vlaneseq
      %v587 = vand.u32 %v586, 127
      %vm588 = vcmp.ge.s32.totalorder %v587, 0
      %vm589 = vcmp.lt.s32.totalorder %v587, 16
      %vm590 = vmand %vm588, %vm589
      %v591 = vsel %vm590, 1, 0
      %v592 = vcvt.s32.f32 %v591
      %vm593 = vcmp.ge.s32.totalorder %v587, 16
      %vm594 = vcmp.lt.s32.totalorder %v587, 32
      %vm595 = vmand %vm593, %vm594
      %v596 = vsel %vm595, 1, 0
      %v597 = vcvt.s32.f32 %v596
      %v598 = vld [vmem:[%s565] sm:$0xff]
      %v599 = vld [vmem:[%s565 + $0x8] sm:$0xff]
      %v600 = vld [vmem:[%s565 + $0x10] sm:$0xff]
      %vm601 = vcmask 64512
      %v602 = vsel %vm601, %v598, 0.0
      %603 = vadd.xlane.f32.xlu0 %v602
      %v604 = vpop.xlane.xlu0 %603
      %v605 = vsel %vm601, %v599, 0.0
      %606 = vadd.xlane.f32.xlu0 %v605
      %v607 = vpop.xlane.xlu0 %606
      %v608 = vsel %vm601, %v600, 0.0
      %609 = vadd.xlane.f32.xlu0 %v608
      %v610 = vpop.xlane.xlu0 %609
      %vm611 = vcmp.eq.f32.partialorder %v604, 0.0
      %vm612 = vcmp.eq.f32.partialorder %v607, 0.0
      %vm613 = vcmp.eq.f32.partialorder %v610, 0.0
      %v614 = vsel %vm611, 1e-06, %v604
      %v615 = vsel %vm612, 1e-06, %v607
      %v616 = vsel %vm613, 1e-06, %v610
      %v617 = vrcp.pop %v614
      %v618 = vmul.f32 %v598, %v617
      %v619 = vrcp.pop %v615
      %v620 = vmul.f32 %v599, %v619
      %v621 = vrcp.pop %v616
      %v622 = vmul.f32 %v600, %v621
      %v623 = vld [vmem:[%s569] sm:$0xff]
      %v624 = vld [vmem:[%s5] sm:$0xff]
      %v625 = vld [vmem:[%s5 + $0x8] sm:$0xff]
      %v626 = vld [vmem:[%s5 + $0x10] sm:$0xff]
      %v627 = vld [vmem:[%s5 + $0x18] sm:$0xff]
      %v628 = vpack.c.bf16 %v623, %v623
      %v629 = vpack.c.bf16 %v625, %v624
      %v630 = vpack.c.bf16 %v627, %v626
      %vm631 = vcmask 261120
      %v633 = vsel %vm631, %v628, 0
      %635 = vmatprep.subr.bf16.mxu0 0
      %636 = vmatpush1.bf16.msra.mxu0 %v629
      %637 = vmatprep.subr.bf16.mxu0 0
      %638 = vmatpush1.bf16.msra.mxu0 %v630
      %639 = vmatprep.subr.bf16.mxu0 0
      %640 = vmatpush1.bf16.msra.mxu0 0
      %641 = vmatprep.subr.bf16.mxu0 0
      %642 = vmatpush1.bf16.msra.mxu0 0
      %643 = vmatprep.subr.bf16.mxu0 0
      %644 = vmatpush1.bf16.msra.mxu0 0
      %645 = vmatprep.subr.bf16.mxu0 0
      %646 = vmatpush1.bf16.msra.mxu0 0
      %647 = vmatprep.subr.bf16.mxu0 0
      %648 = vmatpush1.bf16.msra.mxu0 0
      %649 = vmatprep.subr.bf16.mxu0 0
      %650 = vmatpush1.bf16.msra.mxu0 0
      %651 = vmatprep.subr.bf16.mxu0 0
      %652 = vmatpush1.bf16.msra.mxu0 0
      %653 = vmatprep.subr.bf16.mxu0 0
      %654 = vmatpush1.bf16.msra.mxu0 0
      %655 = vmatprep.subr.bf16.mxu0 0
      %656 = vmatpush1.bf16.msra.mxu0 0
      %657 = vmatprep.subr.bf16.mxu0 0
      %658 = vmatpush1.bf16.msra.mxu0 0
      %659 = vmatprep.subr.bf16.mxu0 0
      %660 = vmatpush1.bf16.msra.mxu0 0
      %661 = vmatprep.subr.bf16.mxu0 0
      %662 = vmatpush1.bf16.msra.mxu0 0
      %663 = vmatprep.subr.bf16.mxu0 0
      %664 = vmatpush1.bf16.msra.mxu0 0
      %665 = vmatprep.subr.bf16.mxu0 0
      %666 = vmatpush1.bf16.msra.mxu0 0
      %667 = vmatprep.mubr.bf16.mxu0 0
      %668 = vmatmul.mubr.bf16.gmra.mrb[0].mxu0 %v633
      %v669 = vpop.f32.mrb[0].mxu0
      %v670 = vadd.f32 0.0, %v669
      %v671 = vpop.f32.mrb[0].mxu0
      %v672 = vpop.f32.mrb[0].mxu0
      %v673 = vpop.f32.mrb[0].mxu0
      %674 = vdwg.mxu0
      %v675 = vpack.c.bf16 %v618, %v618
      %v676 = vpack.c.bf16 %v670, %v670
      %v677 = vld [vmem:[%s8] sm:$0x1]
      %v678 = vlaneseq
      %v679 = vshrl.u32 %v678, 7
      %v680 = vsub.s32 0, %v679
      %v681 = vrot.slane %v677, %v680
      %v683 = vsel %vm601, %v675, 0
      %vm685 = vcmask 1043456
      %v687 = vsel %vm685, %v676, 0
      %689 = vmatprep.subr.bf16.mxu0 0
      %690 = vmatpush1.bf16.msra.mxu0 %v687
      %691 = vmatprep.subr.bf16.mxu0 0
      %692 = vmatpush1.bf16.msra.mxu0 0
      %693 = vmatprep.subr.bf16.mxu0 0
      %694 = vmatpush1.bf16.msra.mxu0 0
      %695 = vmatprep.subr.bf16.mxu0 0
      %696 = vmatpush1.bf16.msra.mxu0 0
      %697 = vmatprep.subr.bf16.mxu0 0
      %698 = vmatpush1.bf16.msra.mxu0 0
      %699 = vmatprep.subr.bf16.mxu0 0
      %700 = vmatpush1.bf16.msra.mxu0 0
      %701 = vmatprep.subr.bf16.mxu0 0
      %702 = vmatpush1.bf16.msra.mxu0 0
      %703 = vmatprep.subr.bf16.mxu0 0
      %704 = vmatpush1.bf16.msra.mxu0 0
      %705 = vmatprep.subr.bf16.mxu0 0
      %706 = vmatpush1.bf16.msra.mxu0 0
      %707 = vmatprep.subr.bf16.mxu0 0
      %708 = vmatpush1.bf16.msra.mxu0 0
      %709 = vmatprep.subr.bf16.mxu0 0
      %710 = vmatpush1.bf16.msra.mxu0 0
      %711 = vmatprep.subr.bf16.mxu0 0
      %712 = vmatpush1.bf16.msra.mxu0 0
      %713 = vmatprep.subr.bf16.mxu0 0
      %714 = vmatpush1.bf16.msra.mxu0 0
      %715 = vmatprep.subr.bf16.mxu0 0
      %716 = vmatpush1.bf16.msra.mxu0 0
      %717 = vmatprep.subr.bf16.mxu0 0
      %718 = vmatpush1.bf16.msra.mxu0 0
      %719 = vmatprep.subr.bf16.mxu0 0
      %720 = vmatpush1.bf16.msra.mxu0 0
      %721 = vmatprep.mubr.bf16.mxu0 0
      %722 = vmatmul.mubr.bf16.gmra.mrb[0].mxu0 %v683
      %v723 = vpop.f32.mrb[0].mxu0
      %v724 = vadd.f32 %v681, %v723
      %v725 = vpop.f32.mrb[0].mxu0
      %v726 = vpop.f32.mrb[0].mxu0
      %v727 = vpop.f32.mrb[0].mxu0
      %728 = vdwg.mxu0
      %v729 = vmax.f32 %v724, 0.0
      %v730 = vld [vmem:[%s6] sm:$0xff]
      %v731 = vld [vmem:[%s6 + $0x8] sm:$0xff]
      %v732 = vld [vmem:[%s6 + $0x10] sm:$0xff]
      %v733 = vld [vmem:[%s6 + $0x18] sm:$0xff]
      %v734 = vpack.c.bf16 %v729, %v729
      %v735 = vpack.c.bf16 %v731, %v730
      %v736 = vpack.c.bf16 %v733, %v732
      %v738 = vsel %vm631, %v734, 0
      %740 = vmatprep.subr.bf16.mxu0 0
      %741 = vmatpush1.bf16.msra.mxu0 %v735
      %742 = vmatprep.subr.bf16.mxu0 0
      %743 = vmatpush1.bf16.msra.mxu0 %v736
      %744 = vmatprep.subr.bf16.mxu0 0
      %745 = vmatpush1.bf16.msra.mxu0 0
      %746 = vmatprep.subr.bf16.mxu0 0
      %747 = vmatpush1.bf16.msra.mxu0 0
      %748 = vmatprep.subr.bf16.mxu0 0
      %749 = vmatpush1.bf16.msra.mxu0 0
      %750 = vmatprep.subr.bf16.mxu0 0
      %751 = vmatpush1.bf16.msra.mxu0 0
      %752 = vmatprep.subr.bf16.mxu0 0
      %753 = vmatpush1.bf16.msra.mxu0 0
      %754 = vmatprep.subr.bf16.mxu0 0
      %755 = vmatpush1.bf16.msra.mxu0 0
      %756 = vmatprep.subr.bf16.mxu0 0
      %757 = vmatpush1.bf16.msra.mxu0 0
      %758 = vmatprep.subr.bf16.mxu0 0
      %759 = vmatpush1.bf16.msra.mxu0 0
      %760 = vmatprep.subr.bf16.mxu0 0
      %761 = vmatpush1.bf16.msra.mxu0 0
      %762 = vmatprep.subr.bf16.mxu0 0
      %763 = vmatpush1.bf16.msra.mxu0 0
      %764 = vmatprep.subr.bf16.mxu0 0
      %765 = vmatpush1.bf16.msra.mxu0 0
      %766 = vmatprep.subr.bf16.mxu0 0
      %767 = vmatpush1.bf16.msra.mxu0 0
      %768 = vmatprep.subr.bf16.mxu0 0
      %769 = vmatpush1.bf16.msra.mxu0 0
      %770 = vmatprep.subr.bf16.mxu0 0
      %771 = vmatpush1.bf16.msra.mxu0 0
      %772 = vmatprep.mubr.bf16.mxu0 0
      %773 = vmatmul.mubr.bf16.gmra.mrb[0].mxu0 %v738
      %v774 = vpop.f32.mrb[0].mxu0
      %v775 = vadd.f32 0.0, %v774
      %v776 = vpop.f32.mrb[0].mxu0
      %v777 = vpop.f32.mrb[0].mxu0
      %v778 = vpop.f32.mrb[0].mxu0
      %779 = vdwg.mxu0
      %v780 = vpack.c.bf16 %v775, %v775
      %v781 = vld [vmem:[%s8 + $0x3] sm:$0x1]
      %v782 = vlaneseq
      %v783 = vshrl.u32 %v782, 7
      %v784 = vsub.s32 0, %v783
      %v785 = vrot.slane %v781, %v784
      %v787 = vsel %vm685, %v780, 0
      %789 = vmatprep.subr.bf16.mxu0 0
      %790 = vmatpush1.bf16.msra.mxu0 %v787
      %791 = vmatprep.subr.bf16.mxu0 0
      %792 = vmatpush1.bf16.msra.mxu0 0
      %793 = vmatprep.subr.bf16.mxu0 0
      %794 = vmatpush1.bf16.msra.mxu0 0
      %795 = vmatprep.subr.bf16.mxu0 0
      %796 = vmatpush1.bf16.msra.mxu0 0
      %797 = vmatprep.subr.bf16.mxu0 0
      %798 = vmatpush1.bf16.msra.mxu0 0
      %799 = vmatprep.subr.bf16.mxu0 0
      %800 = vmatpush1.bf16.msra.mxu0 0
      %801 = vmatprep.subr.bf16.mxu0 0
      %802 = vmatpush1.bf16.msra.mxu0 0
      %803 = vmatprep.subr.bf16.mxu0 0
      %804 = vmatpush1.bf16.msra.mxu0 0
      %805 = vmatprep.subr.bf16.mxu0 0
      %806 = vmatpush1.bf16.msra.mxu0 0
      %807 = vmatprep.subr.bf16.mxu0 0
      %808 = vmatpush1.bf16.msra.mxu0 0
      %809 = vmatprep.subr.bf16.mxu0 0
      %810 = vmatpush1.bf16.msra.mxu0 0
      %811 = vmatprep.subr.bf16.mxu0 0
      %812 = vmatpush1.bf16.msra.mxu0 0
      %813 = vmatprep.subr.bf16.mxu0 0
      %814 = vmatpush1.bf16.msra.mxu0 0
      %815 = vmatprep.subr.bf16.mxu0 0
      %816 = vmatpush1.bf16.msra.mxu0 0
      %817 = vmatprep.subr.bf16.mxu0 0
      %818 = vmatpush1.bf16.msra.mxu0 0
      %819 = vmatprep.subr.bf16.mxu0 0
      %820 = vmatpush1.bf16.msra.mxu0 0
      %821 = vmatprep.mubr.bf16.mxu0 0
      %822 = vmatmul.mubr.bf16.gmra.mrb[0].mxu0 %v683
      %v823 = vpop.f32.mrb[0].mxu0
      %v824 = vadd.f32 %v785, %v823
      %v825 = vpop.f32.mrb[0].mxu0
      %v826 = vpop.f32.mrb[0].mxu0
      %v827 = vpop.f32.mrb[0].mxu0
      %828 = vdwg.mxu0
      %v829 = vmax.f32 %v824, 0.0
      %v830 = vpack.c.bf16 %v620, %v620
      %v831 = vld [vmem:[%s8 + $0x1] sm:$0x1]
      %v832 = vlaneseq
      %v833 = vshrl.u32 %v832, 7
      %v834 = vsub.s32 0, %v833
      %v835 = vrot.slane %v831, %v834
      %837 = vrot.lane.b32.xlu0 %v676, 96
      %v838 = vpop.permute.xlu0 %837
      %v840 = vsel %vm601, %v830, 0
      %v843 = vsel %vm685, %v838, 0
      %845 = vmatprep.subr.bf16.mxu0 0
      %846 = vmatpush1.bf16.msra.mxu0 %v843
      %847 = vmatprep.subr.bf16.mxu0 0
      %848 = vmatpush1.bf16.msra.mxu0 0
      %849 = vmatprep.subr.bf16.mxu0 0
      %850 = vmatpush1.bf16.msra.mxu0 0
      %851 = vmatprep.subr.bf16.mxu0 0
      %852 = vmatpush1.bf16.msra.mxu0 0
      %853 = vmatprep.subr.bf16.mxu0 0
      %854 = vmatpush1.bf16.msra.mxu0 0
      %855 = vmatprep.subr.bf16.mxu0 0
      %856 = vmatpush1.bf16.msra.mxu0 0
      %857 = vmatprep.subr.bf16.mxu0 0
      %858 = vmatpush1.bf16.msra.mxu0 0
      %859 = vmatprep.subr.bf16.mxu0 0
      %860 = vmatpush1.bf16.msra.mxu0 0
      %861 = vmatprep.subr.bf16.mxu0 0
      %862 = vmatpush1.bf16.msra.mxu0 0
      %863 = vmatprep.subr.bf16.mxu0 0
      %864 = vmatpush1.bf16.msra.mxu0 0
      %865 = vmatprep.subr.bf16.mxu0 0
      %866 = vmatpush1.bf16.msra.mxu0 0
      %867 = vmatprep.subr.bf16.mxu0 0
      %868 = vmatpush1.bf16.msra.mxu0 0
      %869 = vmatprep.subr.bf16.mxu0 0
      %870 = vmatpush1.bf16.msra.mxu0 0
      %871 = vmatprep.subr.bf16.mxu0 0
      %872 = vmatpush1.bf16.msra.mxu0 0
      %873 = vmatprep.subr.bf16.mxu0 0
      %874 = vmatpush1.bf16.msra.mxu0 0
      %875 = vmatprep.subr.bf16.mxu0 0
      %876 = vmatpush1.bf16.msra.mxu0 0
      %877 = vmatprep.mubr.bf16.mxu0 0
      %878 = vmatmul.mubr.bf16.gmra.mrb[0].mxu0 %v840
      %v879 = vpop.f32.mrb[0].mxu0
      %v880 = vadd.f32 %v835, %v879
      %v881 = vpop.f32.mrb[0].mxu0
      %v882 = vpop.f32.mrb[0].mxu0
      %v883 = vpop.f32.mrb[0].mxu0
      %884 = vdwg.mxu0
      %v885 = vmax.f32 %v880, 0.0
      %s886 = scalar_lea.vmem %s6, 32
      %v887 = vld [vmem:[%s886] sm:$0xff]
      %v888 = vld [vmem:[%s886 + $0x8] sm:$0xff]
      %v889 = vld [vmem:[%s886 + $0x10] sm:$0xff]
      %v890 = vld [vmem:[%s886 + $0x18] sm:$0xff]
      %v891 = vpack.c.bf16 %v885, %v885
      %v892 = vpack.c.bf16 %v888, %v887
      %v893 = vpack.c.bf16 %v890, %v889
      %v895 = vsel %vm631, %v891, 0
      %897 = vmatprep.subr.bf16.mxu0 0
      %898 = vmatpush1.bf16.msra.mxu0 %v892
      %899 = vmatprep.subr.bf16.mxu0 0
      %900 = vmatpush1.bf16.msra.mxu0 %v893
      %901 = vmatprep.subr.bf16.mxu0 0
      %902 = vmatpush1.bf16.msra.mxu0 0
      %903 = vmatprep.subr.bf16.mxu0 0
      %904 = vmatpush1.bf16.msra.mxu0 0
      %905 = vmatprep.subr.bf16.mxu0 0
      %906 = vmatpush1.bf16.msra.mxu0 0
      %907 = vmatprep.subr.bf16.mxu0 0
      %908 = vmatpush1.bf16.msra.mxu0 0
      %909 = vmatprep.subr.bf16.mxu0 0
      %910 = vmatpush1.bf16.msra.mxu0 0
      %911 = vmatprep.subr.bf16.mxu0 0
      %912 = vmatpush1.bf16.msra.mxu0 0
      %913 = vmatprep.subr.bf16.mxu0 0
      %914 = vmatpush1.bf16.msra.mxu0 0
      %915 = vmatprep.subr.bf16.mxu0 0
      %916 = vmatpush1.bf16.msra.mxu0 0
      %917 = vmatprep.subr.bf16.mxu0 0
      %918 = vmatpush1.bf16.msra.mxu0 0
      %919 = vmatprep.subr.bf16.mxu0 0
      %920 = vmatpush1.bf16.msra.mxu0 0
      %921 = vmatprep.subr.bf16.mxu0 0
      %922 = vmatpush1.bf16.msra.mxu0 0
      %923 = vmatprep.subr.bf16.mxu0 0
      %924 = vmatpush1.bf16.msra.mxu0 0
      %925 = vmatprep.subr.bf16.mxu0 0
      %926 = vmatpush1.bf16.msra.mxu0 0
      %927 = vmatprep.subr.bf16.mxu0 0
      %928 = vmatpush1.bf16.msra.mxu0 0
      %929 = vmatprep.mubr.bf16.mxu0 0
      %930 = vmatmul.mubr.bf16.gmra.mrb[0].mxu0 %v895
      %v931 = vpop.f32.mrb[0].mxu0
      %v932 = vadd.f32 0.0, %v931
      %v933 = vpop.f32.mrb[0].mxu0
      %v934 = vpop.f32.mrb[0].mxu0
      %v935 = vpop.f32.mrb[0].mxu0
      %936 = vdwg.mxu0
      %v937 = vpack.c.bf16 %v932, %v932
      %v938 = vld [vmem:[%s8 + $0x4] sm:$0x1]
      %v939 = vlaneseq
      %v940 = vshrl.u32 %v939, 7
      %v941 = vsub.s32 0, %v940
      %v942 = vrot.slane %v938, %v941
      %v944 = vsel %vm685, %v937, 0
      %946 = vmatprep.subr.bf16.mxu0 0
      %947 = vmatpush1.bf16.msra.mxu0 %v944
      %948 = vmatprep.subr.bf16.mxu0 0
      %949 = vmatpush1.bf16.msra.mxu0 0
      %950 = vmatprep.subr.bf16.mxu0 0
      %951 = vmatpush1.bf16.msra.mxu0 0
      %952 = vmatprep.subr.bf16.mxu0 0
      %953 = vmatpush1.bf16.msra.mxu0 0
      %954 = vmatprep.subr.bf16.mxu0 0
      %955 = vmatpush1.bf16.msra.mxu0 0
      %956 = vmatprep.subr.bf16.mxu0 0
      %957 = vmatpush1.bf16.msra.mxu0 0
      %958 = vmatprep.subr.bf16.mxu0 0
      %959 = vmatpush1.bf16.msra.mxu0 0
      %960 = vmatprep.subr.bf16.mxu0 0
      %961 = vmatpush1.bf16.msra.mxu0 0
      %962 = vmatprep.subr.bf16.mxu0 0
      %963 = vmatpush1.bf16.msra.mxu0 0
      %964 = vmatprep.subr.bf16.mxu0 0
      %965 = vmatpush1.bf16.msra.mxu0 0
      %966 = vmatprep.subr.bf16.mxu0 0
      %967 = vmatpush1.bf16.msra.mxu0 0
      %968 = vmatprep.subr.bf16.mxu0 0
      %969 = vmatpush1.bf16.msra.mxu0 0
      %970 = vmatprep.subr.bf16.mxu0 0
      %971 = vmatpush1.bf16.msra.mxu0 0
      %972 = vmatprep.subr.bf16.mxu0 0
      %973 = vmatpush1.bf16.msra.mxu0 0
      %974 = vmatprep.subr.bf16.mxu0 0
      %975 = vmatpush1.bf16.msra.mxu0 0
      %976 = vmatprep.subr.bf16.mxu0 0
      %977 = vmatpush1.bf16.msra.mxu0 0
      %978 = vmatprep.mubr.bf16.mxu0 0
      %979 = vmatmul.mubr.bf16.gmra.mrb[0].mxu0 %v840
      %v980 = vpop.f32.mrb[0].mxu0
      %v981 = vadd.f32 %v942, %v980
      %v982 = vpop.f32.mrb[0].mxu0
      %v983 = vpop.f32.mrb[0].mxu0
      %v984 = vpop.f32.mrb[0].mxu0
      %985 = vdwg.mxu0
      %v986 = vmax.f32 %v981, 0.0
      %v987 = vpack.c.bf16 %v622, %v622
      %v988 = vld [vmem:[%s8 + $0x2] sm:$0x1]
      %v989 = vlaneseq
      %v990 = vshrl.u32 %v989, 7
      %v991 = vsub.s32 0, %v990
      %v992 = vrot.slane %v988, %v991
      %993 = vrot.lane.b32.xlu0 %v676, 64
      %v994 = vpop.permute.xlu0 %993
      %v996 = vsel %vm601, %v987, 0
      %v999 = vsel %vm685, %v994, 0
      %1001 = vmatprep.subr.bf16.mxu0 0
      %1002 = vmatpush1.bf16.msra.mxu0 %v999
      %1003 = vmatprep.subr.bf16.mxu0 0
      %1004 = vmatpush1.bf16.msra.mxu0 0
      %1005 = vmatprep.subr.bf16.mxu0 0
      %1006 = vmatpush1.bf16.msra.mxu0 0
      %1007 = vmatprep.subr.bf16.mxu0 0
      %1008 = vmatpush1.bf16.msra.mxu0 0
      %1009 = vmatprep.subr.bf16.mxu0 0
      %1010 = vmatpush1.bf16.msra.mxu0 0
      %1011 = vmatprep.subr.bf16.mxu0 0
      %1012 = vmatpush1.bf16.msra.mxu0 0
      %1013 = vmatprep.subr.bf16.mxu0 0
      %1014 = vmatpush1.bf16.msra.mxu0 0
      %1015 = vmatprep.subr.bf16.mxu0 0
      %1016 = vmatpush1.bf16.msra.mxu0 0
      %1017 = vmatprep.subr.bf16.mxu0 0
      %1018 = vmatpush1.bf16.msra.mxu0 0
      %1019 = vmatprep.subr.bf16.mxu0 0
      %1020 = vmatpush1.bf16.msra.mxu0 0
      %1021 = vmatprep.subr.bf16.mxu0 0
      %1022 = vmatpush1.bf16.msra.mxu0 0
      %1023 = vmatprep.subr.bf16.mxu0 0
      %1024 = vmatpush1.bf16.msra.mxu0 0
      %1025 = vmatprep.subr.bf16.mxu0 0
      %1026 = vmatpush1.bf16.msra.mxu0 0
      %1027 = vmatprep.subr.bf16.mxu0 0
      %1028 = vmatpush1.bf16.msra.mxu0 0
      %1029 = vmatprep.subr.bf16.mxu0 0
      %1030 = vmatpush1.bf16.msra.mxu0 0
      %1031 = vmatprep.subr.bf16.mxu0 0
      %1032 = vmatpush1.bf16.msra.mxu0 0
      %1033 = vmatprep.mubr.bf16.mxu0 0
      %1034 = vmatmul.mubr.bf16.gmra.mrb[0].mxu0 %v996
      %v1035 = vpop.f32.mrb[0].mxu0
      %v1036 = vadd.f32 %v992, %v1035
      %v1037 = vpop.f32.mrb[0].mxu0
      %v1038 = vpop.f32.mrb[0].mxu0
      %v1039 = vpop.f32.mrb[0].mxu0
      %1040 = vdwg.mxu0
      %v1041 = vmax.f32 %v1036, 0.0
      %s1042 = scalar_lea.vmem %s6, 64
      %v1043 = vld [vmem:[%s1042] sm:$0xff]
      %v1044 = vld [vmem:[%s1042 + $0x8] sm:$0xff]
      %v1045 = vld [vmem:[%s1042 + $0x10] sm:$0xff]
      %v1046 = vld [vmem:[%s1042 + $0x18] sm:$0xff]
      %v1047 = vpack.c.bf16 %v1041, %v1041
      %v1048 = vpack.c.bf16 %v1044, %v1043
      %v1049 = vpack.c.bf16 %v1046, %v1045
      %v1051 = vsel %vm631, %v1047, 0
      %1053 = vmatprep.subr.bf16.mxu0 0
      %1054 = vmatpush1.bf16.msra.mxu0 %v1048
      %1055 = vmatprep.subr.bf16.mxu0 0
      %1056 = vmatpush1.bf16.msra.mxu0 %v1049
      %1057 = vmatprep.subr.bf16.mxu0 0
      %1058 = vmatpush1.bf16.msra.mxu0 0
      %1059 = vmatprep.subr.bf16.mxu0 0
      %1060 = vmatpush1.bf16.msra.mxu0 0
      %1061 = vmatprep.subr.bf16.mxu0 0
      %1062 = vmatpush1.bf16.msra.mxu0 0
      %1063 = vmatprep.subr.bf16.mxu0 0
      %1064 = vmatpush1.bf16.msra.mxu0 0
      %1065 = vmatprep.subr.bf16.mxu0 0
      %1066 = vmatpush1.bf16.msra.mxu0 0
      %1067 = vmatprep.subr.bf16.mxu0 0
      %1068 = vmatpush1.bf16.msra.mxu0 0
      %1069 = vmatprep.subr.bf16.mxu0 0
      %1070 = vmatpush1.bf16.msra.mxu0 0
      %1071 = vmatprep.subr.bf16.mxu0 0
      %1072 = vmatpush1.bf16.msra.mxu0 0
      %1073 = vmatprep.subr.bf16.mxu0 0
      %1074 = vmatpush1.bf16.msra.mxu0 0
      %1075 = vmatprep.subr.bf16.mxu0 0
      %1076 = vmatpush1.bf16.msra.mxu0 0
      %1077 = vmatprep.subr.bf16.mxu0 0
      %1078 = vmatpush1.bf16.msra.mxu0 0
      %1079 = vmatprep.subr.bf16.mxu0 0
      %1080 = vmatpush1.bf16.msra.mxu0 0
      %1081 = vmatprep.subr.bf16.mxu0 0
      %1082 = vmatpush1.bf16.msra.mxu0 0
      %1083 = vmatprep.subr.bf16.mxu0 0
      %1084 = vmatpush1.bf16.msra.mxu0 0
      %1085 = vmatprep.mubr.bf16.mxu0 0
      %1086 = vmatmul.mubr.bf16.gmra.mrb[0].mxu0 %v1051
      %v1087 = vpop.f32.mrb[0].mxu0
      %v1088 = vadd.f32 0.0, %v1087
      %v1089 = vpop.f32.mrb[0].mxu0
      %v1090 = vpop.f32.mrb[0].mxu0
      %v1091 = vpop.f32.mrb[0].mxu0
      %1092 = vdwg.mxu0
      %v1093 = vpack.c.bf16 %v1088, %v1088
      %v1094 = vld [vmem:[%s8 + $0x5] sm:$0x1]
      %v1095 = vlaneseq
      %v1096 = vshrl.u32 %v1095, 7
      %v1097 = vsub.s32 0, %v1096
      %v1098 = vrot.slane %v1094, %v1097
      %v1100 = vsel %vm685, %v1093, 0
      %1102 = vmatprep.subr.bf16.mxu0 0
      %1103 = vmatpush1.bf16.msra.mxu0 %v1100
      %1104 = vmatprep.subr.bf16.mxu0 0
      %1105 = vmatpush1.bf16.msra.mxu0 0
      %1106 = vmatprep.subr.bf16.mxu0 0
      %1107 = vmatpush1.bf16.msra.mxu0 0
      %1108 = vmatprep.subr.bf16.mxu0 0
      %1109 = vmatpush1.bf16.msra.mxu0 0
      %1110 = vmatprep.subr.bf16.mxu0 0
      %1111 = vmatpush1.bf16.msra.mxu0 0
      %1112 = vmatprep.subr.bf16.mxu0 0
      %1113 = vmatpush1.bf16.msra.mxu0 0
      %1114 = vmatprep.subr.bf16.mxu0 0
      %1115 = vmatpush1.bf16.msra.mxu0 0
      %1116 = vmatprep.subr.bf16.mxu0 0
      %1117 = vmatpush1.bf16.msra.mxu0 0
      %1118 = vmatprep.subr.bf16.mxu0 0
      %1119 = vmatpush1.bf16.msra.mxu0 0
      %1120 = vmatprep.subr.bf16.mxu0 0
      %1121 = vmatpush1.bf16.msra.mxu0 0
      %1122 = vmatprep.subr.bf16.mxu0 0
      %1123 = vmatpush1.bf16.msra.mxu0 0
      %1124 = vmatprep.subr.bf16.mxu0 0
      %1125 = vmatpush1.bf16.msra.mxu0 0
      %1126 = vmatprep.subr.bf16.mxu0 0
      %1127 = vmatpush1.bf16.msra.mxu0 0
      %1128 = vmatprep.subr.bf16.mxu0 0
      %1129 = vmatpush1.bf16.msra.mxu0 0
      %1130 = vmatprep.subr.bf16.mxu0 0
      %1131 = vmatpush1.bf16.msra.mxu0 0
      %1132 = vmatprep.subr.bf16.mxu0 0
      %1133 = vmatpush1.bf16.msra.mxu0 0
      %1134 = vmatprep.mubr.bf16.mxu0 0
      %1135 = vmatmul.mubr.bf16.gmra.mrb[0].mxu0 %v996
      %v1136 = vpop.f32.mrb[0].mxu0
      %v1137 = vadd.f32 %v1098, %v1136
      %v1138 = vpop.f32.mrb[0].mxu0
      %v1139 = vpop.f32.mrb[0].mxu0
      %v1140 = vpop.f32.mrb[0].mxu0
      %1141 = vdwg.mxu0
      %v1142 = vmax.f32 %v1137, 0.0
      %1144 = vrot.lane.b32.xlu0 %v986, 32
      %v1145 = vpop.permute.xlu0 %1144
      %1148 = vrot.lane.b32.xlu0 %v1142, 64
      %v1149 = vpop.permute.xlu0 %1148
      %v1151 = vsel %vm631, %v829, %v1145
      %vm1152 = vcmask 523264
      %v1153 = vsel %vm1152, %v1151, %v1149
      %v1154 = vld [vmem:[%s7] sm:$0xff]
      %v1155 = vld [vmem:[%s7 + $0x8] sm:$0xff]
      %v1156 = vld [vmem:[%s7 + $0x10] sm:$0xff]
      %v1157 = vld [vmem:[%s7 + $0x18] sm:$0xff]
      %v1158 = vld [vmem:[%s7 + $0x20] sm:$0xff]
      %v1159 = vld [vmem:[%s7 + $0x28] sm:$0xff]
      %v1160 = vld [vmem:[%s7 + $0x30] sm:$0xff]
      %v1161 = vld [vmem:[%s7 + $0x38] sm:$0xff]
      %v1162 = vld [vmem:[%s7 + $0x40] sm:$0xff]
      %v1163 = vld [vmem:[%s7 + $0x48] sm:$0xff]
      %v1164 = vld [vmem:[%s7 + $0x50] sm:$0xff]
      %v1165 = vld [vmem:[%s7 + $0x58] sm:$0xff]
      %v1166 = vpack.c.bf16 %v1153, %v1153
      %v1167 = vpack.c.bf16 %v1155, %v1154
      %v1168 = vpack.c.bf16 %v1157, %v1156
      %v1169 = vpack.c.bf16 %v1159, %v1158
      %v1170 = vpack.c.bf16 %v1161, %v1160
      %v1171 = vpack.c.bf16 %v1163, %v1162
      %v1172 = vpack.c.bf16 %v1165, %v1164
      %v1173 = vld [vmem:[%s8 + $0x6] sm:$0x1]
      %v1174 = vlaneseq
      %v1175 = vshrl.u32 %v1174, 7
      %v1176 = vsub.s32 0, %v1175
      %v1177 = vrot.slane %v1173, %v1176
      %vm1178 = vcmask 785408
      %v1180 = vsel %vm1178, %v1166, 0
      %1182 = vmatprep.subr.bf16.mxu0 0
      %1183 = vmatpush1.bf16.msra.mxu0 %v1167
      %1184 = vmatprep.subr.bf16.mxu0 0
      %1185 = vmatpush1.bf16.msra.mxu0 %v1168
      %1186 = vmatprep.subr.bf16.mxu0 0
      %1187 = vmatpush1.bf16.msra.mxu0 %v1169
      %1188 = vmatprep.subr.bf16.mxu0 0
      %1189 = vmatpush1.bf16.msra.mxu0 %v1170
      %1190 = vmatprep.subr.bf16.mxu0 0
      %1191 = vmatpush1.bf16.msra.mxu0 %v1171
      %1192 = vmatprep.subr.bf16.mxu0 0
      %1193 = vmatpush1.bf16.msra.mxu0 %v1172
      %1194 = vmatprep.subr.bf16.mxu0 0
      %1195 = vmatpush1.bf16.msra.mxu0 0
      %1196 = vmatprep.subr.bf16.mxu0 0
      %1197 = vmatpush1.bf16.msra.mxu0 0
      %1198 = vmatprep.subr.bf16.mxu0 0
      %1199 = vmatpush1.bf16.msra.mxu0 0
      %1200 = vmatprep.subr.bf16.mxu0 0
      %1201 = vmatpush1.bf16.msra.mxu0 0
      %1202 = vmatprep.subr.bf16.mxu0 0
      %1203 = vmatpush1.bf16.msra.mxu0 0
      %1204 = vmatprep.subr.bf16.mxu0 0
      %1205 = vmatpush1.bf16.msra.mxu0 0
      %1206 = vmatprep.subr.bf16.mxu0 0
      %1207 = vmatpush1.bf16.msra.mxu0 0
      %1208 = vmatprep.subr.bf16.mxu0 0
      %1209 = vmatpush1.bf16.msra.mxu0 0
      %1210 = vmatprep.subr.bf16.mxu0 0
      %1211 = vmatpush1.bf16.msra.mxu0 0
      %1212 = vmatprep.subr.bf16.mxu0 0
      %1213 = vmatpush1.bf16.msra.mxu0 0
      %1214 = vmatprep.mubr.bf16.mxu0 0
      %1215 = vmatmul.mubr.bf16.gmra.mrb[0].mxu0 %v1180
      %v1216 = vpop.f32.mrb[0].mxu0
      %v1217 = vadd.f32 %v1177, %v1216
      %v1218 = vpop.f32.mrb[0].mxu0
      %v1219 = vpop.f32.mrb[0].mxu0
      %v1220 = vpop.f32.mrb[0].mxu0
      %1221 = vdwg.mxu0
      %v1222 = vld [vmem:[%s574] sm:$0xff]
      %v1223 = vld [vmem:[%s574 + $0x8] sm:$0xff]
      %v1224 = vld [vmem:[%s574 + $0x10] sm:$0xff]
      %v1225 = vld [vmem:[%s9] sm:$0xf]
      %v1226 = vld [vmem:[%s9 + $0x4] sm:$0xf]
      %v1227 = vld [vmem:[%s9 + $0x8] sm:$0xf]
      %v1228 = vld [vmem:[%s9 + $0xc] sm:$0xf]
      %v1229 = vld [vmem:[%s9 + $0x10] sm:$0xf]
      %v1230 = vld [vmem:[%s9 + $0x14] sm:$0xf]
      %v1231 = vld [vmem:[%s9 + $0x18] sm:$0xf]
      %v1232 = vld [vmem:[%s9 + $0x1c] sm:$0xf]
      %v1233 = vld [vmem:[%s9 + $0x20] sm:$0xf]
      %v1234 = vld [vmem:[%s9 + $0x24] sm:$0xf]
      %v1235 = vld [vmem:[%s9 + $0x28] sm:$0xf]
      %v1236 = vld [vmem:[%s9 + $0x2c] sm:$0xf]
      %v1237 = vld [vmem:[%s9 + $0x30] sm:$0xf]
      %v1238 = vld [vmem:[%s9 + $0x34] sm:$0xf]
      %v1239 = vld [vmem:[%s9 + $0x38] sm:$0xf]
      %v1240 = vld [vmem:[%s9 + $0x3c] sm:$0xf]
      %v1241 = vld [vmem:[%s9 + $0x40] sm:$0xf]
      %v1242 = vld [vmem:[%s9 + $0x44] sm:$0xf]
      %v1243 = vld [vmem:[%s9 + $0x48] sm:$0xf]
      %v1244 = vld [vmem:[%s9 + $0x4c] sm:$0xf]
      %v1245 = vld [vmem:[%s9 + $0x50] sm:$0xf]
      %v1246 = vld [vmem:[%s9 + $0x54] sm:$0xf]
      %v1247 = vld [vmem:[%s9 + $0x58] sm:$0xf]
      %v1248 = vld [vmem:[%s9 + $0x5c] sm:$0xf]
      %v1249 = vld [vmem:[%s9 + $0x60] sm:$0xf]
      %v1250 = vld [vmem:[%s9 + $0x64] sm:$0xf]
      %v1251 = vld [vmem:[%s9 + $0x68] sm:$0xf]
      %v1252 = vld [vmem:[%s9 + $0x6c] sm:$0xf]
      %v1253 = vld [vmem:[%s9 + $0x70] sm:$0xf]
      %v1254 = vld [vmem:[%s9 + $0x74] sm:$0xf]
      %v1255 = vld [vmem:[%s9 + $0x78] sm:$0xf]
      %v1256 = vld [vmem:[%s9 + $0x7c] sm:$0xf]
      %v1257 = vld [vmem:[%s9 + $0x80] sm:$0xf]
      %v1258 = vld [vmem:[%s9 + $0x84] sm:$0xf]
      %v1259 = vld [vmem:[%s9 + $0x88] sm:$0xf]
      %v1260 = vld [vmem:[%s9 + $0x8c] sm:$0xf]
      %v1261 = vld [vmem:[%s9 + $0x90] sm:$0xf]
      %v1262 = vld [vmem:[%s9 + $0x94] sm:$0xf]
      %v1263 = vld [vmem:[%s9 + $0x98] sm:$0xf]
      %v1264 = vld [vmem:[%s9 + $0x9c] sm:$0xf]
      %v1265 = vld [vmem:[%s9 + $0xa0] sm:$0xf]
      %v1266 = vld [vmem:[%s9 + $0xa4] sm:$0xf]
      %v1267 = vld [vmem:[%s9 + $0xa8] sm:$0xf]
      %v1268 = vld [vmem:[%s9 + $0xac] sm:$0xf]
      %v1269 = vld [vmem:[%s9 + $0xb0] sm:$0xf]
      %v1270 = vld [vmem:[%s9 + $0xb4] sm:$0xf]
      %v1271 = vld [vmem:[%s9 + $0xb8] sm:$0xf]
      %v1272 = vld [vmem:[%s9 + $0xbc] sm:$0xf]
      %v1273 = vld [vmem:[%s9 + $0xc0] sm:$0xf]
      %v1274 = vld [vmem:[%s9 + $0xc4] sm:$0xf]
      %v1275 = vld [vmem:[%s9 + $0xc8] sm:$0xf]
      %v1276 = vld [vmem:[%s9 + $0xcc] sm:$0xf]
      %v1277 = vld [vmem:[%s9 + $0xd0] sm:$0xf]
      %v1278 = vld [vmem:[%s9 + $0xd4] sm:$0xf]
      %v1279 = vld [vmem:[%s9 + $0xd8] sm:$0xf]
      %v1280 = vld [vmem:[%s9 + $0xdc] sm:$0xf]
      %v1281 = vld [vmem:[%s9 + $0xe0] sm:$0xf]
      %v1282 = vld [vmem:[%s9 + $0xe4] sm:$0xf]
      %v1283 = vld [vmem:[%s9 + $0xe8] sm:$0xf]
      %v1284 = vld [vmem:[%s9 + $0xec] sm:$0xf]
      %v1285 = vld [vmem:[%s9 + $0xf0] sm:$0xf]
      %v1286 = vld [vmem:[%s9 + $0xf4] sm:$0xf]
      %v1287 = vld [vmem:[%s9 + $0xf8] sm:$0xf]
      %v1288 = vld [vmem:[%s9 + $0xfc] sm:$0xf]
      %v1289 = vld [vmem:[%s9 + $0x100] sm:$0xf]
      %v1290 = vld [vmem:[%s9 + $0x104] sm:$0xf]
      %v1291 = vld [vmem:[%s9 + $0x108] sm:$0xf]
      %v1292 = vld [vmem:[%s9 + $0x10c] sm:$0xf]
      %v1293 = vld [vmem:[%s9 + $0x110] sm:$0xf]
      %v1294 = vld [vmem:[%s9 + $0x114] sm:$0xf]
      %v1295 = vld [vmem:[%s9 + $0x118] sm:$0xf]
      %v1296 = vld [vmem:[%s9 + $0x11c] sm:$0xf]
      %v1297 = vld [vmem:[%s9 + $0x120] sm:$0xf]
      %v1298 = vld [vmem:[%s9 + $0x124] sm:$0xf]
      %v1299 = vld [vmem:[%s9 + $0x128] sm:$0xf]
      %v1300 = vld [vmem:[%s9 + $0x12c] sm:$0xf]
      %v1301 = vld [vmem:[%s9 + $0x130] sm:$0xf]
      %v1302 = vld [vmem:[%s9 + $0x134] sm:$0xf]
      %v1303 = vld [vmem:[%s9 + $0x138] sm:$0xf]
      %v1304 = vld [vmem:[%s9 + $0x13c] sm:$0xf]
      %v1305 = vld [vmem:[%s9 + $0x140] sm:$0xf]
      %v1306 = vld [vmem:[%s9 + $0x144] sm:$0xf]
      %v1307 = vld [vmem:[%s9 + $0x148] sm:$0xf]
      %v1308 = vld [vmem:[%s9 + $0x14c] sm:$0xf]
      %v1309 = vld [vmem:[%s9 + $0x150] sm:$0xf]
      %v1310 = vld [vmem:[%s9 + $0x154] sm:$0xf]
      %v1311 = vld [vmem:[%s9 + $0x158] sm:$0xf]
      %v1312 = vld [vmem:[%s9 + $0x15c] sm:$0xf]
      %v1313 = vld [vmem:[%s9 + $0x160] sm:$0xf]
      %v1314 = vld [vmem:[%s9 + $0x164] sm:$0xf]
      %v1315 = vld [vmem:[%s9 + $0x168] sm:$0xf]
      %v1316 = vld [vmem:[%s9 + $0x16c] sm:$0xf]
      %v1317 = vld [vmem:[%s9 + $0x170] sm:$0xf]
      %v1318 = vld [vmem:[%s9 + $0x174] sm:$0xf]
      %v1319 = vld [vmem:[%s9 + $0x178] sm:$0xf]
      %v1320 = vld [vmem:[%s9 + $0x17c] sm:$0xf]
      %v1321 = vld [vmem:[%s15] sm:$0x1]
      %v1322 = vlaneseq
      %v1323 = vshrl.u32 %v1322, 7
      %v1324 = vsub.s32 0, %v1323
      %v1325 = vrot.slane %v1321, %v1324
      %v1329 = vunpack.c.l.b16 %v1222
      %v1330 = vunpack.c.h.b16 %v1222
      %v1331 = vunpack.c.l.b16 %v1223
      %v1332 = vunpack.c.h.b16 %v1223
      %v1333 = vunpack.c.l.b16 %v1224
      %v1334 = vunpack.c.h.b16 %v1224
      %v1335 = vpack.c.b16 %v1329, %v1329
      %v1336 = vpack.c.b16 %v1330, %v1330
      %v1337 = vpack.c.b16 %v1331, %v1331
      %v1338 = vpack.c.b16 %v1332, %v1332
      %v1339 = vpack.c.b16 %v1333, %v1333
      %v1340 = vpack.c.b16 %v1334, %v1334
      %v1443 = vunpack.c.l.b16 %v1225
      %v1444 = vunpack.c.l.b16 %v1226
      %v1445 = vunpack.c.l.b16 %v1227
      %v1446 = vunpack.c.l.b16 %v1228
      %v1447 = vunpack.c.l.b16 %v1229
      %v1448 = vunpack.c.l.b16 %v1230
      %v1449 = vunpack.c.l.b16 %v1231
      %v1450 = vunpack.c.l.b16 %v1232
      %v1451 = vunpack.c.l.b16 %v1233
      %v1452 = vunpack.c.l.b16 %v1234
      %v1453 = vunpack.c.l.b16 %v1235
      %v1454 = vunpack.c.l.b16 %v1236
      %v1455 = vunpack.c.l.b16 %v1237
      %v1456 = vunpack.c.l.b16 %v1238
      %v1457 = vunpack.c.l.b16 %v1239
      %v1458 = vunpack.c.l.b16 %v1240
      %v1459 = vunpack.c.l.b16 %v1241
      %v1460 = vunpack.c.l.b16 %v1242
      %v1461 = vunpack.c.l.b16 %v1243
      %v1462 = vunpack.c.l.b16 %v1244
      %v1463 = vunpack.c.l.b16 %v1245
      %v1464 = vunpack.c.l.b16 %v1246
      %v1465 = vunpack.c.l.b16 %v1247
      %v1466 = vunpack.c.l.b16 %v1248
      %v1467 = vunpack.c.l.b16 %v1249
      %v1468 = vunpack.c.l.b16 %v1250
      %v1469 = vunpack.c.l.b16 %v1251
      %v1470 = vunpack.c.l.b16 %v1252
      %v1471 = vunpack.c.l.b16 %v1253
      %v1472 = vunpack.c.l.b16 %v1254
      %v1473 = vunpack.c.l.b16 %v1255
      %v1474 = vunpack.c.l.b16 %v1256
      %v1475 = vunpack.c.l.b16 %v1257
      %v1476 = vunpack.c.l.b16 %v1258
      %v1477 = vunpack.c.l.b16 %v1259
      %v1478 = vunpack.c.l.b16 %v1260
      %v1479 = vunpack.c.l.b16 %v1261
      %v1480 = vunpack.c.l.b16 %v1262
      %v1481 = vunpack.c.l.b16 %v1263
      %v1482 = vunpack.c.l.b16 %v1264
      %v1483 = vunpack.c.l.b16 %v1265
      %v1484 = vunpack.c.l.b16 %v1266
      %v1485 = vunpack.c.l.b16 %v1267
      %v1486 = vunpack.c.l.b16 %v1268
      %v1487 = vunpack.c.l.b16 %v1269
      %v1488 = vunpack.c.l.b16 %v1270
      %v1489 = vunpack.c.l.b16 %v1271
      %v1490 = vunpack.c.l.b16 %v1272
      %v1491 = vunpack.c.l.b16 %v1273
      %v1492 = vunpack.c.l.b16 %v1274
      %v1493 = vunpack.c.l.b16 %v1275
      %v1494 = vunpack.c.l.b16 %v1276
      %v1495 = vunpack.c.l.b16 %v1277
      %v1496 = vunpack.c.l.b16 %v1278
      %v1497 = vunpack.c.l.b16 %v1279
      %v1498 = vunpack.c.l.b16 %v1280
      %v1499 = vunpack.c.l.b16 %v1281
      %v1500 = vunpack.c.l.b16 %v1282
      %v1501 = vunpack.c.l.b16 %v1283
      %v1502 = vunpack.c.l.b16 %v1284
      %v1503 = vunpack.c.l.b16 %v1285
      %v1504 = vunpack.c.l.b16 %v1286
      %v1505 = vunpack.c.l.b16 %v1287
      %v1506 = vunpack.c.l.b16 %v1288
      %v1507 = vunpack.c.l.b16 %v1289
      %v1508 = vunpack.c.l.b16 %v1290
      %v1509 = vunpack.c.l.b16 %v1291
      %v1510 = vunpack.c.l.b16 %v1292
      %v1511 = vunpack.c.l.b16 %v1293
      %v1512 = vunpack.c.l.b16 %v1294
      %v1513 = vunpack.c.l.b16 %v1295
      %v1514 = vunpack.c.l.b16 %v1296
      %v1515 = vunpack.c.l.b16 %v1297
      %v1516 = vunpack.c.l.b16 %v1298
      %v1517 = vunpack.c.l.b16 %v1299
      %v1518 = vunpack.c.l.b16 %v1300
      %v1519 = vunpack.c.l.b16 %v1301
      %v1520 = vunpack.c.l.b16 %v1302
      %v1521 = vunpack.c.l.b16 %v1303
      %v1522 = vunpack.c.l.b16 %v1304
      %v1523 = vunpack.c.l.b16 %v1305
      %v1524 = vunpack.c.l.b16 %v1306
      %v1525 = vunpack.c.l.b16 %v1307
      %v1526 = vunpack.c.l.b16 %v1308
      %v1527 = vunpack.c.l.b16 %v1309
      %v1528 = vunpack.c.l.b16 %v1310
      %v1529 = vunpack.c.l.b16 %v1311
      %v1530 = vunpack.c.l.b16 %v1312
      %v1531 = vunpack.c.l.b16 %v1313
      %v1532 = vunpack.c.l.b16 %v1314
      %v1533 = vunpack.c.l.b16 %v1315
      %v1534 = vunpack.c.l.b16 %v1316
      %v1535 = vunpack.c.l.b16 %v1317
      %v1536 = vunpack.c.l.b16 %v1318
      %v1537 = vunpack.c.l.b16 %v1319
      %v1538 = vunpack.c.l.b16 %v1320
      %v1539 = vpack.c.b16 %v1444, %v1443
      %v1540 = vpack.c.b16 %v1446, %v1445
      %v1541 = vpack.c.b16 %v1448, %v1447
      %v1542 = vpack.c.b16 %v1450, %v1449
      %v1543 = vpack.c.b16 %v1452, %v1451
      %v1544 = vpack.c.b16 %v1454, %v1453
      %v1545 = vpack.c.b16 %v1456, %v1455
      %v1546 = vpack.c.b16 %v1458, %v1457
      %v1547 = vpack.c.b16 %v1460, %v1459
      %v1548 = vpack.c.b16 %v1462, %v1461
      %v1549 = vpack.c.b16 %v1464, %v1463
      %v1550 = vpack.c.b16 %v1466, %v1465
      %v1551 = vpack.c.b16 %v1468, %v1467
      %v1552 = vpack.c.b16 %v1470, %v1469
      %v1553 = vpack.c.b16 %v1472, %v1471
      %v1554 = vpack.c.b16 %v1474, %v1473
      %v1555 = vpack.c.b16 %v1476, %v1475
      %v1556 = vpack.c.b16 %v1478, %v1477
      %v1557 = vpack.c.b16 %v1480, %v1479
      %v1558 = vpack.c.b16 %v1482, %v1481
      %v1559 = vpack.c.b16 %v1484, %v1483
      %v1560 = vpack.c.b16 %v1486, %v1485
      %v1561 = vpack.c.b16 %v1488, %v1487
      %v1562 = vpack.c.b16 %v1490, %v1489
      %v1563 = vpack.c.b16 %v1492, %v1491
      %v1564 = vpack.c.b16 %v1494, %v1493
      %v1565 = vpack.c.b16 %v1496, %v1495
      %v1566 = vpack.c.b16 %v1498, %v1497
      %v1567 = vpack.c.b16 %v1500, %v1499
      %v1568 = vpack.c.b16 %v1502, %v1501
      %v1569 = vpack.c.b16 %v1504, %v1503
      %v1570 = vpack.c.b16 %v1506, %v1505
      %v1571 = vpack.c.b16 %v1508, %v1507
      %v1572 = vpack.c.b16 %v1510, %v1509
      %v1573 = vpack.c.b16 %v1512, %v1511
      %v1574 = vpack.c.b16 %v1514, %v1513
      %v1575 = vpack.c.b16 %v1516, %v1515
      %v1576 = vpack.c.b16 %v1518, %v1517
      %v1577 = vpack.c.b16 %v1520, %v1519
      %v1578 = vpack.c.b16 %v1522, %v1521
      %v1579 = vpack.c.b16 %v1524, %v1523
      %v1580 = vpack.c.b16 %v1526, %v1525
      %v1581 = vpack.c.b16 %v1528, %v1527
      %v1582 = vpack.c.b16 %v1530, %v1529
      %v1583 = vpack.c.b16 %v1532, %v1531
      %v1584 = vpack.c.b16 %v1534, %v1533
      %v1585 = vpack.c.b16 %v1536, %v1535
      %v1586 = vpack.c.b16 %v1538, %v1537
      %1635 = vmatprep.subr.bf16.mxu0 0
      %1636 = vmatpush1.bf16.msra.mxu0 %v1539
      %1637 = vmatprep.subr.bf16.mxu0 0
      %1638 = vmatpush1.bf16.msra.mxu0 %v1540
      %1639 = vmatprep.subr.bf16.mxu0 0
      %1640 = vmatpush1.bf16.msra.mxu0 %v1541
      %1641 = vmatprep.subr.bf16.mxu0 0
      %1642 = vmatpush1.bf16.msra.mxu0 %v1542
      %1643 = vmatprep.subr.bf16.mxu0 0
      %1644 = vmatpush1.bf16.msra.mxu0 %v1543
      %1645 = vmatprep.subr.bf16.mxu0 0
      %1646 = vmatpush1.bf16.msra.mxu0 %v1544
      %1647 = vmatprep.subr.bf16.mxu0 0
      %1648 = vmatpush1.bf16.msra.mxu0 %v1545
      %1649 = vmatprep.subr.bf16.mxu0 0
      %1650 = vmatpush1.bf16.msra.mxu0 %v1546
      %1651 = vmatprep.subr.bf16.mxu0 0
      %1652 = vmatpush1.bf16.msra.mxu0 %v1547
      %1653 = vmatprep.subr.bf16.mxu0 0
      %1654 = vmatpush1.bf16.msra.mxu0 %v1548
      %1655 = vmatprep.subr.bf16.mxu0 0
      %1656 = vmatpush1.bf16.msra.mxu0 %v1549
      %1657 = vmatprep.subr.bf16.mxu0 0
      %1658 = vmatpush1.bf16.msra.mxu0 %v1550
      %1659 = vmatprep.subr.bf16.mxu0 0
      %1660 = vmatpush1.bf16.msra.mxu0 %v1551
      %1661 = vmatprep.subr.bf16.mxu0 0
      %1662 = vmatpush1.bf16.msra.mxu0 %v1552
      %1663 = vmatprep.subr.bf16.mxu0 0
      %1664 = vmatpush1.bf16.msra.mxu0 %v1553
      %1665 = vmatprep.subr.bf16.mxu0 0
      %1666 = vmatpush1.bf16.msra.mxu0 %v1554
      %1667 = vmatprep.mubr.bf16.mxu0 %v1336
      %1668 = vmatmul.mubr.bf16.gmra.mrb[0].mxu0 %v1335
      %v1669 = vpop.f32.mrb[0].mxu0
      %v1670 = vadd.f32 %v1325, %v1669
      %v1671 = vpop.f32.mrb[0].mxu0
      %v1672 = vpop.f32.mrb[0].mxu0
      %v1673 = vpop.f32.mrb[0].mxu0
      %1674 = vdwg.mxu0
      %1675 = vmatprep.subr.bf16.mxu0 0
      %1676 = vmatpush1.bf16.msra.mxu0 %v1555
      %1677 = vmatprep.subr.bf16.mxu0 0
      %1678 = vmatpush1.bf16.msra.mxu0 %v1556
      %1679 = vmatprep.subr.bf16.mxu0 0
      %1680 = vmatpush1.bf16.msra.mxu0 %v1557
      %1681 = vmatprep.subr.bf16.mxu0 0
      %1682 = vmatpush1.bf16.msra.mxu0 %v1558
      %1683 = vmatprep.subr.bf16.mxu0 0
      %1684 = vmatpush1.bf16.msra.mxu0 %v1559
      %1685 = vmatprep.subr.bf16.mxu0 0
      %1686 = vmatpush1.bf16.msra.mxu0 %v1560
      %1687 = vmatprep.subr.bf16.mxu0 0
      %1688 = vmatpush1.bf16.msra.mxu0 %v1561
      %1689 = vmatprep.subr.bf16.mxu0 0
      %1690 = vmatpush1.bf16.msra.mxu0 %v1562
      %1691 = vmatprep.subr.bf16.mxu0 0
      %1692 = vmatpush1.bf16.msra.mxu0 %v1563
      %1693 = vmatprep.subr.bf16.mxu0 0
      %1694 = vmatpush1.bf16.msra.mxu0 %v1564
      %1695 = vmatprep.subr.bf16.mxu0 0
      %1696 = vmatpush1.bf16.msra.mxu0 %v1565
      %1697 = vmatprep.subr.bf16.mxu0 0
      %1698 = vmatpush1.bf16.msra.mxu0 %v1566
      %1699 = vmatprep.subr.bf16.mxu0 0
      %1700 = vmatpush1.bf16.msra.mxu0 %v1567
      %1701 = vmatprep.subr.bf16.mxu0 0
      %1702 = vmatpush1.bf16.msra.mxu0 %v1568
      %1703 = vmatprep.subr.bf16.mxu0 0
      %1704 = vmatpush1.bf16.msra.mxu0 %v1569
      %1705 = vmatprep.subr.bf16.mxu0 0
      %1706 = vmatpush1.bf16.msra.mxu0 %v1570
      %1707 = vmatprep.mubr.bf16.mxu0 %v1338
      %1708 = vmatmul.mubr.bf16.gmra.mrb[0].mxu0 %v1337
      %v1709 = vpop.f32.mrb[0].mxu0
      %v1710 = vadd.f32 %v1670, %v1709
      %v1711 = vpop.f32.mrb[0].mxu0
      %v1712 = vpop.f32.mrb[0].mxu0
      %v1713 = vpop.f32.mrb[0].mxu0
      %1714 = vdwg.mxu0
      %1715 = vmatprep.subr.bf16.mxu0 0
      %1716 = vmatpush1.bf16.msra.mxu0 %v1571
      %1717 = vmatprep.subr.bf16.mxu0 0
      %1718 = vmatpush1.bf16.msra.mxu0 %v1572
      %1719 = vmatprep.subr.bf16.mxu0 0
      %1720 = vmatpush1.bf16.msra.mxu0 %v1573
      %1721 = vmatprep.subr.bf16.mxu0 0
      %1722 = vmatpush1.bf16.msra.mxu0 %v1574
      %1723 = vmatprep.subr.bf16.mxu0 0
      %1724 = vmatpush1.bf16.msra.mxu0 %v1575
      %1725 = vmatprep.subr.bf16.mxu0 0
      %1726 = vmatpush1.bf16.msra.mxu0 %v1576
      %1727 = vmatprep.subr.bf16.mxu0 0
      %1728 = vmatpush1.bf16.msra.mxu0 %v1577
      %1729 = vmatprep.subr.bf16.mxu0 0
      %1730 = vmatpush1.bf16.msra.mxu0 %v1578
      %1731 = vmatprep.subr.bf16.mxu0 0
      %1732 = vmatpush1.bf16.msra.mxu0 %v1579
      %1733 = vmatprep.subr.bf16.mxu0 0
      %1734 = vmatpush1.bf16.msra.mxu0 %v1580
      %1735 = vmatprep.subr.bf16.mxu0 0
      %1736 = vmatpush1.bf16.msra.mxu0 %v1581
      %1737 = vmatprep.subr.bf16.mxu0 0
      %1738 = vmatpush1.bf16.msra.mxu0 %v1582
      %1739 = vmatprep.subr.bf16.mxu0 0
      %1740 = vmatpush1.bf16.msra.mxu0 %v1583
      %1741 = vmatprep.subr.bf16.mxu0 0
      %1742 = vmatpush1.bf16.msra.mxu0 %v1584
      %1743 = vmatprep.subr.bf16.mxu0 0
      %1744 = vmatpush1.bf16.msra.mxu0 %v1585
      %1745 = vmatprep.subr.bf16.mxu0 0
      %1746 = vmatpush1.bf16.msra.mxu0 %v1586
      %1747 = vmatprep.mubr.bf16.mxu0 %v1340
      %1748 = vmatmul.mubr.bf16.gmra.mrb[0].mxu0 %v1339
      %v1749 = vpop.f32.mrb[0].mxu0
      %v1750 = vadd.f32 %v1710, %v1749
      %v1751 = vpop.f32.mrb[0].mxu0
      %v1752 = vpop.f32.mrb[0].mxu0
      %v1753 = vpop.f32.mrb[0].mxu0
      %1754 = vdwg.mxu0
      %v1755 = vld [vmem:[%s577] sm:$0x1]
      %v1756 = vld [vmem:[%s580] sm:$0x1]
      %v1757 = vld [vmem:[%s10] sm:$0xff]
      %v1758 = vld [vmem:[%s10 + $0x8] sm:$0xff]
      %v1759 = vld [vmem:[%s10 + $0x10] sm:$0xff]
      %v1760 = vld [vmem:[%s10 + $0x18] sm:$0xff]
      %v1761 = vld [vmem:[%s13] sm:$0xff]
      %v1762 = vld [vmem:[%s13 + $0x8] sm:$0x3]
      %v1763 = vld [vmem:[%s14] sm:$0x1]
      %v1764 = vpack.c.bf16 %v1217, %v1217
      %v1765 = vpack.c.bf16 %v1758, %v1757
      %v1766 = vpack.c.bf16 %v1760, %v1759
      %v1768 = vsel %vm631, %v1764, 0
      %1770 = vmatprep.subr.bf16.mxu0 0
      %1771 = vmatpush1.bf16.msra.mxu0 %v1765
      %1772 = vmatprep.subr.bf16.mxu0 0
      %1773 = vmatpush1.bf16.msra.mxu0 %v1766
      %1774 = vmatprep.subr.bf16.mxu0 0
      %1775 = vmatpush1.bf16.msra.mxu0 0
      %1776 = vmatprep.subr.bf16.mxu0 0
      %1777 = vmatpush1.bf16.msra.mxu0 0
      %1778 = vmatprep.subr.bf16.mxu0 0
      %1779 = vmatpush1.bf16.msra.mxu0 0
      %1780 = vmatprep.subr.bf16.mxu0 0
      %1781 = vmatpush1.bf16.msra.mxu0 0
      %1782 = vmatprep.subr.bf16.mxu0 0
      %1783 = vmatpush1.bf16.msra.mxu0 0
      %1784 = vmatprep.subr.bf16.mxu0 0
      %1785 = vmatpush1.bf16.msra.mxu0 0
      %1786 = vmatprep.subr.bf16.mxu0 0
      %1787 = vmatpush1.bf16.msra.mxu0 0
      %1788 = vmatprep.subr.bf16.mxu0 0
      %1789 = vmatpush1.bf16.msra.mxu0 0
      %1790 = vmatprep.subr.bf16.mxu0 0
      %1791 = vmatpush1.bf16.msra.mxu0 0
      %1792 = vmatprep.subr.bf16.mxu0 0
      %1793 = vmatpush1.bf16.msra.mxu0 0
      %1794 = vmatprep.subr.bf16.mxu0 0
      %1795 = vmatpush1.bf16.msra.mxu0 0
      %1796 = vmatprep.subr.bf16.mxu0 0
      %1797 = vmatpush1.bf16.msra.mxu0 0
      %1798 = vmatprep.subr.bf16.mxu0 0
      %1799 = vmatpush1.bf16.msra.mxu0 0
      %1800 = vmatprep.subr.bf16.mxu0 0
      %1801 = vmatpush1.bf16.msra.mxu0 0
      %1802 = vmatprep.mubr.bf16.mxu0 0
      %1803 = vmatmul.mubr.bf16.gmra.mrb[0].mxu0 %v1768
      %v1804 = vpop.f32.mrb[0].mxu0
      %v1805 = vadd.f32 0.0, %v1804
      %v1806 = vpop.f32.mrb[0].mxu0
      %v1807 = vpop.f32.mrb[0].mxu0
      %v1808 = vpop.f32.mrb[0].mxu0
      %1809 = vdwg.mxu0
      %v1810 = vpack.c.bf16 %v1750, %v1750
      %v1812 = vsel %vm631, %v1810, 0
      %1814 = vmatprep.subr.bf16.mxu0 0
      %1815 = vmatpush1.bf16.msra.mxu0 %v1765
      %1816 = vmatprep.subr.bf16.mxu0 0
      %1817 = vmatpush1.bf16.msra.mxu0 %v1766
      %1818 = vmatprep.subr.bf16.mxu0 0
      %1819 = vmatpush1.bf16.msra.mxu0 0
      %1820 = vmatprep.subr.bf16.mxu0 0
      %1821 = vmatpush1.bf16.msra.mxu0 0
      %1822 = vmatprep.subr.bf16.mxu0 0
      %1823 = vmatpush1.bf16.msra.mxu0 0
      %1824 = vmatprep.subr.bf16.mxu0 0
      %1825 = vmatpush1.bf16.msra.mxu0 0
      %1826 = vmatprep.subr.bf16.mxu0 0
      %1827 = vmatpush1.bf16.msra.mxu0 0
      %1828 = vmatprep.subr.bf16.mxu0 0
      %1829 = vmatpush1.bf16.msra.mxu0 0
      %1830 = vmatprep.subr.bf16.mxu0 0
      %1831 = vmatpush1.bf16.msra.mxu0 0
      %1832 = vmatprep.subr.bf16.mxu0 0
      %1833 = vmatpush1.bf16.msra.mxu0 0
      %1834 = vmatprep.subr.bf16.mxu0 0
      %1835 = vmatpush1.bf16.msra.mxu0 0
      %1836 = vmatprep.subr.bf16.mxu0 0
      %1837 = vmatpush1.bf16.msra.mxu0 0
      %1838 = vmatprep.subr.bf16.mxu0 0
      %1839 = vmatpush1.bf16.msra.mxu0 0
      %1840 = vmatprep.subr.bf16.mxu0 0
      %1841 = vmatpush1.bf16.msra.mxu0 0
      %1842 = vmatprep.subr.bf16.mxu0 0
      %1843 = vmatpush1.bf16.msra.mxu0 0
      %1844 = vmatprep.subr.bf16.mxu0 0
      %1845 = vmatpush1.bf16.msra.mxu0 0
      %1846 = vmatprep.mubr.bf16.mxu0 0
      %1847 = vmatmul.mubr.bf16.gmra.mrb[0].mxu0 %v1812
      %v1848 = vpop.f32.mrb[0].mxu0
      %v1849 = vadd.f32 0.0, %v1848
      %v1850 = vpop.f32.mrb[0].mxu0
      %v1851 = vpop.f32.mrb[0].mxu0
      %v1852 = vpop.f32.mrb[0].mxu0
      %1853 = vdwg.mxu0
      %v1854 = vlaneseq
      %v1855 = vshrl.u32 %v1854, 7
      %v1856 = vsub.s32 0, %v1855
      %v1857 = vrot.slane %v1761, %v1856
      %v1858 = vadd.f32 %v1805, %v1857
      %v1859 = vlaneseq
      %v1860 = vshrl.u32 %v1859, 7
      %v1861 = vsub.s32 1, %v1860
      %v1862 = vrot.slane %v1761, %v1861
      %1864 = vrot.lane.b32.xlu0 %v1862, 32
      %v1865 = vpop.permute.xlu0 %1864
      %v1867 = vadd.f32 %v1849, %v1865
      %v1868 = vlaneseq
      %v1869 = vshrl.u32 %v1868, 7
      %v1870 = vsub.s32 2, %v1869
      %v1871 = vrot.slane %v1761, %v1870
      %1873 = vrot.lane.b32.xlu0 %v1871, 64
      %v1874 = vpop.permute.xlu0 %1873
      %v1876 = vadd.f32 %v1849, %v1874
      %v1877 = vmul.f32 %v592, 0.25
      %v1878 = vmul.f32 %v1858, %v1877
      %v1879 = vmul.f32 %v597, 0.25
      %v1880 = vmul.f32 %v1858, %v1879
      %v1881 = vpack.c.bf16 %v1880, %v1878
      %v1882 = vpack.c.bf16 %v1867, %v1867
      %v1884 = vlaneseq
      %v1885 = vshrl.u32 %v1884, 7
      %v1886 = vsub.s32 0, %v1885
      %v1887 = vrot.slane %v1756, %v1886
      %1890 = vrot.lane.b32.xlu0 %v1882, 96
      %v1891 = vpop.permute.xlu0 %1890
      %v1893 = vsel %vm631, %v1881, 0
      %v1896 = vsel %vm631, %v1891, 0
      %1898 = vmatprep.subr.bf16.mxu0 0
      %1899 = vmatpush1.bf16.xpose.msra.mxu0 %v1896
      %1900 = vmatprep.subr.bf16.mxu0 0
      %1901 = vmatpush1.bf16.xpose.msra.mxu0 0
      %1902 = vmatprep.subr.bf16.mxu0 0
      %1903 = vmatpush1.bf16.xpose.msra.mxu0 0
      %1904 = vmatprep.subr.bf16.mxu0 0
      %1905 = vmatpush1.bf16.xpose.msra.mxu0 0
      %1906 = vmatprep.subr.bf16.mxu0 0
      %1907 = vmatpush1.bf16.xpose.msra.mxu0 0
      %1908 = vmatprep.subr.bf16.mxu0 0
      %1909 = vmatpush1.bf16.xpose.msra.mxu0 0
      %1910 = vmatprep.subr.bf16.mxu0 0
      %1911 = vmatpush1.bf16.xpose.msra.mxu0 0
      %1912 = vmatprep.subr.bf16.mxu0 0
      %1913 = vmatpush1.bf16.xpose.msra.mxu0 0
      %1914 = vmatprep.subr.bf16.mxu0 0
      %1915 = vmatpush1.bf16.xpose.msra.mxu0 0
      %1916 = vmatprep.subr.bf16.mxu0 0
      %1917 = vmatpush1.bf16.xpose.msra.mxu0 0
      %1918 = vmatprep.subr.bf16.mxu0 0
      %1919 = vmatpush1.bf16.xpose.msra.mxu0 0
      %1920 = vmatprep.subr.bf16.mxu0 0
      %1921 = vmatpush1.bf16.xpose.msra.mxu0 0
      %1922 = vmatprep.subr.bf16.mxu0 0
      %1923 = vmatpush1.bf16.xpose.msra.mxu0 0
      %1924 = vmatprep.subr.bf16.mxu0 0
      %1925 = vmatpush1.bf16.xpose.msra.mxu0 0
      %1926 = vmatprep.subr.bf16.mxu0 0
      %1927 = vmatpush1.bf16.xpose.msra.mxu0 0
      %1928 = vmatprep.subr.bf16.mxu0 0
      %1929 = vmatpush1.bf16.xpose.msra.mxu0 0
      %1930 = vmatprep.mubr.bf16.mxu0 0
      %1931 = vmatmul.mubr.bf16.gmra.mrb[0].mxu0 %v1893
      %v1932 = vpop.f32.mrb[0].mxu0
      %v1933 = vadd.f32 %v1887, %v1932
      %v1934 = vpop.f32.mrb[0].mxu0
      %v1935 = vpop.f32.mrb[0].mxu0
      %v1936 = vadd.f32 %v1887, %v1935
      %v1937 = vpop.f32.mrb[0].mxu0
      %1938 = vdwg.mxu0
      %v1939 = vsel %vm601, %v1933, -inf
      %1940 = vmax.xlane.f32.xlu0 %v1939
      %v1941 = vpop.xlane.xlu0 %1940
      %v1942 = vsel %vm601, %v1936, -inf
      %1943 = vmax.xlane.f32.xlu0 %v1942
      %v1944 = vpop.xlane.xlu0 %1943
      %v1945 = vsub.f32 %v1933, %v1941
      %v1946 = vsub.f32 %v1936, %v1944
      %v1947 = vmul.f32 %v1945, 1.442695
      %v1948 = vpow.pop %v1947
      %v1949 = vmul.f32 %v1946, 1.442695
      %v1950 = vpow.pop %v1949
      %v1951 = vsel %vm601, %v1948, 0.0
      %1952 = vadd.xlane.f32.xlu0 %v1951
      %v1953 = vpop.xlane.xlu0 %1952
      %v1954 = vsel %vm601, %v1950, 0.0
      %1955 = vadd.xlane.f32.xlu0 %v1954
      %v1956 = vpop.xlane.xlu0 %1955
      %v1957 = vrcp.pop %v1953
      %v1958 = vmul.f32 %v1948, %v1957
      %v1959 = vrcp.pop %v1956
      %v1960 = vmul.f32 %v1950, %v1959
      %v1961 = vpack.c.bf16 %v1960, %v1958
      %v1962 = vpack.c.bf16 %v1876, %v1876
      %1964 = vrot.lane.b32.xlu0 %v1962, 64
      %v1965 = vpop.permute.xlu0 %1964
      %v1967 = vsel %vm601, %v1961, 0
      %v1970 = vsel %vm685, %v1965, 0
      %1972 = vmatprep.subr.bf16.mxu0 0
      %1973 = vmatpush1.bf16.msra.mxu0 %v1970
      %1974 = vmatprep.subr.bf16.mxu0 0
      %1975 = vmatpush1.bf16.msra.mxu0 0
      %1976 = vmatprep.subr.bf16.mxu0 0
      %1977 = vmatpush1.bf16.msra.mxu0 0
      %1978 = vmatprep.subr.bf16.mxu0 0
      %1979 = vmatpush1.bf16.msra.mxu0 0
      %1980 = vmatprep.subr.bf16.mxu0 0
      %1981 = vmatpush1.bf16.msra.mxu0 0
      %1982 = vmatprep.subr.bf16.mxu0 0
      %1983 = vmatpush1.bf16.msra.mxu0 0
      %1984 = vmatprep.subr.bf16.mxu0 0
      %1985 = vmatpush1.bf16.msra.mxu0 0
      %1986 = vmatprep.subr.bf16.mxu0 0
      %1987 = vmatpush1.bf16.msra.mxu0 0
      %1988 = vmatprep.subr.bf16.mxu0 0
      %1989 = vmatpush1.bf16.msra.mxu0 0
      %1990 = vmatprep.subr.bf16.mxu0 0
      %1991 = vmatpush1.bf16.msra.mxu0 0
      %1992 = vmatprep.subr.bf16.mxu0 0
      %1993 = vmatpush1.bf16.msra.mxu0 0
      %1994 = vmatprep.subr.bf16.mxu0 0
      %1995 = vmatpush1.bf16.msra.mxu0 0
      %1996 = vmatprep.subr.bf16.mxu0 0
      %1997 = vmatpush1.bf16.msra.mxu0 0
      %1998 = vmatprep.subr.bf16.mxu0 0
      %1999 = vmatpush1.bf16.msra.mxu0 0
      %2000 = vmatprep.subr.bf16.mxu0 0
      %2001 = vmatpush1.bf16.msra.mxu0 0
      %2002 = vmatprep.subr.bf16.mxu0 0
      %2003 = vmatpush1.bf16.msra.mxu0 0
      %2004 = vmatprep.mubr.bf16.mxu0 0
      %2005 = vmatmul.mubr.bf16.gmra.mrb[0].mxu0 %v1967
      %v2006 = vpop.f32.mrb[0].mxu0
      %v2007 = vadd.f32 0.0, %v2006
      %v2008 = vpop.f32.mrb[0].mxu0
      %v2009 = vpop.f32.mrb[0].mxu0
      %v2010 = vadd.f32 0.0, %v2009
      %v2011 = vpop.f32.mrb[0].mxu0
      %2012 = vdwg.mxu0
      %v2013 = vmul.f32 %v2007, %v592
      %v2014 = vadd.f32 %v2013, 0.0
      %v2015 = vmul.f32 %v2010, %v597
      %v2016 = vadd.f32 %v2014, %v2015
      %v2017 = vadd.f32 %v1958, 0.0
      %v2018 = vadd.f32 %v2017, %v1960
      %v2019 = vmul.f32 %v2018, 0.5
      %v2020 = vpack.c.bf16 %v2016, %v2016
      %v2021 = vlaneseq
      %v2022 = vshrl.u32 %v2021, 7
      %v2023 = vsub.s32 3, %v2022
      %v2024 = vrot.slane %v1761, %v2023
      %2027 = vrot.lane.b32.xlu0 %v1765, 32
      %v2028 = vpop.permute.xlu0 %2027
      %2029 = vrot.lane.b32.xlu0 %v1766, 32
      %v2030 = vpop.permute.xlu0 %2029
      %v2034 = vsel %vm631, %v2020, 0
      %2036 = vmatprep.subr.bf16.mxu0 0
      %2037 = vmatpush1.bf16.msra.mxu0 %v2028
      %2038 = vmatprep.subr.bf16.mxu0 0
      %2039 = vmatpush1.bf16.msra.mxu0 %v2030
      %2040 = vmatprep.subr.bf16.mxu0 0
      %2041 = vmatpush1.bf16.msra.mxu0 0
      %2042 = vmatprep.subr.bf16.mxu0 0
      %2043 = vmatpush1.bf16.msra.mxu0 0
      %2044 = vmatprep.subr.bf16.mxu0 0
      %2045 = vmatpush1.bf16.msra.mxu0 0
      %2046 = vmatprep.subr.bf16.mxu0 0
      %2047 = vmatpush1.bf16.msra.mxu0 0
      %2048 = vmatprep.subr.bf16.mxu0 0
      %2049 = vmatpush1.bf16.msra.mxu0 0
      %2050 = vmatprep.subr.bf16.mxu0 0
      %2051 = vmatpush1.bf16.msra.mxu0 0
      %2052 = vmatprep.subr.bf16.mxu0 0
      %2053 = vmatpush1.bf16.msra.mxu0 0
      %2054 = vmatprep.subr.bf16.mxu0 0
      %2055 = vmatpush1.bf16.msra.mxu0 0
      %2056 = vmatprep.subr.bf16.mxu0 0
      %2057 = vmatpush1.bf16.msra.mxu0 0
      %2058 = vmatprep.subr.bf16.mxu0 0
      %2059 = vmatpush1.bf16.msra.mxu0 0
      %2060 = vmatprep.subr.bf16.mxu0 0
      %2061 = vmatpush1.bf16.msra.mxu0 0
      %2062 = vmatprep.subr.bf16.mxu0 0
      %2063 = vmatpush1.bf16.msra.mxu0 0
      %2064 = vmatprep.subr.bf16.mxu0 0
      %2065 = vmatpush1.bf16.msra.mxu0 0
      %2066 = vmatprep.subr.bf16.mxu0 0
      %2067 = vmatpush1.bf16.msra.mxu0 0
      %2068 = vmatprep.mubr.bf16.mxu0 0
      %2069 = vmatmul.mubr.bf16.gmra.mrb[0].mxu0 %v2034
      %v2070 = vpop.f32.mrb[0].mxu0
      %v2071 = vadd.f32 %v2024, %v2070
      %v2072 = vpop.f32.mrb[0].mxu0
      %v2073 = vpop.f32.mrb[0].mxu0
      %v2074 = vpop.f32.mrb[0].mxu0
      %2075 = vdwg.mxu0
      %v2076 = vadd.f32 %v2071, %v1217
      %v2077 = vsel %vm631, %v2076, 0.0
      %2078 = vadd.xlane.f32.xlu0 %v2077
      %v2079 = vpop.xlane.xlu0 %2078
      %v2080 = vrcp.pop 32.0
      %v2081 = vmul.f32 %v2079, %v2080
      %v2082 = vsub.f32 %v2076, %v2081
      %v2083 = vmul.f32 %v2082, %v2082
      %v2084 = vsel %vm631, %v2083, 0.0
      %2085 = vadd.xlane.f32.xlu0 %v2084
      %v2086 = vpop.xlane.xlu0 %2085
      %v2087 = vmul.f32 %v2086, %v2080
      %v2088 = vadd.f32 %v2087, 1e-05
      %v2089 = vrsqrt.pop %v2088
      %v2090 = vmul.f32 %v2082, %v2089
      %v2091 = vlaneseq
      %v2092 = vshrl.u32 %v2091, 7
      %v2093 = vsub.s32 5, %v2092
      %v2094 = vrot.slane %v1761, %v2093
      %v2095 = vmul.f32 %v2090, %v2094
      %v2096 = vlaneseq
      %v2097 = vshrl.u32 %v2096, 7
      %v2098 = vsub.s32 6, %v2097
      %v2099 = vrot.slane %v1761, %v2098
      %v2100 = vadd.f32 %v2095, %v2099
      %v2101 = vld [vmem:[%s11] sm:$0xff]
      %v2102 = vld [vmem:[%s11 + $0x8] sm:$0xff]
      %v2103 = vld [vmem:[%s11 + $0x10] sm:$0xff]
      %v2104 = vld [vmem:[%s11 + $0x18] sm:$0xff]
      %v2105 = vpack.c.bf16 %v2100, %v2100
      %v2106 = vpack.c.bf16 %v2102, %v2101
      %v2107 = vpack.c.bf16 %v2104, %v2103
      %v2108 = vlaneseq
      %v2109 = vshrl.u32 %v2108, 7
      %v2110 = vsub.s32 0, %v2109
      %v2111 = vrot.slane %v1763, %v2110
      %v2113 = vsel %vm631, %v2105, 0
      %2115 = vmatprep.subr.bf16.mxu0 0
      %2116 = vmatpush1.bf16.msra.mxu0 %v2106
      %2117 = vmatprep.subr.bf16.mxu0 0
      %2118 = vmatpush1.bf16.msra.mxu0 %v2107
      %2119 = vmatprep.subr.bf16.mxu0 0
      %2120 = vmatpush1.bf16.msra.mxu0 0
      %2121 = vmatprep.subr.bf16.mxu0 0
      %2122 = vmatpush1.bf16.msra.mxu0 0
      %2123 = vmatprep.subr.bf16.mxu0 0
      %2124 = vmatpush1.bf16.msra.mxu0 0
      %2125 = vmatprep.subr.bf16.mxu0 0
      %2126 = vmatpush1.bf16.msra.mxu0 0
      %2127 = vmatprep.subr.bf16.mxu0 0
      %2128 = vmatpush1.bf16.msra.mxu0 0
      %2129 = vmatprep.subr.bf16.mxu0 0
      %2130 = vmatpush1.bf16.msra.mxu0 0
      %2131 = vmatprep.subr.bf16.mxu0 0
      %2132 = vmatpush1.bf16.msra.mxu0 0
      %2133 = vmatprep.subr.bf16.mxu0 0
      %2134 = vmatpush1.bf16.msra.mxu0 0
      %2135 = vmatprep.subr.bf16.mxu0 0
      %2136 = vmatpush1.bf16.msra.mxu0 0
      %2137 = vmatprep.subr.bf16.mxu0 0
      %2138 = vmatpush1.bf16.msra.mxu0 0
      %2139 = vmatprep.subr.bf16.mxu0 0
      %2140 = vmatpush1.bf16.msra.mxu0 0
      %2141 = vmatprep.subr.bf16.mxu0 0
      %2142 = vmatpush1.bf16.msra.mxu0 0
      %2143 = vmatprep.subr.bf16.mxu0 0
      %2144 = vmatpush1.bf16.msra.mxu0 0
      %2145 = vmatprep.subr.bf16.mxu0 0
      %2146 = vmatpush1.bf16.msra.mxu0 0
      %2147 = vmatprep.mubr.bf16.mxu0 0
      %2148 = vmatmul.mubr.bf16.gmra.mrb[0].mxu0 %v2113
      %v2149 = vpop.f32.mrb[0].mxu0
      %v2150 = vadd.f32 %v2111, %v2149
      %v2151 = vpop.f32.mrb[0].mxu0
      %v2152 = vpop.f32.mrb[0].mxu0
      %v2153 = vpop.f32.mrb[0].mxu0
      %2154 = vdwg.mxu0
      %v2155 = vmax.f32 %v2150, 0.0
      %v2156 = vld [vmem:[%s12] sm:$0xff]
      %v2157 = vld [vmem:[%s12 + $0x8] sm:$0xff]
      %v2158 = vld [vmem:[%s12 + $0x10] sm:$0xff]
      %v2159 = vld [vmem:[%s12 + $0x18] sm:$0xff]
      %v2160 = vld [vmem:[%s12 + $0x20] sm:$0xff]
      %v2161 = vld [vmem:[%s12 + $0x28] sm:$0xff]
      %v2162 = vld [vmem:[%s12 + $0x30] sm:$0xff]
      %v2163 = vld [vmem:[%s12 + $0x38] sm:$0xff]
      %v2164 = vpack.c.bf16 %v2155, %v2155
      %v2165 = vpack.c.bf16 %v2157, %v2156
      %v2166 = vpack.c.bf16 %v2159, %v2158
      %v2167 = vpack.c.bf16 %v2161, %v2160
      %v2168 = vpack.c.bf16 %v2163, %v2162
      %v2169 = vlaneseq
      %v2170 = vshrl.u32 %v2169, 7
      %v2171 = vsub.s32 4, %v2170
      %v2172 = vrot.slane %v1761, %v2171
      %v2174 = vsel %vm1152, %v2164, 0
      %2176 = vmatprep.subr.bf16.mxu0 0
      %2177 = vmatpush1.bf16.msra.mxu0 %v2165
      %2178 = vmatprep.subr.bf16.mxu0 0
      %2179 = vmatpush1.bf16.msra.mxu0 %v2166
      %2180 = vmatprep.subr.bf16.mxu0 0
      %2181 = vmatpush1.bf16.msra.mxu0 %v2167
      %2182 = vmatprep.subr.bf16.mxu0 0
      %2183 = vmatpush1.bf16.msra.mxu0 %v2168
      %2184 = vmatprep.subr.bf16.mxu0 0
      %2185 = vmatpush1.bf16.msra.mxu0 0
      %2186 = vmatprep.subr.bf16.mxu0 0
      %2187 = vmatpush1.bf16.msra.mxu0 0
      %2188 = vmatprep.subr.bf16.mxu0 0
      %2189 = vmatpush1.bf16.msra.mxu0 0
      %2190 = vmatprep.subr.bf16.mxu0 0
      %2191 = vmatpush1.bf16.msra.mxu0 0
      %2192 = vmatprep.subr.bf16.mxu0 0
      %2193 = vmatpush1.bf16.msra.mxu0 0
      %2194 = vmatprep.subr.bf16.mxu0 0
      %2195 = vmatpush1.bf16.msra.mxu0 0
      %2196 = vmatprep.subr.bf16.mxu0 0
      %2197 = vmatpush1.bf16.msra.mxu0 0
      %2198 = vmatprep.subr.bf16.mxu0 0
      %2199 = vmatpush1.bf16.msra.mxu0 0
      %2200 = vmatprep.subr.bf16.mxu0 0
      %2201 = vmatpush1.bf16.msra.mxu0 0
      %2202 = vmatprep.subr.bf16.mxu0 0
      %2203 = vmatpush1.bf16.msra.mxu0 0
      %2204 = vmatprep.subr.bf16.mxu0 0
      %2205 = vmatpush1.bf16.msra.mxu0 0
      %2206 = vmatprep.subr.bf16.mxu0 0
      %2207 = vmatpush1.bf16.msra.mxu0 0
      %2208 = vmatprep.mubr.bf16.mxu0 0
      %2209 = vmatmul.mubr.bf16.gmra.mrb[0].mxu0 %v2174
      %v2210 = vpop.f32.mrb[0].mxu0
      %v2211 = vadd.f32 %v2172, %v2210
      %v2212 = vpop.f32.mrb[0].mxu0
      %v2213 = vpop.f32.mrb[0].mxu0
      %v2214 = vpop.f32.mrb[0].mxu0
      %2215 = vdwg.mxu0
      %v2216 = vadd.f32 %v2100, %v2211
      %v2217 = vsel %vm631, %v2216, 0.0
      %2218 = vadd.xlane.f32.xlu0 %v2217
      %v2219 = vpop.xlane.xlu0 %2218
      %v2220 = vmul.f32 %v2219, %v2080
      %v2221 = vsub.f32 %v2216, %v2220
      %v2222 = vmul.f32 %v2221, %v2221
      %v2223 = vsel %vm631, %v2222, 0.0
      %2224 = vadd.xlane.f32.xlu0 %v2223
      %v2225 = vpop.xlane.xlu0 %2224
      %v2226 = vmul.f32 %v2225, %v2080
      %v2227 = vadd.f32 %v2226, 1e-05
      %v2228 = vrsqrt.pop %v2227
      %v2229 = vmul.f32 %v2221, %v2228
      %v2230 = vlaneseq
      %v2231 = vshrl.u32 %v2230, 7
      %v2232 = vsub.s32 7, %v2231
      %v2233 = vrot.slane %v1761, %v2232
      %v2234 = vmul.f32 %v2229, %v2233
      %v2235 = vlaneseq
      %v2236 = vshrl.u32 %v2235, 7
      %v2237 = vsub.s32 0, %v2236
      %v2238 = vrot.slane %v1762, %v2237
      %v2239 = vadd.f32 %v2234, %v2238
      %s2240 = scalar_lea.vmem %s10, 32
      %v2241 = vld [vmem:[%s2240] sm:$0xff]
      %v2242 = vld [vmem:[%s2240 + $0x8] sm:$0xff]
      %v2243 = vld [vmem:[%s2240 + $0x10] sm:$0xff]
      %v2244 = vld [vmem:[%s2240 + $0x18] sm:$0xff]
      %s2245 = scalar_lea.vmem %s13, 16
      %v2246 = vld [vmem:[%s2245] sm:$0xff]
      %v2247 = vld [vmem:[%s2245 + $0x8] sm:$0x3]
      %v2248 = vld [vmem:[%s14 + $0x1] sm:$0x1]
      %v2249 = vpack.c.bf16 %v2239, %v2239
      %v2250 = vpack.c.bf16 %v2242, %v2241
      %v2251 = vpack.c.bf16 %v2244, %v2243
      %v2253 = vsel %vm631, %v2249, 0
      %2255 = vmatprep.subr.bf16.mxu0 0
      %2256 = vmatpush1.bf16.msra.mxu0 %v2250
      %2257 = vmatprep.subr.bf16.mxu0 0
      %2258 = vmatpush1.bf16.msra.mxu0 %v2251
      %2259 = vmatprep.subr.bf16.mxu0 0
      %2260 = vmatpush1.bf16.msra.mxu0 0
      %2261 = vmatprep.subr.bf16.mxu0 0
      %2262 = vmatpush1.bf16.msra.mxu0 0
      %2263 = vmatprep.subr.bf16.mxu0 0
      %2264 = vmatpush1.bf16.msra.mxu0 0
      %2265 = vmatprep.subr.bf16.mxu0 0
      %2266 = vmatpush1.bf16.msra.mxu0 0
      %2267 = vmatprep.subr.bf16.mxu0 0
      %2268 = vmatpush1.bf16.msra.mxu0 0
      %2269 = vmatprep.subr.bf16.mxu0 0
      %2270 = vmatpush1.bf16.msra.mxu0 0
      %2271 = vmatprep.subr.bf16.mxu0 0
      %2272 = vmatpush1.bf16.msra.mxu0 0
      %2273 = vmatprep.subr.bf16.mxu0 0
      %2274 = vmatpush1.bf16.msra.mxu0 0
      %2275 = vmatprep.subr.bf16.mxu0 0
      %2276 = vmatpush1.bf16.msra.mxu0 0
      %2277 = vmatprep.subr.bf16.mxu0 0
      %2278 = vmatpush1.bf16.msra.mxu0 0
      %2279 = vmatprep.subr.bf16.mxu0 0
      %2280 = vmatpush1.bf16.msra.mxu0 0
      %2281 = vmatprep.subr.bf16.mxu0 0
      %2282 = vmatpush1.bf16.msra.mxu0 0
      %2283 = vmatprep.subr.bf16.mxu0 0
      %2284 = vmatpush1.bf16.msra.mxu0 0
      %2285 = vmatprep.subr.bf16.mxu0 0
      %2286 = vmatpush1.bf16.msra.mxu0 0
      %2287 = vmatprep.mubr.bf16.mxu0 0
      %2288 = vmatmul.mubr.bf16.gmra.mrb[0].mxu0 %v2253
      %v2289 = vpop.f32.mrb[0].mxu0
      %v2290 = vadd.f32 0.0, %v2289
      %v2291 = vpop.f32.mrb[0].mxu0
      %v2292 = vpop.f32.mrb[0].mxu0
      %v2293 = vpop.f32.mrb[0].mxu0
      %2294 = vdwg.mxu0
      %v2295 = vlaneseq
      %v2296 = vshrl.u32 %v2295, 7
      %v2297 = vsub.s32 0, %v2296
      %v2298 = vrot.slane %v2246, %v2297
      %v2299 = vadd.f32 %v2290, %v2298
      %v2300 = vlaneseq
      %v2301 = vshrl.u32 %v2300, 7
      %v2302 = vsub.s32 1, %v2301
      %v2303 = vrot.slane %v2246, %v2302
      %2305 = vrot.lane.b32.xlu0 %v2303, 32
      %v2306 = vpop.permute.xlu0 %2305
      %v2308 = vadd.f32 %v2290, %v2306
      %v2309 = vlaneseq
      %v2310 = vshrl.u32 %v2309, 7
      %v2311 = vsub.s32 2, %v2310
      %v2312 = vrot.slane %v2246, %v2311
      %2314 = vrot.lane.b32.xlu0 %v2312, 64
      %v2315 = vpop.permute.xlu0 %2314
      %v2317 = vadd.f32 %v2290, %v2315
      %v2318 = vmul.f32 %v2299, %v1877
      %v2319 = vmul.f32 %v2299, %v1879
      %v2320 = vpack.c.bf16 %v2319, %v2318
      %v2321 = vpack.c.bf16 %v2308, %v2308
      %v2323 = vlaneseq
      %v2324 = vshrl.u32 %v2323, 7
      %v2325 = vsub.s32 0, %v2324
      %v2326 = vrot.slane %v1755, %v2325
      %2329 = vrot.lane.b32.xlu0 %v2321, 96
      %v2330 = vpop.permute.xlu0 %2329
      %v2332 = vsel %vm631, %v2320, 0
      %v2335 = vsel %vm631, %v2330, 0
      %2337 = vmatprep.subr.bf16.mxu0 0
      %2338 = vmatpush1.bf16.xpose.msra.mxu0 %v2335
      %2339 = vmatprep.subr.bf16.mxu0 0
      %2340 = vmatpush1.bf16.xpose.msra.mxu0 0
      %2341 = vmatprep.subr.bf16.mxu0 0
      %2342 = vmatpush1.bf16.xpose.msra.mxu0 0
      %2343 = vmatprep.subr.bf16.mxu0 0
      %2344 = vmatpush1.bf16.xpose.msra.mxu0 0
      %2345 = vmatprep.subr.bf16.mxu0 0
      %2346 = vmatpush1.bf16.xpose.msra.mxu0 0
      %2347 = vmatprep.subr.bf16.mxu0 0
      %2348 = vmatpush1.bf16.xpose.msra.mxu0 0
      %2349 = vmatprep.subr.bf16.mxu0 0
      %2350 = vmatpush1.bf16.xpose.msra.mxu0 0
      %2351 = vmatprep.subr.bf16.mxu0 0
      %2352 = vmatpush1.bf16.xpose.msra.mxu0 0
      %2353 = vmatprep.subr.bf16.mxu0 0
      %2354 = vmatpush1.bf16.xpose.msra.mxu0 0
      %2355 = vmatprep.subr.bf16.mxu0 0
      %2356 = vmatpush1.bf16.xpose.msra.mxu0 0
      %2357 = vmatprep.subr.bf16.mxu0 0
      %2358 = vmatpush1.bf16.xpose.msra.mxu0 0
      %2359 = vmatprep.subr.bf16.mxu0 0
      %2360 = vmatpush1.bf16.xpose.msra.mxu0 0
      %2361 = vmatprep.subr.bf16.mxu0 0
      %2362 = vmatpush1.bf16.xpose.msra.mxu0 0
      %2363 = vmatprep.subr.bf16.mxu0 0
      %2364 = vmatpush1.bf16.xpose.msra.mxu0 0
      %2365 = vmatprep.subr.bf16.mxu0 0
      %2366 = vmatpush1.bf16.xpose.msra.mxu0 0
      %2367 = vmatprep.subr.bf16.mxu0 0
      %2368 = vmatpush1.bf16.xpose.msra.mxu0 0
      %2369 = vmatprep.mubr.bf16.mxu0 0
      %2370 = vmatmul.mubr.bf16.gmra.mrb[0].mxu0 %v2332
      %v2371 = vpop.f32.mrb[0].mxu0
      %v2372 = vadd.f32 %v2326, %v2371
      %v2373 = vpop.f32.mrb[0].mxu0
      %v2374 = vpop.f32.mrb[0].mxu0
      %v2375 = vadd.f32 %v2326, %v2374
      %v2376 = vpop.f32.mrb[0].mxu0
      %2377 = vdwg.mxu0
      %v2378 = vsel %vm601, %v2372, -inf
      %2379 = vmax.xlane.f32.xlu0 %v2378
      %v2380 = vpop.xlane.xlu0 %2379
      %v2381 = vsel %vm601, %v2375, -inf
      %2382 = vmax.xlane.f32.xlu0 %v2381
      %v2383 = vpop.xlane.xlu0 %2382
      %v2384 = vsub.f32 %v2372, %v2380
      %v2385 = vsub.f32 %v2375, %v2383
      %v2386 = vmul.f32 %v2384, 1.442695
      %v2387 = vpow.pop %v2386
      %v2388 = vmul.f32 %v2385, 1.442695
      %v2389 = vpow.pop %v2388
      %v2390 = vsel %vm601, %v2387, 0.0
      %2391 = vadd.xlane.f32.xlu0 %v2390
      %v2392 = vpop.xlane.xlu0 %2391
      %v2393 = vsel %vm601, %v2389, 0.0
      %2394 = vadd.xlane.f32.xlu0 %v2393
      %v2395 = vpop.xlane.xlu0 %2394
      %v2396 = vrcp.pop %v2392
      %v2397 = vmul.f32 %v2387, %v2396
      %v2398 = vrcp.pop %v2395
      %v2399 = vmul.f32 %v2389, %v2398
      %v2400 = vpack.c.bf16 %v2399, %v2397
      %v2401 = vpack.c.bf16 %v2317, %v2317
      %2403 = vrot.lane.b32.xlu0 %v2401, 64
      %v2404 = vpop.permute.xlu0 %2403
      %v2406 = vsel %vm601, %v2400, 0
      %v2409 = vsel %vm685, %v2404, 0
      %2411 = vmatprep.subr.bf16.mxu0 0
      %2412 = vmatpush1.bf16.msra.mxu0 %v2409
      %2413 = vmatprep.subr.bf16.mxu0 0
      %2414 = vmatpush1.bf16.msra.mxu0 0
      %2415 = vmatprep.subr.bf16.mxu0 0
      %2416 = vmatpush1.bf16.msra.mxu0 0
      %2417 = vmatprep.subr.bf16.mxu0 0
      %2418 = vmatpush1.bf16.msra.mxu0 0
      %2419 = vmatprep.subr.bf16.mxu0 0
      %2420 = vmatpush1.bf16.msra.mxu0 0
      %2421 = vmatprep.subr.bf16.mxu0 0
      %2422 = vmatpush1.bf16.msra.mxu0 0
      %2423 = vmatprep.subr.bf16.mxu0 0
      %2424 = vmatpush1.bf16.msra.mxu0 0
      %2425 = vmatprep.subr.bf16.mxu0 0
      %2426 = vmatpush1.bf16.msra.mxu0 0
      %2427 = vmatprep.subr.bf16.mxu0 0
      %2428 = vmatpush1.bf16.msra.mxu0 0
      %2429 = vmatprep.subr.bf16.mxu0 0
      %2430 = vmatpush1.bf16.msra.mxu0 0
      %2431 = vmatprep.subr.bf16.mxu0 0
      %2432 = vmatpush1.bf16.msra.mxu0 0
      %2433 = vmatprep.subr.bf16.mxu0 0
      %2434 = vmatpush1.bf16.msra.mxu0 0
      %2435 = vmatprep.subr.bf16.mxu0 0
      %2436 = vmatpush1.bf16.msra.mxu0 0
      %2437 = vmatprep.subr.bf16.mxu0 0
      %2438 = vmatpush1.bf16.msra.mxu0 0
      %2439 = vmatprep.subr.bf16.mxu0 0
      %2440 = vmatpush1.bf16.msra.mxu0 0
      %2441 = vmatprep.subr.bf16.mxu0 0
      %2442 = vmatpush1.bf16.msra.mxu0 0
      %2443 = vmatprep.mubr.bf16.mxu0 0
      %2444 = vmatmul.mubr.bf16.gmra.mrb[0].mxu0 %v2406
      %v2445 = vpop.f32.mrb[0].mxu0
      %v2446 = vadd.f32 0.0, %v2445
      %v2447 = vpop.f32.mrb[0].mxu0
      %v2448 = vpop.f32.mrb[0].mxu0
      %v2449 = vadd.f32 0.0, %v2448
      %v2450 = vpop.f32.mrb[0].mxu0
      %2451 = vdwg.mxu0
      %v2452 = vmul.f32 %v2446, %v592
      %v2453 = vadd.f32 %v2452, 0.0
      %v2454 = vmul.f32 %v2449, %v597
      %v2455 = vadd.f32 %v2453, %v2454
      %v2456 = vpack.c.bf16 %v2455, %v2455
      %v2457 = vlaneseq
      %v2458 = vshrl.u32 %v2457, 7
      %v2459 = vsub.s32 3, %v2458
      %v2460 = vrot.slane %v2246, %v2459
      %2463 = vrot.lane.b32.xlu0 %v2250, 32
      %v2464 = vpop.permute.xlu0 %2463
      %2465 = vrot.lane.b32.xlu0 %v2251, 32
      %v2466 = vpop.permute.xlu0 %2465
      %v2470 = vsel %vm631, %v2456, 0
      %2472 = vmatprep.subr.bf16.mxu0 0
      %2473 = vmatpush1.bf16.msra.mxu0 %v2464
      %2474 = vmatprep.subr.bf16.mxu0 0
      %2475 = vmatpush1.bf16.msra.mxu0 %v2466
      %2476 = vmatprep.subr.bf16.mxu0 0
      %2477 = vmatpush1.bf16.msra.mxu0 0
      %2478 = vmatprep.subr.bf16.mxu0 0
      %2479 = vmatpush1.bf16.msra.mxu0 0
      %2480 = vmatprep.subr.bf16.mxu0 0
      %2481 = vmatpush1.bf16.msra.mxu0 0
      %2482 = vmatprep.subr.bf16.mxu0 0
      %2483 = vmatpush1.bf16.msra.mxu0 0
      %2484 = vmatprep.subr.bf16.mxu0 0
      %2485 = vmatpush1.bf16.msra.mxu0 0
      %2486 = vmatprep.subr.bf16.mxu0 0
      %2487 = vmatpush1.bf16.msra.mxu0 0
      %2488 = vmatprep.subr.bf16.mxu0 0
      %2489 = vmatpush1.bf16.msra.mxu0 0
      %2490 = vmatprep.subr.bf16.mxu0 0
      %2491 = vmatpush1.bf16.msra.mxu0 0
      %2492 = vmatprep.subr.bf16.mxu0 0
      %2493 = vmatpush1.bf16.msra.mxu0 0
      %2494 = vmatprep.subr.bf16.mxu0 0
      %2495 = vmatpush1.bf16.msra.mxu0 0
      %2496 = vmatprep.subr.bf16.mxu0 0
      %2497 = vmatpush1.bf16.msra.mxu0 0
      %2498 = vmatprep.subr.bf16.mxu0 0
      %2499 = vmatpush1.bf16.msra.mxu0 0
      %2500 = vmatprep.subr.bf16.mxu0 0
      %2501 = vmatpush1.bf16.msra.mxu0 0
      %2502 = vmatprep.subr.bf16.mxu0 0
      %2503 = vmatpush1.bf16.msra.mxu0 0
      %2504 = vmatprep.mubr.bf16.mxu0 0
      %2505 = vmatmul.mubr.bf16.gmra.mrb[0].mxu0 %v2470
      %v2506 = vpop.f32.mrb[0].mxu0
      %v2507 = vadd.f32 %v2460, %v2506
      %v2508 = vpop.f32.mrb[0].mxu0
      %v2509 = vpop.f32.mrb[0].mxu0
      %v2510 = vpop.f32.mrb[0].mxu0
      %2511 = vdwg.mxu0
      %v2512 = vadd.f32 %v2507, %v2239
      %v2513 = vsel %vm631, %v2512, 0.0
      %2514 = vadd.xlane.f32.xlu0 %v2513
      %v2515 = vpop.xlane.xlu0 %2514
      %v2516 = vmul.f32 %v2515, %v2080
      %v2517 = vsub.f32 %v2512, %v2516
      %v2518 = vmul.f32 %v2517, %v2517
      %v2519 = vsel %vm631, %v2518, 0.0
      %2520 = vadd.xlane.f32.xlu0 %v2519
      %v2521 = vpop.xlane.xlu0 %2520
      %v2522 = vmul.f32 %v2521, %v2080
      %v2523 = vadd.f32 %v2522, 1e-05
      %v2524 = vrsqrt.pop %v2523
      %v2525 = vmul.f32 %v2517, %v2524
      %v2526 = vlaneseq
      %v2527 = vshrl.u32 %v2526, 7
      %v2528 = vsub.s32 5, %v2527
      %v2529 = vrot.slane %v2246, %v2528
      %v2530 = vmul.f32 %v2525, %v2529
      %v2531 = vlaneseq
      %v2532 = vshrl.u32 %v2531, 7
      %v2533 = vsub.s32 6, %v2532
      %v2534 = vrot.slane %v2246, %v2533
      %v2535 = vadd.f32 %v2530, %v2534
      %s2536 = scalar_lea.vmem %s11, 32
      %v2537 = vld [vmem:[%s2536] sm:$0xff]
      %v2538 = vld [vmem:[%s2536 + $0x8] sm:$0xff]
      %v2539 = vld [vmem:[%s2536 + $0x10] sm:$0xff]
      %v2540 = vld [vmem:[%s2536 + $0x18] sm:$0xff]
      %v2541 = vpack.c.bf16 %v2535, %v2535
      %v2542 = vpack.c.bf16 %v2538, %v2537
      %v2543 = vpack.c.bf16 %v2540, %v2539
      %v2544 = vlaneseq
      %v2545 = vshrl.u32 %v2544, 7
      %v2546 = vsub.s32 0, %v2545
      %v2547 = vrot.slane %v2248, %v2546
      %v2549 = vsel %vm631, %v2541, 0
      %2551 = vmatprep.subr.bf16.mxu0 0
      %2552 = vmatpush1.bf16.msra.mxu0 %v2542
      %2553 = vmatprep.subr.bf16.mxu0 0
      %2554 = vmatpush1.bf16.msra.mxu0 %v2543
      %2555 = vmatprep.subr.bf16.mxu0 0
      %2556 = vmatpush1.bf16.msra.mxu0 0
      %2557 = vmatprep.subr.bf16.mxu0 0
      %2558 = vmatpush1.bf16.msra.mxu0 0
      %2559 = vmatprep.subr.bf16.mxu0 0
      %2560 = vmatpush1.bf16.msra.mxu0 0
      %2561 = vmatprep.subr.bf16.mxu0 0
      %2562 = vmatpush1.bf16.msra.mxu0 0
      %2563 = vmatprep.subr.bf16.mxu0 0
      %2564 = vmatpush1.bf16.msra.mxu0 0
      %2565 = vmatprep.subr.bf16.mxu0 0
      %2566 = vmatpush1.bf16.msra.mxu0 0
      %2567 = vmatprep.subr.bf16.mxu0 0
      %2568 = vmatpush1.bf16.msra.mxu0 0
      %2569 = vmatprep.subr.bf16.mxu0 0
      %2570 = vmatpush1.bf16.msra.mxu0 0
      %2571 = vmatprep.subr.bf16.mxu0 0
      %2572 = vmatpush1.bf16.msra.mxu0 0
      %2573 = vmatprep.subr.bf16.mxu0 0
      %2574 = vmatpush1.bf16.msra.mxu0 0
      %2575 = vmatprep.subr.bf16.mxu0 0
      %2576 = vmatpush1.bf16.msra.mxu0 0
      %2577 = vmatprep.subr.bf16.mxu0 0
      %2578 = vmatpush1.bf16.msra.mxu0 0
      %2579 = vmatprep.subr.bf16.mxu0 0
      %2580 = vmatpush1.bf16.msra.mxu0 0
      %2581 = vmatprep.subr.bf16.mxu0 0
      %2582 = vmatpush1.bf16.msra.mxu0 0
      %2583 = vmatprep.mubr.bf16.mxu0 0
      %2584 = vmatmul.mubr.bf16.gmra.mrb[0].mxu0 %v2549
      %v2585 = vpop.f32.mrb[0].mxu0
      %v2586 = vadd.f32 %v2547, %v2585
      %v2587 = vpop.f32.mrb[0].mxu0
      %v2588 = vpop.f32.mrb[0].mxu0
      %v2589 = vpop.f32.mrb[0].mxu0
      %2590 = vdwg.mxu0
      %v2591 = vmax.f32 %v2586, 0.0
      %s2592 = scalar_lea.vmem %s12, 64
      %v2593 = vld [vmem:[%s2592] sm:$0xff]
      %v2594 = vld [vmem:[%s2592 + $0x8] sm:$0xff]
      %v2595 = vld [vmem:[%s2592 + $0x10] sm:$0xff]
      %v2596 = vld [vmem:[%s2592 + $0x18] sm:$0xff]
      %v2597 = vld [vmem:[%s2592 + $0x20] sm:$0xff]
      %v2598 = vld [vmem:[%s2592 + $0x28] sm:$0xff]
      %v2599 = vld [vmem:[%s2592 + $0x30] sm:$0xff]
      %v2600 = vld [vmem:[%s2592 + $0x38] sm:$0xff]
      %v2601 = vpack.c.bf16 %v2591, %v2591
      %v2602 = vpack.c.bf16 %v2594, %v2593
      %v2603 = vpack.c.bf16 %v2596, %v2595
      %v2604 = vpack.c.bf16 %v2598, %v2597
      %v2605 = vpack.c.bf16 %v2600, %v2599
      %v2606 = vlaneseq
      %v2607 = vshrl.u32 %v2606, 7
      %v2608 = vsub.s32 4, %v2607
      %v2609 = vrot.slane %v2246, %v2608
      %v2611 = vsel %vm1152, %v2601, 0
      %2613 = vmatprep.subr.bf16.mxu0 0
      %2614 = vmatpush1.bf16.msra.mxu0 %v2602
      %2615 = vmatprep.subr.bf16.mxu0 0
      %2616 = vmatpush1.bf16.msra.mxu0 %v2603
      %2617 = vmatprep.subr.bf16.mxu0 0
      %2618 = vmatpush1.bf16.msra.mxu0 %v2604
      %2619 = vmatprep.subr.bf16.mxu0 0
      %2620 = vmatpush1.bf16.msra.mxu0 %v2605
      %2621 = vmatprep.subr.bf16.mxu0 0
      %2622 = vmatpush1.bf16.msra.mxu0 0
      %2623 = vmatprep.subr.bf16.mxu0 0
      %2624 = vmatpush1.bf16.msra.mxu0 0
      %2625 = vmatprep.subr.bf16.mxu0 0
      %2626 = vmatpush1.bf16.msra.mxu0 0
      %2627 = vmatprep.subr.bf16.mxu0 0
      %2628 = vmatpush1.bf16.msra.mxu0 0
      %2629 = vmatprep.subr.bf16.mxu0 0
      %2630 = vmatpush1.bf16.msra.mxu0 0
      %2631 = vmatprep.subr.bf16.mxu0 0
      %2632 = vmatpush1.bf16.msra.mxu0 0
      %2633 = vmatprep.subr.bf16.mxu0 0
      %2634 = vmatpush1.bf16.msra.mxu0 0
      %2635 = vmatprep.subr.bf16.mxu0 0
      %2636 = vmatpush1.bf16.msra.mxu0 0
      %2637 = vmatprep.subr.bf16.mxu0 0
      %2638 = vmatpush1.bf16.msra.mxu0 0
      %2639 = vmatprep.subr.bf16.mxu0 0
      %2640 = vmatpush1.bf16.msra.mxu0 0
      %2641 = vmatprep.subr.bf16.mxu0 0
      %2642 = vmatpush1.bf16.msra.mxu0 0
      %2643 = vmatprep.subr.bf16.mxu0 0
      %2644 = vmatpush1.bf16.msra.mxu0 0
      %2645 = vmatprep.mubr.bf16.mxu0 0
      %2646 = vmatmul.mubr.bf16.gmra.mrb[0].mxu0 %v2611
      %v2647 = vpop.f32.mrb[0].mxu0
      %v2648 = vadd.f32 %v2609, %v2647
      %v2649 = vpop.f32.mrb[0].mxu0
      %v2650 = vpop.f32.mrb[0].mxu0
      %v2651 = vpop.f32.mrb[0].mxu0
      %2652 = vdwg.mxu0
      %v2653 = vadd.f32 %v2535, %v2648
      %v2654 = vsel %vm631, %v2653, 0.0
      %2655 = vadd.xlane.f32.xlu0 %v2654
      %v2656 = vpop.xlane.xlu0 %2655
      %v2657 = vmul.f32 %v2656, %v2080
      %v2658 = vsub.f32 %v2653, %v2657
      %v2659 = vmul.f32 %v2658, %v2658
      %v2660 = vsel %vm631, %v2659, 0.0
      %2661 = vadd.xlane.f32.xlu0 %v2660
      %v2662 = vpop.xlane.xlu0 %2661
      %v2663 = vmul.f32 %v2662, %v2080
      %v2664 = vadd.f32 %v2663, 1e-05
      %v2665 = vrsqrt.pop %v2664
      %v2666 = vmul.f32 %v2658, %v2665
      %v2667 = vlaneseq
      %v2668 = vshrl.u32 %v2667, 7
      %v2669 = vsub.s32 7, %v2668
      %v2670 = vrot.slane %v2246, %v2669
      %v2671 = vmul.f32 %v2666, %v2670
      %v2672 = vlaneseq
      %v2673 = vshrl.u32 %v2672, 7
      %v2674 = vsub.s32 0, %v2673
      %v2675 = vrot.slane %v2247, %v2674
      %v2676 = vadd.f32 %v2671, %v2675
      %s2677 = scalar_lea.vmem %s10, 64
      %v2678 = vld [vmem:[%s2677] sm:$0xff]
      %v2679 = vld [vmem:[%s2677 + $0x8] sm:$0xff]
      %v2680 = vld [vmem:[%s2677 + $0x10] sm:$0xff]
      %v2681 = vld [vmem:[%s2677 + $0x18] sm:$0xff]
      %s2682 = scalar_lea.vmem %s13, 32
      %v2683 = vld [vmem:[%s2682] sm:$0xff]
      %v2684 = vld [vmem:[%s2682 + $0x8] sm:$0x3]
      %v2685 = vld [vmem:[%s14 + $0x2] sm:$0x1]
      %v2686 = vpack.c.bf16 %v2679, %v2678
      %v2687 = vpack.c.bf16 %v2681, %v2680
      %2688 = vmatprep.subr.bf16.mxu0 0
      %2689 = vmatpush1.bf16.msra.mxu0 %v2686
      %2690 = vmatprep.subr.bf16.mxu0 0
      %2691 = vmatpush1.bf16.msra.mxu0 %v2687
      %2692 = vmatprep.subr.bf16.mxu0 0
      %2693 = vmatpush1.bf16.msra.mxu0 0
      %2694 = vmatprep.subr.bf16.mxu0 0
      %2695 = vmatpush1.bf16.msra.mxu0 0
      %2696 = vmatprep.subr.bf16.mxu0 0
      %2697 = vmatpush1.bf16.msra.mxu0 0
      %2698 = vmatprep.subr.bf16.mxu0 0
      %2699 = vmatpush1.bf16.msra.mxu0 0
      %2700 = vmatprep.subr.bf16.mxu0 0
      %2701 = vmatpush1.bf16.msra.mxu0 0
      %2702 = vmatprep.subr.bf16.mxu0 0
      %2703 = vmatpush1.bf16.msra.mxu0 0
      %2704 = vmatprep.subr.bf16.mxu0 0
      %2705 = vmatpush1.bf16.msra.mxu0 0
      %2706 = vmatprep.subr.bf16.mxu0 0
      %2707 = vmatpush1.bf16.msra.mxu0 0
      %2708 = vmatprep.subr.bf16.mxu0 0
      %2709 = vmatpush1.bf16.msra.mxu0 0
      %2710 = vmatprep.subr.bf16.mxu0 0
      %2711 = vmatpush1.bf16.msra.mxu0 0
      %2712 = vmatprep.subr.bf16.mxu0 0
      %2713 = vmatpush1.bf16.msra.mxu0 0
      %2714 = vmatprep.subr.bf16.mxu0 0
      %2715 = vmatpush1.bf16.msra.mxu0 0
      %2716 = vmatprep.subr.bf16.mxu0 0
      %2717 = vmatpush1.bf16.msra.mxu0 0
      %2718 = vmatprep.subr.bf16.mxu0 0
      %2719 = vmatpush1.bf16.msra.mxu0 0
      %2720 = vmatprep.mubr.bf16.mxu0 0
      %2721 = vmatmul.mubr.bf16.gmra.mrb[0].mxu0 %v1812
      %v2722 = vpop.f32.mrb[0].mxu0
      %v2723 = vadd.f32 0.0, %v2722
      %v2724 = vpop.f32.mrb[0].mxu0
      %v2725 = vpop.f32.mrb[0].mxu0
      %v2726 = vpop.f32.mrb[0].mxu0
      %2727 = vdwg.mxu0
      %v2728 = vpack.c.bf16 %v2676, %v2676
      %v2730 = vsel %vm631, %v2728, 0
      %2732 = vmatprep.subr.bf16.mxu0 0
      %2733 = vmatpush1.bf16.msra.mxu0 %v2686
      %2734 = vmatprep.subr.bf16.mxu0 0
      %2735 = vmatpush1.bf16.msra.mxu0 %v2687
      %2736 = vmatprep.subr.bf16.mxu0 0
      %2737 = vmatpush1.bf16.msra.mxu0 0
      %2738 = vmatprep.subr.bf16.mxu0 0
      %2739 = vmatpush1.bf16.msra.mxu0 0
      %2740 = vmatprep.subr.bf16.mxu0 0
      %2741 = vmatpush1.bf16.msra.mxu0 0
      %2742 = vmatprep.subr.bf16.mxu0 0
      %2743 = vmatpush1.bf16.msra.mxu0 0
      %2744 = vmatprep.subr.bf16.mxu0 0
      %2745 = vmatpush1.bf16.msra.mxu0 0
      %2746 = vmatprep.subr.bf16.mxu0 0
      %2747 = vmatpush1.bf16.msra.mxu0 0
      %2748 = vmatprep.subr.bf16.mxu0 0
      %2749 = vmatpush1.bf16.msra.mxu0 0
      %2750 = vmatprep.subr.bf16.mxu0 0
      %2751 = vmatpush1.bf16.msra.mxu0 0
      %2752 = vmatprep.subr.bf16.mxu0 0
      %2753 = vmatpush1.bf16.msra.mxu0 0
      %2754 = vmatprep.subr.bf16.mxu0 0
      %2755 = vmatpush1.bf16.msra.mxu0 0
      %2756 = vmatprep.subr.bf16.mxu0 0
      %2757 = vmatpush1.bf16.msra.mxu0 0
      %2758 = vmatprep.subr.bf16.mxu0 0
      %2759 = vmatpush1.bf16.msra.mxu0 0
      %2760 = vmatprep.subr.bf16.mxu0 0
      %2761 = vmatpush1.bf16.msra.mxu0 0
      %2762 = vmatprep.subr.bf16.mxu0 0
      %2763 = vmatpush1.bf16.msra.mxu0 0
      %2764 = vmatprep.mubr.bf16.mxu0 0
      %2765 = vmatmul.mubr.bf16.gmra.mrb[0].mxu0 %v2730
      %v2766 = vpop.f32.mrb[0].mxu0
      %v2767 = vadd.f32 0.0, %v2766
      %v2768 = vpop.f32.mrb[0].mxu0
      %v2769 = vpop.f32.mrb[0].mxu0
      %v2770 = vpop.f32.mrb[0].mxu0
      %2771 = vdwg.mxu0
      %v2772 = vlaneseq
      %v2773 = vshrl.u32 %v2772, 7
      %v2774 = vsub.s32 0, %v2773
      %v2775 = vrot.slane %v2683, %v2774
      %v2776 = vadd.f32 %v2723, %v2775
      %v2777 = vlaneseq
      %v2778 = vshrl.u32 %v2777, 7
      %v2779 = vsub.s32 1, %v2778
      %v2780 = vrot.slane %v2683, %v2779
      %2782 = vrot.lane.b32.xlu0 %v2780, 32
      %v2783 = vpop.permute.xlu0 %2782
      %v2785 = vadd.f32 %v2767, %v2783
      %v2786 = vlaneseq
      %v2787 = vshrl.u32 %v2786, 7
      %v2788 = vsub.s32 2, %v2787
      %v2789 = vrot.slane %v2683, %v2788
      %2791 = vrot.lane.b32.xlu0 %v2789, 64
      %v2792 = vpop.permute.xlu0 %2791
      %v2794 = vadd.f32 %v2767, %v2792
      %v2795 = vmul.f32 %v2776, %v1877
      %v2796 = vmul.f32 %v2776, %v1879
      %v2797 = vpack.c.bf16 %v2796, %v2795
      %v2798 = vpack.c.bf16 %v2785, %v2785
      %2800 = vrot.lane.b32.xlu0 %v2798, 96
      %v2801 = vpop.permute.xlu0 %2800
      %v2803 = vsel %vm631, %v2797, 0
      %v2806 = vsel %vm631, %v2801, 0
      %2808 = vmatprep.subr.bf16.mxu0 0
      %2809 = vmatpush1.bf16.xpose.msra.mxu0 %v2806
      %2810 = vmatprep.subr.bf16.mxu0 0
      %2811 = vmatpush1.bf16.xpose.msra.mxu0 0
      %2812 = vmatprep.subr.bf16.mxu0 0
      %2813 = vmatpush1.bf16.xpose.msra.mxu0 0
      %2814 = vmatprep.subr.bf16.mxu0 0
      %2815 = vmatpush1.bf16.xpose.msra.mxu0 0
      %2816 = vmatprep.subr.bf16.mxu0 0
      %2817 = vmatpush1.bf16.xpose.msra.mxu0 0
      %2818 = vmatprep.subr.bf16.mxu0 0
      %2819 = vmatpush1.bf16.xpose.msra.mxu0 0
      %2820 = vmatprep.subr.bf16.mxu0 0
      %2821 = vmatpush1.bf16.xpose.msra.mxu0 0
      %2822 = vmatprep.subr.bf16.mxu0 0
      %2823 = vmatpush1.bf16.xpose.msra.mxu0 0
      %2824 = vmatprep.subr.bf16.mxu0 0
      %2825 = vmatpush1.bf16.xpose.msra.mxu0 0
      %2826 = vmatprep.subr.bf16.mxu0 0
      %2827 = vmatpush1.bf16.xpose.msra.mxu0 0
      %2828 = vmatprep.subr.bf16.mxu0 0
      %2829 = vmatpush1.bf16.xpose.msra.mxu0 0
      %2830 = vmatprep.subr.bf16.mxu0 0
      %2831 = vmatpush1.bf16.xpose.msra.mxu0 0
      %2832 = vmatprep.subr.bf16.mxu0 0
      %2833 = vmatpush1.bf16.xpose.msra.mxu0 0
      %2834 = vmatprep.subr.bf16.mxu0 0
      %2835 = vmatpush1.bf16.xpose.msra.mxu0 0
      %2836 = vmatprep.subr.bf16.mxu0 0
      %2837 = vmatpush1.bf16.xpose.msra.mxu0 0
      %2838 = vmatprep.subr.bf16.mxu0 0
      %2839 = vmatpush1.bf16.xpose.msra.mxu0 0
      %2840 = vmatprep.mubr.bf16.mxu0 0
      %2841 = vmatmul.mubr.bf16.gmra.mrb[0].mxu0 %v2803
      %v2842 = vpop.f32.mrb[0].mxu0
      %v2843 = vadd.f32 %v2326, %v2842
      %v2844 = vpop.f32.mrb[0].mxu0
      %v2845 = vpop.f32.mrb[0].mxu0
      %v2846 = vadd.f32 %v2326, %v2845
      %v2847 = vpop.f32.mrb[0].mxu0
      %2848 = vdwg.mxu0
      %v2849 = vsel %vm601, %v2843, -inf
      %2850 = vmax.xlane.f32.xlu0 %v2849
      %v2851 = vpop.xlane.xlu0 %2850
      %v2852 = vsel %vm601, %v2846, -inf
      %2853 = vmax.xlane.f32.xlu0 %v2852
      %v2854 = vpop.xlane.xlu0 %2853
      %v2855 = vsub.f32 %v2843, %v2851
      %v2856 = vsub.f32 %v2846, %v2854
      %v2857 = vmul.f32 %v2855, 1.442695
      %v2858 = vpow.pop %v2857
      %v2859 = vmul.f32 %v2856, 1.442695
      %v2860 = vpow.pop %v2859
      %v2861 = vsel %vm601, %v2858, 0.0
      %2862 = vadd.xlane.f32.xlu0 %v2861
      %v2863 = vpop.xlane.xlu0 %2862
      %v2864 = vsel %vm601, %v2860, 0.0
      %2865 = vadd.xlane.f32.xlu0 %v2864
      %v2866 = vpop.xlane.xlu0 %2865
      %v2867 = vrcp.pop %v2863
      %v2868 = vmul.f32 %v2858, %v2867
      %v2869 = vrcp.pop %v2866
      %v2870 = vmul.f32 %v2860, %v2869
      %v2871 = vpack.c.bf16 %v2870, %v2868
      %v2872 = vpack.c.bf16 %v2794, %v2794
      %2874 = vrot.lane.b32.xlu0 %v2872, 64
      %v2875 = vpop.permute.xlu0 %2874
      %v2877 = vsel %vm601, %v2871, 0
      %v2880 = vsel %vm685, %v2875, 0
      %2882 = vmatprep.subr.bf16.mxu0 0
      %2883 = vmatpush1.bf16.msra.mxu0 %v2880
      %2884 = vmatprep.subr.bf16.mxu0 0
      %2885 = vmatpush1.bf16.msra.mxu0 0
      %2886 = vmatprep.subr.bf16.mxu0 0
      %2887 = vmatpush1.bf16.msra.mxu0 0
      %2888 = vmatprep.subr.bf16.mxu0 0
      %2889 = vmatpush1.bf16.msra.mxu0 0
      %2890 = vmatprep.subr.bf16.mxu0 0
      %2891 = vmatpush1.bf16.msra.mxu0 0
      %2892 = vmatprep.subr.bf16.mxu0 0
      %2893 = vmatpush1.bf16.msra.mxu0 0
      %2894 = vmatprep.subr.bf16.mxu0 0
      %2895 = vmatpush1.bf16.msra.mxu0 0
      %2896 = vmatprep.subr.bf16.mxu0 0
      %2897 = vmatpush1.bf16.msra.mxu0 0
      %2898 = vmatprep.subr.bf16.mxu0 0
      %2899 = vmatpush1.bf16.msra.mxu0 0
      %2900 = vmatprep.subr.bf16.mxu0 0
      %2901 = vmatpush1.bf16.msra.mxu0 0
      %2902 = vmatprep.subr.bf16.mxu0 0
      %2903 = vmatpush1.bf16.msra.mxu0 0
      %2904 = vmatprep.subr.bf16.mxu0 0
      %2905 = vmatpush1.bf16.msra.mxu0 0
      %2906 = vmatprep.subr.bf16.mxu0 0
      %2907 = vmatpush1.bf16.msra.mxu0 0
      %2908 = vmatprep.subr.bf16.mxu0 0
      %2909 = vmatpush1.bf16.msra.mxu0 0
      %2910 = vmatprep.subr.bf16.mxu0 0
      %2911 = vmatpush1.bf16.msra.mxu0 0
      %2912 = vmatprep.subr.bf16.mxu0 0
      %2913 = vmatpush1.bf16.msra.mxu0 0
      %2914 = vmatprep.mubr.bf16.mxu0 0
      %2915 = vmatmul.mubr.bf16.gmra.mrb[0].mxu0 %v2877
      %v2916 = vpop.f32.mrb[0].mxu0
      %v2917 = vadd.f32 0.0, %v2916
      %v2918 = vpop.f32.mrb[0].mxu0
      %v2919 = vpop.f32.mrb[0].mxu0
      %v2920 = vadd.f32 0.0, %v2919
      %v2921 = vpop.f32.mrb[0].mxu0
      %2922 = vdwg.mxu0
      %v2923 = vmul.f32 %v2917, %v592
      %v2924 = vadd.f32 %v2923, 0.0
      %v2925 = vmul.f32 %v2920, %v597
      %v2926 = vadd.f32 %v2924, %v2925
      %v2927 = vadd.f32 %v2868, 0.0
      %v2928 = vadd.f32 %v2927, %v2870
      %v2929 = vmul.f32 %v2928, 0.5
      %v2930 = vpack.c.bf16 %v2926, %v2926
      %v2931 = vlaneseq
      %v2932 = vshrl.u32 %v2931, 7
      %v2933 = vsub.s32 3, %v2932
      %v2934 = vrot.slane %v2683, %v2933
      %2937 = vrot.lane.b32.xlu0 %v2686, 32
      %v2938 = vpop.permute.xlu0 %2937
      %2939 = vrot.lane.b32.xlu0 %v2687, 32
      %v2940 = vpop.permute.xlu0 %2939
      %v2944 = vsel %vm631, %v2930, 0
      %2946 = vmatprep.subr.bf16.mxu0 0
      %2947 = vmatpush1.bf16.msra.mxu0 %v2938
      %2948 = vmatprep.subr.bf16.mxu0 0
      %2949 = vmatpush1.bf16.msra.mxu0 %v2940
      %2950 = vmatprep.subr.bf16.mxu0 0
      %2951 = vmatpush1.bf16.msra.mxu0 0
      %2952 = vmatprep.subr.bf16.mxu0 0
      %2953 = vmatpush1.bf16.msra.mxu0 0
      %2954 = vmatprep.subr.bf16.mxu0 0
      %2955 = vmatpush1.bf16.msra.mxu0 0
      %2956 = vmatprep.subr.bf16.mxu0 0
      %2957 = vmatpush1.bf16.msra.mxu0 0
      %2958 = vmatprep.subr.bf16.mxu0 0
      %2959 = vmatpush1.bf16.msra.mxu0 0
      %2960 = vmatprep.subr.bf16.mxu0 0
      %2961 = vmatpush1.bf16.msra.mxu0 0
      %2962 = vmatprep.subr.bf16.mxu0 0
      %2963 = vmatpush1.bf16.msra.mxu0 0
      %2964 = vmatprep.subr.bf16.mxu0 0
      %2965 = vmatpush1.bf16.msra.mxu0 0
      %2966 = vmatprep.subr.bf16.mxu0 0
      %2967 = vmatpush1.bf16.msra.mxu0 0
      %2968 = vmatprep.subr.bf16.mxu0 0
      %2969 = vmatpush1.bf16.msra.mxu0 0
      %2970 = vmatprep.subr.bf16.mxu0 0
      %2971 = vmatpush1.bf16.msra.mxu0 0
      %2972 = vmatprep.subr.bf16.mxu0 0
      %2973 = vmatpush1.bf16.msra.mxu0 0
      %2974 = vmatprep.subr.bf16.mxu0 0
      %2975 = vmatpush1.bf16.msra.mxu0 0
      %2976 = vmatprep.subr.bf16.mxu0 0
      %2977 = vmatpush1.bf16.msra.mxu0 0
      %2978 = vmatprep.mubr.bf16.mxu0 0
      %2979 = vmatmul.mubr.bf16.gmra.mrb[0].mxu0 %v2944
      %v2980 = vpop.f32.mrb[0].mxu0
      %v2981 = vadd.f32 %v2934, %v2980
      %v2982 = vpop.f32.mrb[0].mxu0
      %v2983 = vpop.f32.mrb[0].mxu0
      %v2984 = vpop.f32.mrb[0].mxu0
      %2985 = vdwg.mxu0
      %v2986 = vadd.f32 %v2981, %v1750
      %v2987 = vsel %vm631, %v2986, 0.0
      %2988 = vadd.xlane.f32.xlu0 %v2987
      %v2989 = vpop.xlane.xlu0 %2988
      %v2990 = vmul.f32 %v2989, %v2080
      %v2991 = vsub.f32 %v2986, %v2990
      %v2992 = vmul.f32 %v2991, %v2991
      %v2993 = vsel %vm631, %v2992, 0.0
      %2994 = vadd.xlane.f32.xlu0 %v2993
      %v2995 = vpop.xlane.xlu0 %2994
      %v2996 = vmul.f32 %v2995, %v2080
      %v2997 = vadd.f32 %v2996, 1e-05
      %v2998 = vrsqrt.pop %v2997
      %v2999 = vmul.f32 %v2991, %v2998
      %v3000 = vlaneseq
      %v3001 = vshrl.u32 %v3000, 7
      %v3002 = vsub.s32 5, %v3001
      %v3003 = vrot.slane %v2683, %v3002
      %v3004 = vmul.f32 %v2999, %v3003
      %v3005 = vlaneseq
      %v3006 = vshrl.u32 %v3005, 7
      %v3007 = vsub.s32 6, %v3006
      %v3008 = vrot.slane %v2683, %v3007
      %v3009 = vadd.f32 %v3004, %v3008
      %s3010 = scalar_lea.vmem %s11, 64
      %v3011 = vld [vmem:[%s3010] sm:$0xff]
      %v3012 = vld [vmem:[%s3010 + $0x8] sm:$0xff]
      %v3013 = vld [vmem:[%s3010 + $0x10] sm:$0xff]
      %v3014 = vld [vmem:[%s3010 + $0x18] sm:$0xff]
      %v3015 = vpack.c.bf16 %v3009, %v3009
      %v3016 = vpack.c.bf16 %v3012, %v3011
      %v3017 = vpack.c.bf16 %v3014, %v3013
      %v3018 = vlaneseq
      %v3019 = vshrl.u32 %v3018, 7
      %v3020 = vsub.s32 0, %v3019
      %v3021 = vrot.slane %v2685, %v3020
      %v3023 = vsel %vm631, %v3015, 0
      %3025 = vmatprep.subr.bf16.mxu0 0
      %3026 = vmatpush1.bf16.msra.mxu0 %v3016
      %3027 = vmatprep.subr.bf16.mxu0 0
      %3028 = vmatpush1.bf16.msra.mxu0 %v3017
      %3029 = vmatprep.subr.bf16.mxu0 0
      %3030 = vmatpush1.bf16.msra.mxu0 0
      %3031 = vmatprep.subr.bf16.mxu0 0
      %3032 = vmatpush1.bf16.msra.mxu0 0
      %3033 = vmatprep.subr.bf16.mxu0 0
      %3034 = vmatpush1.bf16.msra.mxu0 0
      %3035 = vmatprep.subr.bf16.mxu0 0
      %3036 = vmatpush1.bf16.msra.mxu0 0
      %3037 = vmatprep.subr.bf16.mxu0 0
      %3038 = vmatpush1.bf16.msra.mxu0 0
      %3039 = vmatprep.subr.bf16.mxu0 0
      %3040 = vmatpush1.bf16.msra.mxu0 0
      %3041 = vmatprep.subr.bf16.mxu0 0
      %3042 = vmatpush1.bf16.msra.mxu0 0
      %3043 = vmatprep.subr.bf16.mxu0 0
      %3044 = vmatpush1.bf16.msra.mxu0 0
      %3045 = vmatprep.subr.bf16.mxu0 0
      %3046 = vmatpush1.bf16.msra.mxu0 0
      %3047 = vmatprep.subr.bf16.mxu0 0
      %3048 = vmatpush1.bf16.msra.mxu0 0
      %3049 = vmatprep.subr.bf16.mxu0 0
      %3050 = vmatpush1.bf16.msra.mxu0 0
      %3051 = vmatprep.subr.bf16.mxu0 0
      %3052 = vmatpush1.bf16.msra.mxu0 0
      %3053 = vmatprep.subr.bf16.mxu0 0
      %3054 = vmatpush1.bf16.msra.mxu0 0
      %3055 = vmatprep.subr.bf16.mxu0 0
      %3056 = vmatpush1.bf16.msra.mxu0 0
      %3057 = vmatprep.mubr.bf16.mxu0 0
      %3058 = vmatmul.mubr.bf16.gmra.mrb[0].mxu0 %v3023
      %v3059 = vpop.f32.mrb[0].mxu0
      %v3060 = vadd.f32 %v3021, %v3059
      %v3061 = vpop.f32.mrb[0].mxu0
      %v3062 = vpop.f32.mrb[0].mxu0
      %v3063 = vpop.f32.mrb[0].mxu0
      %3064 = vdwg.mxu0
      %v3065 = vmax.f32 %v3060, 0.0
      %s3066 = scalar_lea.vmem %s12, 128
      %v3067 = vld [vmem:[%s3066] sm:$0xff]
      %v3068 = vld [vmem:[%s3066 + $0x8] sm:$0xff]
      %v3069 = vld [vmem:[%s3066 + $0x10] sm:$0xff]
      %v3070 = vld [vmem:[%s3066 + $0x18] sm:$0xff]
      %v3071 = vld [vmem:[%s3066 + $0x20] sm:$0xff]
      %v3072 = vld [vmem:[%s3066 + $0x28] sm:$0xff]
      %v3073 = vld [vmem:[%s3066 + $0x30] sm:$0xff]
      %v3074 = vld [vmem:[%s3066 + $0x38] sm:$0xff]
      %v3075 = vpack.c.bf16 %v3065, %v3065
      %v3076 = vpack.c.bf16 %v3068, %v3067
      %v3077 = vpack.c.bf16 %v3070, %v3069
      %v3078 = vpack.c.bf16 %v3072, %v3071
      %v3079 = vpack.c.bf16 %v3074, %v3073
      %v3080 = vlaneseq
      %v3081 = vshrl.u32 %v3080, 7
      %v3082 = vsub.s32 4, %v3081
      %v3083 = vrot.slane %v2683, %v3082
      %v3085 = vsel %vm1152, %v3075, 0
      %3087 = vmatprep.subr.bf16.mxu0 0
      %3088 = vmatpush1.bf16.msra.mxu0 %v3076
      %3089 = vmatprep.subr.bf16.mxu0 0
      %3090 = vmatpush1.bf16.msra.mxu0 %v3077
      %3091 = vmatprep.subr.bf16.mxu0 0
      %3092 = vmatpush1.bf16.msra.mxu0 %v3078
      %3093 = vmatprep.subr.bf16.mxu0 0
      %3094 = vmatpush1.bf16.msra.mxu0 %v3079
      %3095 = vmatprep.subr.bf16.mxu0 0
      %3096 = vmatpush1.bf16.msra.mxu0 0
      %3097 = vmatprep.subr.bf16.mxu0 0
      %3098 = vmatpush1.bf16.msra.mxu0 0
      %3099 = vmatprep.subr.bf16.mxu0 0
      %3100 = vmatpush1.bf16.msra.mxu0 0
      %3101 = vmatprep.subr.bf16.mxu0 0
      %3102 = vmatpush1.bf16.msra.mxu0 0
      %3103 = vmatprep.subr.bf16.mxu0 0
      %3104 = vmatpush1.bf16.msra.mxu0 0
      %3105 = vmatprep.subr.bf16.mxu0 0
      %3106 = vmatpush1.bf16.msra.mxu0 0
      %3107 = vmatprep.subr.bf16.mxu0 0
      %3108 = vmatpush1.bf16.msra.mxu0 0
      %3109 = vmatprep.subr.bf16.mxu0 0
      %3110 = vmatpush1.bf16.msra.mxu0 0
      %3111 = vmatprep.subr.bf16.mxu0 0
      %3112 = vmatpush1.bf16.msra.mxu0 0
      %3113 = vmatprep.subr.bf16.mxu0 0
      %3114 = vmatpush1.bf16.msra.mxu0 0
      %3115 = vmatprep.subr.bf16.mxu0 0
      %3116 = vmatpush1.bf16.msra.mxu0 0
      %3117 = vmatprep.subr.bf16.mxu0 0
      %3118 = vmatpush1.bf16.msra.mxu0 0
      %3119 = vmatprep.mubr.bf16.mxu0 0
      %3120 = vmatmul.mubr.bf16.gmra.mrb[0].mxu0 %v3085
      %v3121 = vpop.f32.mrb[0].mxu0
      %v3122 = vadd.f32 %v3083, %v3121
      %v3123 = vpop.f32.mrb[0].mxu0
      %v3124 = vpop.f32.mrb[0].mxu0
      %v3125 = vpop.f32.mrb[0].mxu0
      %3126 = vdwg.mxu0
      %v3127 = vadd.f32 %v3009, %v3122
      %v3128 = vsel %vm631, %v3127, 0.0
      %3129 = vadd.xlane.f32.xlu0 %v3128
      %v3130 = vpop.xlane.xlu0 %3129
      %v3131 = vmul.f32 %v3130, %v2080
      %v3132 = vsub.f32 %v3127, %v3131
      %v3133 = vmul.f32 %v3132, %v3132
      %v3134 = vsel %vm631, %v3133, 0.0
      %3135 = vadd.xlane.f32.xlu0 %v3134
      %v3136 = vpop.xlane.xlu0 %3135
      %v3137 = vmul.f32 %v3136, %v2080
      %v3138 = vadd.f32 %v3137, 1e-05
      %v3139 = vrsqrt.pop %v3138
      %v3140 = vmul.f32 %v3132, %v3139
      %v3141 = vlaneseq
      %v3142 = vshrl.u32 %v3141, 7
      %v3143 = vsub.s32 7, %v3142
      %v3144 = vrot.slane %v2683, %v3143
      %v3145 = vmul.f32 %v3140, %v3144
      %v3146 = vlaneseq
      %v3147 = vshrl.u32 %v3146, 7
      %v3148 = vsub.s32 0, %v3147
      %v3149 = vrot.slane %v2684, %v3148
      %v3150 = vadd.f32 %v3145, %v3149
      %s3151 = scalar_lea.vmem %s10, 96
      %v3152 = vld [vmem:[%s3151] sm:$0xff]
      %v3153 = vld [vmem:[%s3151 + $0x8] sm:$0xff]
      %v3154 = vld [vmem:[%s3151 + $0x10] sm:$0xff]
      %v3155 = vld [vmem:[%s3151 + $0x18] sm:$0xff]
      %s3156 = scalar_lea.vmem %s13, 48
      %v3157 = vld [vmem:[%s3156] sm:$0xff]
      %v3158 = vld [vmem:[%s3156 + $0x8] sm:$0x3]
      %v3159 = vld [vmem:[%s14 + $0x3] sm:$0x1]
      %v3160 = vpack.c.bf16 %v3150, %v3150
      %v3161 = vpack.c.bf16 %v3153, %v3152
      %v3162 = vpack.c.bf16 %v3155, %v3154
      %v3164 = vsel %vm631, %v3160, 0
      %3166 = vmatprep.subr.bf16.mxu0 0
      %3167 = vmatpush1.bf16.msra.mxu0 %v3161
      %3168 = vmatprep.subr.bf16.mxu0 0
      %3169 = vmatpush1.bf16.msra.mxu0 %v3162
      %3170 = vmatprep.subr.bf16.mxu0 0
      %3171 = vmatpush1.bf16.msra.mxu0 0
      %3172 = vmatprep.subr.bf16.mxu0 0
      %3173 = vmatpush1.bf16.msra.mxu0 0
      %3174 = vmatprep.subr.bf16.mxu0 0
      %3175 = vmatpush1.bf16.msra.mxu0 0
      %3176 = vmatprep.subr.bf16.mxu0 0
      %3177 = vmatpush1.bf16.msra.mxu0 0
      %3178 = vmatprep.subr.bf16.mxu0 0
      %3179 = vmatpush1.bf16.msra.mxu0 0
      %3180 = vmatprep.subr.bf16.mxu0 0
      %3181 = vmatpush1.bf16.msra.mxu0 0
      %3182 = vmatprep.subr.bf16.mxu0 0
      %3183 = vmatpush1.bf16.msra.mxu0 0
      %3184 = vmatprep.subr.bf16.mxu0 0
      %3185 = vmatpush1.bf16.msra.mxu0 0
      %3186 = vmatprep.subr.bf16.mxu0 0
      %3187 = vmatpush1.bf16.msra.mxu0 0
      %3188 = vmatprep.subr.bf16.mxu0 0
      %3189 = vmatpush1.bf16.msra.mxu0 0
      %3190 = vmatprep.subr.bf16.mxu0 0
      %3191 = vmatpush1.bf16.msra.mxu0 0
      %3192 = vmatprep.subr.bf16.mxu0 0
      %3193 = vmatpush1.bf16.msra.mxu0 0
      %3194 = vmatprep.subr.bf16.mxu0 0
      %3195 = vmatpush1.bf16.msra.mxu0 0
      %3196 = vmatprep.subr.bf16.mxu0 0
      %3197 = vmatpush1.bf16.msra.mxu0 0
      %3198 = vmatprep.mubr.bf16.mxu0 0
      %3199 = vmatmul.mubr.bf16.gmra.mrb[0].mxu0 %v3164
      %v3200 = vpop.f32.mrb[0].mxu0
      %v3201 = vadd.f32 0.0, %v3200
      %v3202 = vpop.f32.mrb[0].mxu0
      %v3203 = vpop.f32.mrb[0].mxu0
      %v3204 = vpop.f32.mrb[0].mxu0
      %3205 = vdwg.mxu0
      %v3206 = vlaneseq
      %v3207 = vshrl.u32 %v3206, 7
      %v3208 = vsub.s32 0, %v3207
      %v3209 = vrot.slane %v3157, %v3208
      %v3210 = vadd.f32 %v3201, %v3209
      %v3211 = vlaneseq
      %v3212 = vshrl.u32 %v3211, 7
      %v3213 = vsub.s32 1, %v3212
      %v3214 = vrot.slane %v3157, %v3213
      %3216 = vrot.lane.b32.xlu0 %v3214, 32
      %v3217 = vpop.permute.xlu0 %3216
      %v3219 = vadd.f32 %v3201, %v3217
      %v3220 = vlaneseq
      %v3221 = vshrl.u32 %v3220, 7
      %v3222 = vsub.s32 2, %v3221
      %v3223 = vrot.slane %v3157, %v3222
      %3225 = vrot.lane.b32.xlu0 %v3223, 64
      %v3226 = vpop.permute.xlu0 %3225
      %v3228 = vadd.f32 %v3201, %v3226
      %v3229 = vmul.f32 %v3210, %v1877
      %v3230 = vmul.f32 %v3210, %v1879
      %v3231 = vpack.c.bf16 %v3230, %v3229
      %v3232 = vpack.c.bf16 %v3219, %v3219
      %3234 = vrot.lane.b32.xlu0 %v3232, 96
      %v3235 = vpop.permute.xlu0 %3234
      %v3237 = vsel %vm631, %v3231, 0
      %v3240 = vsel %vm631, %v3235, 0
      %3242 = vmatprep.subr.bf16.mxu0 0
      %3243 = vmatpush1.bf16.xpose.msra.mxu0 %v3240
      %3244 = vmatprep.subr.bf16.mxu0 0
      %3245 = vmatpush1.bf16.xpose.msra.mxu0 0
      %3246 = vmatprep.subr.bf16.mxu0 0
      %3247 = vmatpush1.bf16.xpose.msra.mxu0 0
      %3248 = vmatprep.subr.bf16.mxu0 0
      %3249 = vmatpush1.bf16.xpose.msra.mxu0 0
      %3250 = vmatprep.subr.bf16.mxu0 0
      %3251 = vmatpush1.bf16.xpose.msra.mxu0 0
      %3252 = vmatprep.subr.bf16.mxu0 0
      %3253 = vmatpush1.bf16.xpose.msra.mxu0 0
      %3254 = vmatprep.subr.bf16.mxu0 0
      %3255 = vmatpush1.bf16.xpose.msra.mxu0 0
      %3256 = vmatprep.subr.bf16.mxu0 0
      %3257 = vmatpush1.bf16.xpose.msra.mxu0 0
      %3258 = vmatprep.subr.bf16.mxu0 0
      %3259 = vmatpush1.bf16.xpose.msra.mxu0 0
      %3260 = vmatprep.subr.bf16.mxu0 0
      %3261 = vmatpush1.bf16.xpose.msra.mxu0 0
      %3262 = vmatprep.subr.bf16.mxu0 0
      %3263 = vmatpush1.bf16.xpose.msra.mxu0 0
      %3264 = vmatprep.subr.bf16.mxu0 0
      %3265 = vmatpush1.bf16.xpose.msra.mxu0 0
      %3266 = vmatprep.subr.bf16.mxu0 0
      %3267 = vmatpush1.bf16.xpose.msra.mxu0 0
      %3268 = vmatprep.subr.bf16.mxu0 0
      %3269 = vmatpush1.bf16.xpose.msra.mxu0 0
      %3270 = vmatprep.subr.bf16.mxu0 0
      %3271 = vmatpush1.bf16.xpose.msra.mxu0 0
      %3272 = vmatprep.subr.bf16.mxu0 0
      %3273 = vmatpush1.bf16.xpose.msra.mxu0 0
      %3274 = vmatprep.mubr.bf16.mxu0 0
      %3275 = vmatmul.mubr.bf16.gmra.mrb[0].mxu0 %v3237
      %v3276 = vpop.f32.mrb[0].mxu0
      %v3277 = vadd.f32 %v1887, %v3276
      %v3278 = vpop.f32.mrb[0].mxu0
      %v3279 = vpop.f32.mrb[0].mxu0
      %v3280 = vadd.f32 %v1887, %v3279
      %v3281 = vpop.f32.mrb[0].mxu0
      %3282 = vdwg.mxu0
      %v3283 = vsel %vm601, %v3277, -inf
      %3284 = vmax.xlane.f32.xlu0 %v3283
      %v3285 = vpop.xlane.xlu0 %3284
      %v3286 = vsel %vm601, %v3280, -inf
      %3287 = vmax.xlane.f32.xlu0 %v3286
      %v3288 = vpop.xlane.xlu0 %3287
      %v3289 = vsub.f32 %v3277, %v3285
      %v3290 = vsub.f32 %v3280, %v3288
      %v3291 = vmul.f32 %v3289, 1.442695
      %v3292 = vpow.pop %v3291
      %v3293 = vmul.f32 %v3290, 1.442695
      %v3294 = vpow.pop %v3293
      %v3295 = vsel %vm601, %v3292, 0.0
      %3296 = vadd.xlane.f32.xlu0 %v3295
      %v3297 = vpop.xlane.xlu0 %3296
      %v3298 = vsel %vm601, %v3294, 0.0
      %3299 = vadd.xlane.f32.xlu0 %v3298
      %v3300 = vpop.xlane.xlu0 %3299
      %v3301 = vrcp.pop %v3297
      %v3302 = vmul.f32 %v3292, %v3301
      %v3303 = vrcp.pop %v3300
      %v3304 = vmul.f32 %v3294, %v3303
      %v3305 = vpack.c.bf16 %v3304, %v3302
      %v3306 = vpack.c.bf16 %v3228, %v3228
      %3308 = vrot.lane.b32.xlu0 %v3306, 64
      %v3309 = vpop.permute.xlu0 %3308
      %v3311 = vsel %vm601, %v3305, 0
      %v3314 = vsel %vm685, %v3309, 0
      %3316 = vmatprep.subr.bf16.mxu0 0
      %3317 = vmatpush1.bf16.msra.mxu0 %v3314
      %3318 = vmatprep.subr.bf16.mxu0 0
      %3319 = vmatpush1.bf16.msra.mxu0 0
      %3320 = vmatprep.subr.bf16.mxu0 0
      %3321 = vmatpush1.bf16.msra.mxu0 0
      %3322 = vmatprep.subr.bf16.mxu0 0
      %3323 = vmatpush1.bf16.msra.mxu0 0
      %3324 = vmatprep.subr.bf16.mxu0 0
      %3325 = vmatpush1.bf16.msra.mxu0 0
      %3326 = vmatprep.subr.bf16.mxu0 0
      %3327 = vmatpush1.bf16.msra.mxu0 0
      %3328 = vmatprep.subr.bf16.mxu0 0
      %3329 = vmatpush1.bf16.msra.mxu0 0
      %3330 = vmatprep.subr.bf16.mxu0 0
      %3331 = vmatpush1.bf16.msra.mxu0 0
      %3332 = vmatprep.subr.bf16.mxu0 0
      %3333 = vmatpush1.bf16.msra.mxu0 0
      %3334 = vmatprep.subr.bf16.mxu0 0
      %3335 = vmatpush1.bf16.msra.mxu0 0
      %3336 = vmatprep.subr.bf16.mxu0 0
      %3337 = vmatpush1.bf16.msra.mxu0 0
      %3338 = vmatprep.subr.bf16.mxu0 0
      %3339 = vmatpush1.bf16.msra.mxu0 0
      %3340 = vmatprep.subr.bf16.mxu0 0
      %3341 = vmatpush1.bf16.msra.mxu0 0
      %3342 = vmatprep.subr.bf16.mxu0 0
      %3343 = vmatpush1.bf16.msra.mxu0 0
      %3344 = vmatprep.subr.bf16.mxu0 0
      %3345 = vmatpush1.bf16.msra.mxu0 0
      %3346 = vmatprep.subr.bf16.mxu0 0
      %3347 = vmatpush1.bf16.msra.mxu0 0
      %3348 = vmatprep.mubr.bf16.mxu0 0
      %3349 = vmatmul.mubr.bf16.gmra.mrb[0].mxu0 %v3311
      %v3350 = vpop.f32.mrb[0].mxu0
      %v3351 = vadd.f32 0.0, %v3350
      %v3352 = vpop.f32.mrb[0].mxu0
      %v3353 = vpop.f32.mrb[0].mxu0
      %v3354 = vadd.f32 0.0, %v3353
      %v3355 = vpop.f32.mrb[0].mxu0
      %3356 = vdwg.mxu0
      %v3357 = vmul.f32 %v3351, %v592
      %v3358 = vadd.f32 %v3357, 0.0
      %v3359 = vmul.f32 %v3354, %v597
      %v3360 = vadd.f32 %v3358, %v3359
      %v3361 = vpack.c.bf16 %v3360, %v3360
      %v3362 = vlaneseq
      %v3363 = vshrl.u32 %v3362, 7
      %v3364 = vsub.s32 3, %v3363
      %v3365 = vrot.slane %v3157, %v3364
      %3368 = vrot.lane.b32.xlu0 %v3161, 32
      %v3369 = vpop.permute.xlu0 %3368
      %3370 = vrot.lane.b32.xlu0 %v3162, 32
      %v3371 = vpop.permute.xlu0 %3370
      %v3375 = vsel %vm631, %v3361, 0
      %3377 = vmatprep.subr.bf16.mxu0 0
      %3378 = vmatpush1.bf16.msra.mxu0 %v3369
      %3379 = vmatprep.subr.bf16.mxu0 0
      %3380 = vmatpush1.bf16.msra.mxu0 %v3371
      %3381 = vmatprep.subr.bf16.mxu0 0
      %3382 = vmatpush1.bf16.msra.mxu0 0
      %3383 = vmatprep.subr.bf16.mxu0 0
      %3384 = vmatpush1.bf16.msra.mxu0 0
      %3385 = vmatprep.subr.bf16.mxu0 0
      %3386 = vmatpush1.bf16.msra.mxu0 0
      %3387 = vmatprep.subr.bf16.mxu0 0
      %3388 = vmatpush1.bf16.msra.mxu0 0
      %3389 = vmatprep.subr.bf16.mxu0 0
      %3390 = vmatpush1.bf16.msra.mxu0 0
      %3391 = vmatprep.subr.bf16.mxu0 0
      %3392 = vmatpush1.bf16.msra.mxu0 0
      %3393 = vmatprep.subr.bf16.mxu0 0
      %3394 = vmatpush1.bf16.msra.mxu0 0
      %3395 = vmatprep.subr.bf16.mxu0 0
      %3396 = vmatpush1.bf16.msra.mxu0 0
      %3397 = vmatprep.subr.bf16.mxu0 0
      %3398 = vmatpush1.bf16.msra.mxu0 0
      %3399 = vmatprep.subr.bf16.mxu0 0
      %3400 = vmatpush1.bf16.msra.mxu0 0
      %3401 = vmatprep.subr.bf16.mxu0 0
      %3402 = vmatpush1.bf16.msra.mxu0 0
      %3403 = vmatprep.subr.bf16.mxu0 0
      %3404 = vmatpush1.bf16.msra.mxu0 0
      %3405 = vmatprep.subr.bf16.mxu0 0
      %3406 = vmatpush1.bf16.msra.mxu0 0
      %3407 = vmatprep.subr.bf16.mxu0 0
      %3408 = vmatpush1.bf16.msra.mxu0 0
      %3409 = vmatprep.mubr.bf16.mxu0 0
      %3410 = vmatmul.mubr.bf16.gmra.mrb[0].mxu0 %v3375
      %v3411 = vpop.f32.mrb[0].mxu0
      %v3412 = vadd.f32 %v3365, %v3411
      %v3413 = vpop.f32.mrb[0].mxu0
      %v3414 = vpop.f32.mrb[0].mxu0
      %v3415 = vpop.f32.mrb[0].mxu0
      %3416 = vdwg.mxu0
      %v3417 = vadd.f32 %v3412, %v3150
      %v3418 = vsel %vm631, %v3417, 0.0
      %3419 = vadd.xlane.f32.xlu0 %v3418
      %v3420 = vpop.xlane.xlu0 %3419
      %v3421 = vmul.f32 %v3420, %v2080
      %v3422 = vsub.f32 %v3417, %v3421
      %v3423 = vmul.f32 %v3422, %v3422
      %v3424 = vsel %vm631, %v3423, 0.0
      %3425 = vadd.xlane.f32.xlu0 %v3424
      %v3426 = vpop.xlane.xlu0 %3425
      %v3427 = vmul.f32 %v3426, %v2080
      %v3428 = vadd.f32 %v3427, 1e-05
      %v3429 = vrsqrt.pop %v3428
      %v3430 = vmul.f32 %v3422, %v3429
      %v3431 = vlaneseq
      %v3432 = vshrl.u32 %v3431, 7
      %v3433 = vsub.s32 5, %v3432
      %v3434 = vrot.slane %v3157, %v3433
      %v3435 = vmul.f32 %v3430, %v3434
      %v3436 = vlaneseq
      %v3437 = vshrl.u32 %v3436, 7
      %v3438 = vsub.s32 6, %v3437
      %v3439 = vrot.slane %v3157, %v3438
      %v3440 = vadd.f32 %v3435, %v3439
      %s3441 = scalar_lea.vmem %s11, 96
      %v3442 = vld [vmem:[%s3441] sm:$0xff]
      %v3443 = vld [vmem:[%s3441 + $0x8] sm:$0xff]
      %v3444 = vld [vmem:[%s3441 + $0x10] sm:$0xff]
      %v3445 = vld [vmem:[%s3441 + $0x18] sm:$0xff]
      %v3446 = vpack.c.bf16 %v3440, %v3440
      %v3447 = vpack.c.bf16 %v3443, %v3442
      %v3448 = vpack.c.bf16 %v3445, %v3444
      %v3449 = vlaneseq
      %v3450 = vshrl.u32 %v3449, 7
      %v3451 = vsub.s32 0, %v3450
      %v3452 = vrot.slane %v3159, %v3451
      %v3454 = vsel %vm631, %v3446, 0
      %3456 = vmatprep.subr.bf16.mxu0 0
      %3457 = vmatpush1.bf16.msra.mxu0 %v3447
      %3458 = vmatprep.subr.bf16.mxu0 0
      %3459 = vmatpush1.bf16.msra.mxu0 %v3448
      %3460 = vmatprep.subr.bf16.mxu0 0
      %3461 = vmatpush1.bf16.msra.mxu0 0
      %3462 = vmatprep.subr.bf16.mxu0 0
      %3463 = vmatpush1.bf16.msra.mxu0 0
      %3464 = vmatprep.subr.bf16.mxu0 0
      %3465 = vmatpush1.bf16.msra.mxu0 0
      %3466 = vmatprep.subr.bf16.mxu0 0
      %3467 = vmatpush1.bf16.msra.mxu0 0
      %3468 = vmatprep.subr.bf16.mxu0 0
      %3469 = vmatpush1.bf16.msra.mxu0 0
      %3470 = vmatprep.subr.bf16.mxu0 0
      %3471 = vmatpush1.bf16.msra.mxu0 0
      %3472 = vmatprep.subr.bf16.mxu0 0
      %3473 = vmatpush1.bf16.msra.mxu0 0
      %3474 = vmatprep.subr.bf16.mxu0 0
      %3475 = vmatpush1.bf16.msra.mxu0 0
      %3476 = vmatprep.subr.bf16.mxu0 0
      %3477 = vmatpush1.bf16.msra.mxu0 0
      %3478 = vmatprep.subr.bf16.mxu0 0
      %3479 = vmatpush1.bf16.msra.mxu0 0
      %3480 = vmatprep.subr.bf16.mxu0 0
      %3481 = vmatpush1.bf16.msra.mxu0 0
      %3482 = vmatprep.subr.bf16.mxu0 0
      %3483 = vmatpush1.bf16.msra.mxu0 0
      %3484 = vmatprep.subr.bf16.mxu0 0
      %3485 = vmatpush1.bf16.msra.mxu0 0
      %3486 = vmatprep.subr.bf16.mxu0 0
      %3487 = vmatpush1.bf16.msra.mxu0 0
      %3488 = vmatprep.mubr.bf16.mxu0 0
      %3489 = vmatmul.mubr.bf16.gmra.mrb[0].mxu0 %v3454
      %v3490 = vpop.f32.mrb[0].mxu0
      %v3491 = vadd.f32 %v3452, %v3490
      %v3492 = vpop.f32.mrb[0].mxu0
      %v3493 = vpop.f32.mrb[0].mxu0
      %v3494 = vpop.f32.mrb[0].mxu0
      %3495 = vdwg.mxu0
      %v3496 = vmax.f32 %v3491, 0.0
      %s3497 = scalar_lea.vmem %s12, 192
      %v3498 = vld [vmem:[%s3497] sm:$0xff]
      %v3499 = vld [vmem:[%s3497 + $0x8] sm:$0xff]
      %v3500 = vld [vmem:[%s3497 + $0x10] sm:$0xff]
      %v3501 = vld [vmem:[%s3497 + $0x18] sm:$0xff]
      %v3502 = vld [vmem:[%s3497 + $0x20] sm:$0xff]
      %v3503 = vld [vmem:[%s3497 + $0x28] sm:$0xff]
      %v3504 = vld [vmem:[%s3497 + $0x30] sm:$0xff]
      %v3505 = vld [vmem:[%s3497 + $0x38] sm:$0xff]
      %v3506 = vpack.c.bf16 %v3496, %v3496
      %v3507 = vpack.c.bf16 %v3499, %v3498
      %v3508 = vpack.c.bf16 %v3501, %v3500
      %v3509 = vpack.c.bf16 %v3503, %v3502
      %v3510 = vpack.c.bf16 %v3505, %v3504
      %v3511 = vlaneseq
      %v3512 = vshrl.u32 %v3511, 7
      %v3513 = vsub.s32 4, %v3512
      %v3514 = vrot.slane %v3157, %v3513
      %v3516 = vsel %vm1152, %v3506, 0
      %3518 = vmatprep.subr.bf16.mxu0 0
      %3519 = vmatpush1.bf16.msra.mxu0 %v3507
      %3520 = vmatprep.subr.bf16.mxu0 0
      %3521 = vmatpush1.bf16.msra.mxu0 %v3508
      %3522 = vmatprep.subr.bf16.mxu0 0
      %3523 = vmatpush1.bf16.msra.mxu0 %v3509
      %3524 = vmatprep.subr.bf16.mxu0 0
      %3525 = vmatpush1.bf16.msra.mxu0 %v3510
      %3526 = vmatprep.subr.bf16.mxu0 0
      %3527 = vmatpush1.bf16.msra.mxu0 0
      %3528 = vmatprep.subr.bf16.mxu0 0
      %3529 = vmatpush1.bf16.msra.mxu0 0
      %3530 = vmatprep.subr.bf16.mxu0 0
      %3531 = vmatpush1.bf16.msra.mxu0 0
      %3532 = vmatprep.subr.bf16.mxu0 0
      %3533 = vmatpush1.bf16.msra.mxu0 0
      %3534 = vmatprep.subr.bf16.mxu0 0
      %3535 = vmatpush1.bf16.msra.mxu0 0
      %3536 = vmatprep.subr.bf16.mxu0 0
      %3537 = vmatpush1.bf16.msra.mxu0 0
      %3538 = vmatprep.subr.bf16.mxu0 0
      %3539 = vmatpush1.bf16.msra.mxu0 0
      %3540 = vmatprep.subr.bf16.mxu0 0
      %3541 = vmatpush1.bf16.msra.mxu0 0
      %3542 = vmatprep.subr.bf16.mxu0 0
      %3543 = vmatpush1.bf16.msra.mxu0 0
      %3544 = vmatprep.subr.bf16.mxu0 0
      %3545 = vmatpush1.bf16.msra.mxu0 0
      %3546 = vmatprep.subr.bf16.mxu0 0
      %3547 = vmatpush1.bf16.msra.mxu0 0
      %3548 = vmatprep.subr.bf16.mxu0 0
      %3549 = vmatpush1.bf16.msra.mxu0 0
      %3550 = vmatprep.mubr.bf16.mxu0 0
      %3551 = vmatmul.mubr.bf16.gmra.mrb[0].mxu0 %v3516
      %v3552 = vpop.f32.mrb[0].mxu0
      %v3553 = vadd.f32 %v3514, %v3552
      %v3554 = vpop.f32.mrb[0].mxu0
      %v3555 = vpop.f32.mrb[0].mxu0
      %v3556 = vpop.f32.mrb[0].mxu0
      %3557 = vdwg.mxu0
      %v3558 = vadd.f32 %v3440, %v3553
      %v3559 = vsel %vm631, %v3558, 0.0
      %3560 = vadd.xlane.f32.xlu0 %v3559
      %v3561 = vpop.xlane.xlu0 %3560
      %v3562 = vmul.f32 %v3561, %v2080
      %v3563 = vsub.f32 %v3558, %v3562
      %v3564 = vmul.f32 %v3563, %v3563
      %v3565 = vsel %vm631, %v3564, 0.0
      %3566 = vadd.xlane.f32.xlu0 %v3565
      %v3567 = vpop.xlane.xlu0 %3566
      %v3568 = vmul.f32 %v3567, %v2080
      %v3569 = vadd.f32 %v3568, 1e-05
      %v3570 = vrsqrt.pop %v3569
      %v3571 = vmul.f32 %v3563, %v3570
      %v3572 = vlaneseq
      %v3573 = vshrl.u32 %v3572, 7
      %v3574 = vsub.s32 7, %v3573
      %v3575 = vrot.slane %v3157, %v3574
      %v3576 = vmul.f32 %v3571, %v3575
      %v3577 = vlaneseq
      %v3578 = vshrl.u32 %v3577, 7
      %v3579 = vsub.s32 0, %v3578
      %v3580 = vrot.slane %v3158, %v3579
      %v3581 = vadd.f32 %v3576, %v3580
      %vm3582 = vcmp.eq.f32.partialorder %v1755, 0.0
      %v3583 = vsel %vm3582, 1.0, 0.0
      %vm3584 = vcmask 57344
      %v3585 = vsel %vm3584, %v3583, 0.0
      %3586 = vadd.xlane.f32.xlu0 %v3585
      %v3587 = vpop.xlane.xlu0 %3586
      %v3588 = vmax.f32 %v3587, 1e-06
      %v3589 = vpack.c.bf16 %v3583, %v3583
      %v3591 = vsel %vm601, %v3589, 0
      %v3593 = vsel %vm685, %v2728, 0
      %3595 = vmatprep.subr.bf16.mxu0 0
      %3596 = vmatpush1.bf16.msra.mxu0 %v3593
      %3597 = vmatprep.subr.bf16.mxu0 0
      %3598 = vmatpush1.bf16.msra.mxu0 0
      %3599 = vmatprep.subr.bf16.mxu0 0
      %3600 = vmatpush1.bf16.msra.mxu0 0
      %3601 = vmatprep.subr.bf16.mxu0 0
      %3602 = vmatpush1.bf16.msra.mxu0 0
      %3603 = vmatprep.subr.bf16.mxu0 0
      %3604 = vmatpush1.bf16.msra.mxu0 0
      %3605 = vmatprep.subr.bf16.mxu0 0
      %3606 = vmatpush1.bf16.msra.mxu0 0
      %3607 = vmatprep.subr.bf16.mxu0 0
      %3608 = vmatpush1.bf16.msra.mxu0 0
      %3609 = vmatprep.subr.bf16.mxu0 0
      %3610 = vmatpush1.bf16.msra.mxu0 0
      %3611 = vmatprep.subr.bf16.mxu0 0
      %3612 = vmatpush1.bf16.msra.mxu0 0
      %3613 = vmatprep.subr.bf16.mxu0 0
      %3614 = vmatpush1.bf16.msra.mxu0 0
      %3615 = vmatprep.subr.bf16.mxu0 0
      %3616 = vmatpush1.bf16.msra.mxu0 0
      %3617 = vmatprep.subr.bf16.mxu0 0
      %3618 = vmatpush1.bf16.msra.mxu0 0
      %3619 = vmatprep.subr.bf16.mxu0 0
      %3620 = vmatpush1.bf16.msra.mxu0 0
      %3621 = vmatprep.subr.bf16.mxu0 0
      %3622 = vmatpush1.bf16.msra.mxu0 0
      %3623 = vmatprep.subr.bf16.mxu0 0
      %3624 = vmatpush1.bf16.msra.mxu0 0
      %3625 = vmatprep.subr.bf16.mxu0 0
      %3626 = vmatpush1.bf16.msra.mxu0 0
      %3627 = vmatprep.mubr.bf16.mxu0 0
      %3628 = vmatmul.mubr.bf16.gmra.mrb[0].mxu0 %v3591
      %v3629 = vpop.f32.mrb[0].mxu0
      %v3630 = vadd.f32 0.0, %v3629
      %v3631 = vpop.f32.mrb[0].mxu0
      %v3632 = vpop.f32.mrb[0].mxu0
      %v3633 = vpop.f32.mrb[0].mxu0
      %3634 = vdwg.mxu0
      %v3635 = vrcp.pop %v3588
      %v3636 = vmul.f32 %v3630, %v3635
      %v3637 = vld [vmem:[%s15 + $0x1] sm:$0x1]
      %v3638 = vld [vmem:[%s15 + $0x2] sm:$0x1]
      %v3639 = vld [vmem:[%s15 + $0x3] sm:$0x1]
      %v3640 = vmul.f32 %v3636, %v3637
      %vm3641 = vcmask 253952
      %v3642 = vsel %vm3641, %v3640, 0.0
      %3643 = vadd.xlane.f32.xlu0 %v3642
      %v3644 = vpop.xlane.xlu0 %3643
      %v3645 = vmul.f32 %v3581, %v3638
      %v3646 = vsel %vm3641, %v3645, 0.0
      %3647 = vadd.xlane.f32.xlu0 %v3646
      %v3648 = vpop.xlane.xlu0 %3647
      %v3649 = vadd.f32 %v3644, %v3648
      %v3650 = vadd.f32 %v3649, %v3639
      %vm3651 = vcmask 1040384
      %v3652 = vsel %vm3651, %v3650, 0.0
      %3654 = vrot.lane.b32.xlu0 %v2929, 8
      %v3655 = vpop.permute.xlu0 %3654
      %3658 = vrot.lane.b32.xlu0 %v3652, 16
      %v3659 = vpop.permute.xlu0 %3658
      %v3661 = vsel %vm601, %v2019, %v3655
      %vm3662 = vcmask 130048
      %v3663 = vsel %vm3662, %v3661, %v3659
      %vm3664 = vcmask 138240
      %v3665 = vsel %vm3664, %v3663, 0.0
      %3666 = vst [vmem:[%s584] sm:$0xff] %v3665
      %p3667 = scmp.lt.s32.totalorder %s27, 1
      %s3668 = scalar_select %p3667, %s27, 1
      %s3669 = smul.addr %s3668, 8
      %s3670 = scalar_lea.vmem %s16, %s3669
      // Predicated region
      $region85: #{forward.1} parent=83 // pred_check
        %p3671 = pneg %p406
      $region86: #{forward.1} parent=83 // pred_check_branch
        %3673 = sbr.rel (%p3671) target = $region88
      $region87: #{forward.1} parent=83 // pred_region
        _
      $region88: #{forward.1} parent=83 // pred_fallthru
        _
    $region84: #{forward.1} parent=5 // pred_fallthru
      _
    %p3674 = scmp.le.s32.totalorder 2, %s22
    // Predicated region
    $region89: #{forward.1} parent=5 // pred_check
      %p3675 = pneg %p3674
    $region90: #{forward.1} parent=5 // pred_check_branch
      %3677 = sbr.rel (%p3675) target = $region92
    $region91: #{forward.1} parent=5 // pred_region
      %s3678 = ssub.s32 %s22, 2
      // Predicated region
      $region93: #{forward.1} parent=91 // pred_check
        %p3679 = pneg %p412
      $region94: #{forward.1} parent=91 // pred_check_branch
        %3681 = sbr.rel (%p3679) target = $region96
      $region95: #{forward.1} parent=91 // pred_region
        %p3682 = scmp.lt.s32.totalorder %s28, 1
        %s3683 = scalar_select %p3682, %s28, 1
        %s3684 = smul.addr %s3683, 8
        %s3685 = scalar_lea.vmem %s16, %s3684
      $region96: #{forward.1} parent=91 // pred_fallthru
        _
    $region92: #{forward.1} parent=5 // pred_fallthru
      _
  $region6: #{forward.1} parent=0 // loop_footer
    %s26 = sadd.s32 1, %s22
  $region7: #{forward.1} parent=0 // loop_footer_branch
    %21 = sbr.rel target = $region3
  $region8: #{forward.1} parent=0 // loop_exit
    _

</llo_original>
